<compile_context>
chip_gen: v7x
topology: tpu7x:2x2x1
jax: 0.10.0
libtpu: 0.0.40
codegen_flags: <defaults>
</compile_context>

<pallas_src>
import numpy as np
import jax
import jax.numpy as jnp
from jax import lax
from jax.experimental import pallas as pl
from jax.experimental.pallas import tpu as pltpu

NEG_INF = -1e30

# v7x VMEM knob (perf feedback): single-buffer the never-changing constant blocks
# via pipeline_mode=pl.Buffered(1).  Left off by default for lowering portability.
_SINGLE_BUFFER_CONSTS = False


# ----------------------------------------------------------------------------
# helpers
# ----------------------------------------------------------------------------
def _const_spec(shape):
    """Full-array resident block (same block at every grid step)."""
    nd = len(shape)
    idx = lambda i, _nd=nd: (0,) * _nd
    if _SINGLE_BUFFER_CONSTS and hasattr(pl, "Buffered"):
        try:
            return pl.BlockSpec(shape, idx, pipeline_mode=pl.Buffered(1))
        except TypeError:
            pass
    return pl.BlockSpec(shape, idx)


def _device_vmem_plan():
    """(row-tile target, VMEM cap bytes) per TPU generation.
    v7x has 64 MiB VMEM per TensorCore -> smaller tiles / cap; v5e & v6e have
    128 MiB -> larger tiles and a raised scoped-VMEM limit."""
    try:
        kind = jax.devices()[0].device_kind.lower()
    except Exception:
        kind = ""
    if "v7" in kind:
        return 1024, 40 * 1024 * 1024
    return 2048, 96 * 1024 * 1024


def _pick_tiling(B_r, HW, dim_hr, stream_budget_bytes, row_target):
    """Row tiles are whole regions (k regions per tile) so the selection masks
    expand with a static one-hot matmul.  Requires k | B_r, (k*HW) % 8 == 0 and
    n_tiles >= 2 (keep the DMA/compute pipeline alive; v7x two-core feedback)."""
    cands = []
    for k in range(1, B_r + 1):
        if B_r % k:
            continue
        n_tiles = B_r // k
        if n_tiles < 2:
            continue
        row_tile = k * HW
        if row_tile % 8:                       # (8,128) sublane constraint
            continue
        # streamed per-tile VMEM: bf16 in + f32 out, double-buffered by the pipeline
        if 2 * row_tile * dim_hr * (2 + 4) > stream_budget_bytes:
            continue
        cands.append((row_tile, n_tiles, k))
    if not cands:
        # TODO(synk): pad R / add a tail mask instead of one full-extent grid step.
        return B_r * HW, 1, B_r
    within = [c for c in cands if c[0] <= row_target]
    pool = within if within else [min(cands)]
    # largest tile wins; even tile counts break ties (v7x two-core balance)
    best = max(pool, key=lambda c: (c[0], c[1] % 2 == 0))
    return best


# ----------------------------------------------------------------------------
# fused FS kernel: r2o online-softmax reduction + relation + o2r + residuals
# ----------------------------------------------------------------------------
def fs_fused(feature_obj, reg_flat_bf, mat_obj_tiles, mat_reg_tiles, base_t,
             rel_bias, kp, dims, row_tile, n_tiles, vmem_cap):
    dim_ho, dim_hr, dim_mm = dims
    B_o = feature_obj.shape[0]
    rph = base_t.shape[1]
    R = reg_flat_bf.shape[0]
    dh2 = dim_ho // 2
    att_scale = 1.0 / float(np.sqrt(dim_mm + 1e-10))
    rel_scale = 1.0 / float(np.sqrt(dh2))

    def kernel(feat_ref, mobj_ref, mreg_ref, base_ref, reg_ref,
               w_objcat_ref, b_objcat_ref,
               w_regcat_ref, b_regcat_ref,
               w_tr2o_ref, b_tr2o_ref,
               w_to2r_ref, b_to2r_ref,
               w_relcat_ref, relbias_ref,
               out_obj_ref, out_reg_ref,
               qobj_scr, kobj_scr, m_scr, l_scr, acc_scr, msgoo_scr):
        step = pl.program_id(0)
        x = feat_ref[...]                                        # [B_o, dim_ho] f32

        # ---- step-0 prologue (depends only on feature_obj / rel_bias): object
        # attention projections + full object->object relation attention.  Runs
        # under the pipeline fill instead of on the last grid step.
        @pl.when(step == 0)
        def _prologue():
            xb = x.astype(jnp.bfloat16)
            xr = jnp.maximum(x, 0.0).astype(jnp.bfloat16)
            proj = jnp.dot(xr, w_objcat_ref[...],
                           preferred_element_type=jnp.float32) + b_objcat_ref[...]
            qobj_scr[...] = proj[:, :dim_mm]                        # r2o queries (f32)
            kobj_scr[...] = proj[:, dim_mm:].astype(jnp.bfloat16)   # o2r keys (bf16)
            m_scr[...] = jnp.full((B_o, 1), NEG_INF, jnp.float32)
            l_scr[...] = jnp.zeros((B_o, 1), jnp.float32)
            acc_scr[...] = jnp.zeros((B_o, dim_hr), jnp.float32)
            # relation (object -> object), q/k/v in one wide matmul
            rel = jnp.dot(xb, w_relcat_ref[...], preferred_element_type=jnp.float32)
            qr = rel[:, :dh2]
            kr = rel[:, dh2:2 * dh2]
            vr = rel[:, 2 * dh2:]
            sr = lax.dot_general(qr, kr, (((1,), (1,)), ((), ())),
                                 preferred_element_type=jnp.float32) * rel_scale \
                 + relbias_ref[...]
            sr = sr - jnp.max(sr, axis=1, keepdims=True)
            er = jnp.exp(sr)
            pr = er / jnp.sum(er, axis=1, keepdims=True)            # exact (tiny)
            msgoo_scr[...] = jnp.dot(pr, vr, preferred_element_type=jnp.float32)

        # ---- per-tile shared work: one wide bf16 projection of the region tile
        regs_bf = reg_ref[...]                                      # [T, dim_hr] bf16
        regs_relu = jnp.maximum(regs_bf, 0)
        proj_reg = jnp.dot(regs_relu, w_regcat_ref[...],
                           preferred_element_type=jnp.float32) + b_regcat_ref[...]
        k_r2o = proj_reg[:, :dim_mm]                                # [T, dim_mm] f32
        q_o2r = proj_reg[:, dim_mm:]                                # [T, dim_mm] f32

        # static one-hot expansion of the per-tile selection masks (no iota/compare)
        m_obj = mobj_ref[0]                                         # [B_o, rph]
        m_reg = mreg_ref[0]                                         # [rph, B_o]
        base = base_ref[...]                                        # [T, rph]
        sel_r2o = lax.dot_general(m_obj, base, (((1,), (1,)), ((), ())),
                                  preferred_element_type=jnp.float32)   # [B_o, T]
        sel_o2r = jnp.dot(base, m_reg, preferred_element_type=jnp.float32)  # [T, B_o]

        # ---- region -> object: online-softmax reduction across tiles ----------
        s = lax.dot_general(qobj_scr[...], k_r2o, (((1,), (1,)), ((), ())),
                            preferred_element_type=jnp.float32) * att_scale  # [B_o, T]
        pos = sel_r2o > 0.0
        s = jnp.where(pos, s, NEG_INF)
        m_new = jnp.maximum(m_scr[...], jnp.max(s, axis=1, keepdims=True))
        alpha = jnp.exp(m_scr[...] - m_new)
        # * pos guards tiles where an object selects none of this tile's regions
        e = jnp.exp(s - m_new) * pos.astype(jnp.float32)
        l_scr[...] = alpha * l_scr[...] + jnp.sum(e, axis=1, keepdims=True)
        acc_scr[...] = alpha * acc_scr[...] + jnp.dot(
            e.astype(jnp.bfloat16), regs_bf, preferred_element_type=jnp.float32)
        m_scr[...] = m_new

        # ---- object -> region: per-pixel softmax over objects + residual -------
        s2 = lax.dot_general(q_o2r.astype(jnp.bfloat16), kobj_scr[...],
                             (((1,), (1,)), ((), ())),
                             preferred_element_type=jnp.float32) * att_scale  # [T, B_o]
        s2 = jnp.where(sel_o2r > 0.0, s2, NEG_INF)
        s2 = s2 - jnp.max(s2, axis=1, keepdims=True)
        e2 = jnp.exp(s2)
        # approx reciprocal (EUP): documented inference-grade accuracy
        p2 = e2 * pl.reciprocal(jnp.sum(e2, axis=1, keepdims=True) + 1e-12, approx=True)
        feat_o2r = jnp.dot(p2.astype(jnp.bfloat16), x.astype(jnp.bfloat16),
                           preferred_element_type=jnp.float32)          # [T, dim_ho]
        msg_o2r = jnp.dot(jnp.maximum(feat_o2r, 0.0).astype(jnp.bfloat16),
                          w_to2r_ref[...],
                          preferred_element_type=jnp.float32) + b_to2r_ref[...]
        out_reg_ref[...] = regs_bf.astype(jnp.float32) + msg_o2r        # fused residual

        # ---- last step: finalize region->object and write the object output ----
        @pl.when(step == n_tiles - 1)
        def _finalize():
            feat_r2o = acc_scr[...] * pl.reciprocal(l_scr[...] + 1e-12, approx=True)
            msg_r2o = jnp.dot(jnp.maximum(feat_r2o, 0.0).astype(jnp.bfloat16),
                              w_tr2o_ref[...],
                              preferred_element_type=jnp.float32) + b_tr2o_ref[...]
            out_obj_ref[...] = x + msg_r2o + msgoo_scr[...]

    const_args = (feature_obj, base_t,
                  kp["w_obj_cat"], kp["b_obj_cat"],
                  kp["w_reg_cat"], kp["b_reg_cat"],
                  kp["w_t_r2o"], kp["b_t_r2o"],
                  kp["w_t_o2r"], kp["b_t_o2r"],
                  kp["w_rel_cat"], rel_bias)

    # size the scoped-VMEM limit for the actual config (double-buffered residents
    # + streamed bf16-in / f32-out tiles + scratch), clamped by the per-chip cap.
    const_bytes = sum(int(np.prod(a.shape)) * a.dtype.itemsize for a in const_args)
    const_bytes += 2 * (rph * B_o * 4)                   # per-tile mask slabs
    stream_bytes = 2 * row_tile * dim_hr * (2 + 4)
    scratch_bytes = 4 * B_o * (dim_mm + 2 + dim_hr + dim_ho) + 2 * B_o * dim_mm
    need = 2 * const_bytes + stream_bytes + scratch_bytes + (2 << 20)
    vmem_limit = int(min(vmem_cap, max(need, 4 << 20)))

    return pl.pallas_call(
        kernel,
        out_shape=(jax.ShapeDtypeStruct((B_o, dim_ho), jnp.float32),
                   jax.ShapeDtypeStruct((R, dim_hr), jnp.float32)),
        grid=(n_tiles,),
        in_specs=[
            _const_spec((B_o, dim_ho)),                              # feature_obj
            pl.BlockSpec((1, B_o, rph), lambda i: (i, 0, 0)),        # mat_object tiles
            pl.BlockSpec((1, rph, B_o), lambda i: (i, 0, 0)),        # mat_region tiles
            _const_spec(base_t.shape),                               # one-hot expander
            pl.BlockSpec((row_tile, dim_hr), lambda i: (i, 0)),      # region tile (bf16)
            _const_spec(kp["w_obj_cat"].shape), _const_spec(kp["b_obj_cat"].shape),
            _const_spec(kp["w_reg_cat"].shape), _const_spec(kp["b_reg_cat"].shape),
            _const_spec(kp["w_t_r2o"].shape), _const_spec(kp["b_t_r2o"].shape),
            _const_spec(kp["w_t_o2r"].shape), _const_spec(kp["b_t_o2r"].shape),
            _const_spec(kp["w_rel_cat"].shape),
            _const_spec(rel_bias.shape),
        ],
        out_specs=(_const_spec((B_o, dim_ho)),
                   pl.BlockSpec((row_tile, dim_hr), lambda i: (i, 0))),
        scratch_shapes=[
            pltpu.VMEM((B_o, dim_mm), jnp.float32),     # r2o object queries
            pltpu.VMEM((B_o, dim_mm), jnp.bfloat16),    # o2r object keys
            pltpu.VMEM((B_o, 1), jnp.float32),          # running max
            pltpu.VMEM((B_o, 1), jnp.float32),          # running denom
            pltpu.VMEM((B_o, dim_hr), jnp.float32),     # running weighted-value acc
            pltpu.VMEM((B_o, dim_ho), jnp.float32),     # relation message (step 0)
        ],
        compiler_params=pltpu.CompilerParams(
            dimension_semantics=("arbitrary",),
            vmem_limit_bytes=vmem_limit),
    )(feature_obj, mat_obj_tiles, mat_reg_tiles, base_t, reg_flat_bf,
      kp["w_obj_cat"], kp["b_obj_cat"],
      kp["w_reg_cat"], kp["b_reg_cat"],
      kp["w_t_r2o"], kp["b_t_r2o"],
      kp["w_t_o2r"], kp["b_t_o2r"],
      kp["w_rel_cat"], rel_bias)


# ----------------------------------------------------------------------------
# Parameters (deterministic synthetic init; 1x1 Conv weights stored as [Cin, Cout])
# ----------------------------------------------------------------------------
def init_params(key, dim_ho, dim_hr, dim_mm):
    ks = jax.random.split(key, 16)

    def w(k, shape, scale=0.1):
        return (scale * jax.random.normal(k, shape)).astype(jnp.float32)

    return {
        "att_r2o_obj_w": w(ks[0], (dim_ho, dim_mm)), "att_r2o_obj_b": w(ks[1], (1, dim_mm)),
        "att_r2o_reg_w": w(ks[2], (dim_hr, dim_mm)), "att_r2o_reg_b": w(ks[3], (1, dim_mm)),
        "att_o2r_reg_w": w(ks[4], (dim_hr, dim_mm)), "att_o2r_reg_b": w(ks[5], (1, dim_mm)),
        "att_o2r_obj_w": w(ks[6], (dim_ho, dim_mm)), "att_o2r_obj_b": w(ks[7], (1, dim_mm)),
        "t_r2o_w": w(ks[8], (dim_hr, dim_ho)), "t_r2o_b": w(ks[9], (1, dim_ho)),
        "t_o2r_w": w(ks[10], (dim_ho, dim_hr)), "t_o2r_b": w(ks[11], (1, dim_hr)),
        "rel_wq": w(ks[12], (dim_ho, dim_ho // 2)),
        "rel_wk": w(ks[13], (dim_ho, dim_ho // 2)),
        "rel_wv": w(ks[14], (dim_ho, dim_ho)),
        "rel_wg": w(ks[15], (4,)),
        "rel_bg": jnp.zeros((), jnp.float32),
    }


def _prep_kernel_params(params):
    """Concatenate shared-input projections (one wide MXU matmul each) and cast
    matmul operands to bf16; biases stay f32 (added after f32 accumulation)."""
    bf = lambda a: a.astype(jnp.bfloat16)
    return {
        "w_obj_cat": bf(jnp.concatenate([params["att_r2o_obj_w"], params["att_o2r_obj_w"]], 1)),
        "b_obj_cat": jnp.concatenate([params["att_r2o_obj_b"], params["att_o2r_obj_b"]], 1),
        "w_reg_cat": bf(jnp.concatenate([params["att_r2o_reg_w"], params["att_o2r_reg_w"]], 1)),
        "b_reg_cat": jnp.concatenate([params["att_r2o_reg_b"], params["att_o2r_reg_b"]], 1),
        "w_t_r2o": bf(params["t_r2o_w"]), "b_t_r2o": params["t_r2o_b"],
        "w_t_o2r": bf(params["t_o2r_w"]), "b_t_o2r": params["t_o2r_b"],
        "w_rel_cat": bf(jnp.concatenate([params["rel_wq"], params["rel_wk"], params["rel_wv"]], 1)),
    }


def _geometry_bias(object_rois, params):
    """Pairwise box-geometry bias for the relation module (tiny [B_o,B_o] glue)."""
    x1, y1, x2, y2 = object_rois[:, 1], object_rois[:, 2], object_rois[:, 3], object_rois[:, 4]
    cx, cy = (x1 + x2) * 0.5, (y1 + y2) * 0.5
    wd, ht = (x2 - x1) + 1e-3, (y2 - y1) + 1e-3
    dx = jnp.abs(cx[:, None] - cx[None, :]) / wd[:, None]
    dy = jnp.abs(cy[:, None] - cy[None, :]) / ht[:, None]
    geo = jnp.stack(
        [jnp.log(dx + 1e-3), jnp.log(dy + 1e-3),
         jnp.log(wd[None, :] / wd[:, None]), jnp.log(ht[None, :] / ht[:, None])],
        axis=-1)
    geo_w = jnp.maximum(jnp.einsum("ijk,k->ij", geo, params["rel_wg"]) + params["rel_bg"], 0.0)
    return jnp.log(geo_w + 1e-6)


# ----------------------------------------------------------------------------
# factor_updating_structure.forward
# ----------------------------------------------------------------------------
def factor_updating_structure_forward(params, opts, feature_obj, feature_region,
                                      mat_object, mat_region, object_rois, region_rois):
    dim_ho, dim_hr, dim_mm = opts["dim_ho"], opts["dim_hr"], opts["dim_mm"]
    B_o = feature_obj.shape[0]
    B_r, C_hr, H, W = feature_region.shape
    HW = H * W
    R = B_r * HW

    row_target, vmem_cap = _device_vmem_plan()
    row_tile, n_tiles, rph = _pick_tiling(B_r, HW, dim_hr, vmem_cap // 2, row_target)

    # Channel-last flattened region features, cast to bf16 fused with the transpose
    # (halves the streamed HBM bytes).  The residual is added in f32 in-kernel.
    # TODO(synk): keep the surrounding graph channel-last to drop this round-trip.
    reg_flat_bf = jnp.transpose(feature_region, (0, 2, 3, 1)).reshape(R, C_hr) \
                     .astype(jnp.bfloat16)

    # Static one-hot expander (within-tile row -> within-tile region) and the
    # per-tile selection-mask slabs (delivered via tiny 3-D BlockSpecs).
    base_np = (np.arange(row_tile)[:, None] // HW == np.arange(rph)[None, :]).astype(np.float32)
    base_t = jnp.asarray(base_np)                                    # [row_tile, rph]
    mat_obj_tiles = mat_object.reshape(B_o, n_tiles, rph).transpose(1, 0, 2)
    mat_reg_tiles = mat_region.reshape(n_tiles, rph, B_o)

    rel_bias = _geometry_bias(object_rois, params)
    kp = _prep_kernel_params(params)

    out_obj, out_reg_flat = fs_fused(
        feature_obj, reg_flat_bf, mat_obj_tiles, mat_reg_tiles, base_t,
        rel_bias, kp, (dim_ho, dim_hr, dim_mm), row_tile, n_tiles, vmem_cap)

    out_feature_region = jnp.transpose(
        out_reg_flat.reshape(B_r, H, W, dim_hr), (0, 3, 1, 2))
    return out_obj, out_feature_region


# ----------------------------------------------------------------------------
# pure-JAX reference (for correctness check)
# ----------------------------------------------------------------------------
def _reference_forward(params, opts, feature_obj, feature_region,
                       mat_object, mat_region, object_rois, region_rois):
    dim_ho, dim_hr, dim_mm = opts["dim_ho"], opts["dim_hr"], opts["dim_mm"]
    B_r, C, H, W = feature_region.shape
    HW = H * W
    reg_flat = jnp.transpose(feature_region, (0, 2, 3, 1)).reshape(B_r * HW, C)
    scale = 1.0 / np.sqrt(dim_mm + 1e-10)

    def lin(x, w, b):
        return jnp.maximum(x, 0.0) @ w + b

    # region_to_object
    q = lin(feature_obj, params["att_r2o_obj_w"], params["att_r2o_obj_b"])
    k = lin(reg_flat, params["att_r2o_reg_w"], params["att_r2o_reg_b"])
    s = (q @ k.T) * scale
    sel = jnp.repeat(mat_object, HW, axis=1) > 0
    s = jnp.where(sel, s, NEG_INF)
    feat_r2o = jax.nn.softmax(s, axis=1) @ reg_flat
    msg_r2o = lin(feat_r2o, params["t_r2o_w"], params["t_r2o_b"])

    # relation (object -> object)
    rel_bias = _geometry_bias(object_rois, params)
    qr = feature_obj @ params["rel_wq"]
    kr = feature_obj @ params["rel_wk"]
    vr = feature_obj @ params["rel_wv"]
    sr = (qr @ kr.T) / np.sqrt(dim_ho // 2) + rel_bias
    msg_o2o = jax.nn.softmax(sr, axis=1) @ vr
    out_obj = feature_obj + msg_r2o + msg_o2o

    # object_to_region
    q2 = lin(reg_flat, params["att_o2r_reg_w"], params["att_o2r_reg_b"])
    k2 = lin(feature_obj, params["att_o2r_obj_w"], params["att_o2r_obj_b"])
    s2 = (q2 @ k2.T) * scale
    sel2 = jnp.repeat(mat_region, HW, axis=0) > 0
    s2 = jnp.where(sel2, s2, NEG_INF)
    feat_o2r = jax.nn.softmax(s2, axis=1) @ feature_obj
    msg_o2r = lin(feat_o2r, params["t_o2r_w"], params["t_o2r_b"])
    out_reg = feature_region + jnp.transpose(
        msg_o2r.reshape(B_r, H, W, dim_hr), (0, 3, 1, 2))
    return out_obj, out_reg


# ----------------------------------------------------------------------------
# main
# ----------------------------------------------------------------------------
if __name__ == "__main__":
    opts = {"dim_ho": 32, "dim_hr": 32, "dim_mm": 32,
            "dropout": 0.0, "use_bias": True, "kernel_size": 1}
    B_o, B_r, H, W = 6, 4, 8, 8   # B_r*H*W = 256 rows -> 2 row tiles of 128

    key = jax.random.PRNGKey(0)
    k_fo, k_fr, k_mo, k_mr, k_roi, k_p = jax.random.split(key, 6)

    feature_obj = jax.random.normal(k_fo, (B_o, opts["dim_ho"]), jnp.float32)
    feature_region = jax.random.normal(k_fr, (B_r, opts["dim_hr"], H, W), jnp.float32)

    # selection matrices (every row has at least one positive, as the module asserts)
    mat_object = (jax.random.uniform(k_mo, (B_o, B_r)) > 0.4).astype(jnp.float32)
    mat_object = mat_object.at[jnp.arange(B_o), jnp.arange(B_o) % B_r].set(1.0)
    mat_region = (jax.random.uniform(k_mr, (B_r, B_o)) > 0.4).astype(jnp.float32)
    mat_region = mat_region.at[jnp.arange(B_r), jnp.arange(B_r) % B_o].set(1.0)

    def make_rois(k, n):
        u = jax.random.uniform(k, (n, 4)) * 50.0
        x1, y1 = u[:, 0], u[:, 1]
        x2, y2 = x1 + 8.0 + u[:, 2], y1 + 8.0 + u[:, 3]
        return jnp.stack([jnp.zeros((n,)), x1, y1, x2, y2], axis=1).astype(jnp.float32)

    rk1, rk2 = jax.random.split(k_roi)
    object_rois = make_rois(rk1, B_o)   # [B_o, 5] : (batch_idx, x1, y1, x2, y2)
    region_rois = make_rois(rk2, B_r)   # [B_r, 5] (unused by forward; signature parity)

    params = init_params(k_p, opts["dim_ho"], opts["dim_hr"], opts["dim_mm"])

    fwd = jax.jit(lambda p, fo, fr, mo, mr, orois, rrois:
                  factor_updating_structure_forward(p, opts, fo, fr, mo, mr, orois, rrois))
    out_obj, out_reg = fwd(params, feature_obj, feature_region,
                           mat_object, mat_region, object_rois, region_rois)
    jax.block_until_ready((out_obj, out_reg))

    # correctness check against a pure-JAX f32 reference (kernel uses bf16 operands
    # + approx reciprocals, hence the loosened tolerance)
    ref_obj, ref_reg = _reference_forward(params, opts, feature_obj, feature_region,
                                          mat_object, mat_region, object_rois, region_rois)
    np.testing.assert_allclose(np.asarray(out_obj), np.asarray(ref_obj), rtol=2e-2, atol=2e-2)
    np.testing.assert_allclose(np.asarray(out_reg), np.asarray(ref_reg), rtol=2e-2, atol=2e-2)

    assert out_obj.shape == (B_o, opts["dim_ho"])
    assert out_reg.shape == feature_region.shape
    assert bool(jnp.all(jnp.isfinite(out_obj))) and bool(jnp.all(jnp.isfinite(out_reg)))
    print("KERNEL_OK")
</pallas_src>

<mosaic_0001>
module attributes {stable_mosaic.version = 11 : i64} {
  func.func @kernel(%arg0: i32, %arg1: memref<6x32xf32, #tpu.memory_space<vmem>>, %arg2: memref<1x6x2xf32, #tpu.memory_space<vmem>>, %arg3: memref<1x2x6xf32, #tpu.memory_space<vmem>>, %arg4: memref<128x2xf32, #tpu.memory_space<vmem>>, %arg5: memref<128x32xbf16, #tpu.memory_space<vmem>>, %arg6: memref<32x64xbf16, #tpu.memory_space<vmem>>, %arg7: memref<1x64xf32, #tpu.memory_space<vmem>>, %arg8: memref<32x64xbf16, #tpu.memory_space<vmem>>, %arg9: memref<1x64xf32, #tpu.memory_space<vmem>>, %arg10: memref<32x32xbf16, #tpu.memory_space<vmem>>, %arg11: memref<1x32xf32, #tpu.memory_space<vmem>>, %arg12: memref<32x32xbf16, #tpu.memory_space<vmem>>, %arg13: memref<1x32xf32, #tpu.memory_space<vmem>>, %arg14: memref<32x64xbf16, #tpu.memory_space<vmem>>, %arg15: memref<6x6xf32, #tpu.memory_space<vmem>>, %arg16: memref<6x32xf32, #tpu.memory_space<vmem>>, %arg17: memref<128x32xf32, #tpu.memory_space<vmem>>, %arg18: memref<6x32xf32, #tpu.memory_space<vmem>>, %arg19: memref<6x32xbf16, #tpu.memory_space<vmem>>, %arg20: memref<6x1xf32, #tpu.memory_space<vmem>>, %arg21: memref<6x1xf32, #tpu.memory_space<vmem>>, %arg22: memref<6x32xf32, #tpu.memory_space<vmem>>, %arg23: memref<6x32xf32, #tpu.memory_space<vmem>>) attributes {dimension_semantics = [#tpu.dimension_semantics<arbitrary>], iteration_bounds = array<i64: 2>, scalar_prefetch = 0 : i64, scratch_operands = 6 : i64, tpu.core_type = #tpu.core_type<tc>, window_params = [{pipeline_mode = #tpu.pipeline_mode<synchronous>, transform_indices = @transform_0, window_bounds = array<i64: 6, 32>}, {transform_indices = @transform_1, window_bounds = array<i64: 1, 6, 2>}, {transform_indices = @transform_2, window_bounds = array<i64: 1, 2, 6>}, {pipeline_mode = #tpu.pipeline_mode<synchronous>, transform_indices = @transform_3, window_bounds = array<i64: 128, 2>}, {transform_indices = @transform_4, window_bounds = array<i64: 128, 32>}, {pipeline_mode = #tpu.pipeline_mode<synchronous>, transform_indices = @transform_5, window_bounds = array<i64: 32, 64>}, {pipeline_mode = #tpu.pipeline_mode<synchronous>, transform_indices = @transform_6, window_bounds = array<i64: 1, 64>}, {pipeline_mode = #tpu.pipeline_mode<synchronous>, transform_indices = @transform_7, window_bounds = array<i64: 32, 64>}, {pipeline_mode = #tpu.pipeline_mode<synchronous>, transform_indices = @transform_8, window_bounds = array<i64: 1, 64>}, {pipeline_mode = #tpu.pipeline_mode<synchronous>, transform_indices = @transform_9, window_bounds = array<i64: 32, 32>}, {pipeline_mode = #tpu.pipeline_mode<synchronous>, transform_indices = @transform_10, window_bounds = array<i64: 1, 32>}, {pipeline_mode = #tpu.pipeline_mode<synchronous>, transform_indices = @transform_11, window_bounds = array<i64: 32, 32>}, {pipeline_mode = #tpu.pipeline_mode<synchronous>, transform_indices = @transform_12, window_bounds = array<i64: 1, 32>}, {pipeline_mode = #tpu.pipeline_mode<synchronous>, transform_indices = @transform_13, window_bounds = array<i64: 32, 64>}, {pipeline_mode = #tpu.pipeline_mode<synchronous>, transform_indices = @transform_14, window_bounds = array<i64: 6, 6>}, {pipeline_mode = #tpu.pipeline_mode<synchronous>, transform_indices = @transform_15, window_bounds = array<i64: 6, 32>}, {transform_indices = @transform_16, window_bounds = array<i64: 128, 32>}]} {
    %c0 = arith.constant 0 : index
    %c0_0 = arith.constant 0 : index
    %0 = vector.load %arg1[%c0, %c0_0] : memref<6x32xf32, #tpu.memory_space<vmem>>, vector<6x32xf32>
    %c0_i32 = arith.constant 0 : i32
    %1 = arith.cmpi eq, %arg0, %c0_i32 : i32
    %2 = arith.extui %1 : i1 to i32
    %c0_i32_1 = arith.constant 0 : i32
    %3 = arith.cmpi ne, %2, %c0_i32_1 : i32
    scf.if %3 {
      %94 = arith.truncf %0 : vector<6x32xf32> to vector<6x32xbf16>
      %cst_61 = arith.constant 0.000000e+00 : f32
      %95 = vector.broadcast %cst_61 : f32 to vector<6x32xf32>
      %96 = arith.maximumf %0, %95 : vector<6x32xf32>
      %97 = arith.truncf %96 : vector<6x32xf32> to vector<6x32xbf16>
      %c0_62 = arith.constant 0 : index
      %c0_63 = arith.constant 0 : index
      %98 = vector.load %arg6[%c0_62, %c0_63] : memref<32x64xbf16, #tpu.memory_space<vmem>>, vector<32x64xbf16>
      %cst_64 = arith.constant dense<0.000000e+00> : vector<6x64xf32>
      %99 = tpu.matmul %97, %98, %cst_64 {dimension_numbers = #tpu.dot_dimension_numbers<[1], [0], [0], [1], [0, 0, 1, 1], [], []>} : vector<6x32xbf16>, vector<32x64xbf16>, vector<6x64xf32> -> vector<6x64xf32>
      %c0_65 = arith.constant 0 : index
      %c0_66 = arith.constant 0 : index
      %100 = vector.load %arg7[%c0_65, %c0_66] : memref<1x64xf32, #tpu.memory_space<vmem>>, vector<1x64xf32>
      %101 = vector.broadcast %100 : vector<1x64xf32> to vector<6x64xf32>
      %102 = arith.addf %99, %101 : vector<6x64xf32>
      %103 = vector.extract_strided_slice %102 {offsets = [0, 0], sizes = [6, 32], strides = [1, 1]} : vector<6x64xf32> to vector<6x32xf32>
      %c0_67 = arith.constant 0 : index
      %c0_68 = arith.constant 0 : index
      %104 = vector.load %arg18[%c0_67, %c0_68] : memref<6x32xf32, #tpu.memory_space<vmem>>, vector<6x32xf32>
      tpu.vector_store %arg18[%c0_67, %c0_68], %103 {strides = array<i32>} : memref<6x32xf32, #tpu.memory_space<vmem>>, vector<6x32xf32>,
      %105 = vector.extract_strided_slice %102 {offsets = [0, 32], sizes = [6, 32], strides = [1, 1]} : vector<6x64xf32> to vector<6x32xf32>
      %106 = arith.truncf %105 : vector<6x32xf32> to vector<6x32xbf16>
      %c0_69 = arith.constant 0 : index
      %c0_70 = arith.constant 0 : index
      %107 = vector.load %arg19[%c0_69, %c0_70] : memref<6x32xbf16, #tpu.memory_space<vmem>>, vector<6x32xbf16>
      tpu.vector_store %arg19[%c0_69, %c0_70], %106 {strides = array<i32>} : memref<6x32xbf16, #tpu.memory_space<vmem>>, vector<6x32xbf16>,
      %cst_71 = arith.constant -1.000000e+30 : f32
      %108 = vector.broadcast %cst_71 : f32 to vector<6x1xf32>
      %c0_72 = arith.constant 0 : index
      %c0_73 = arith.constant 0 : index
      %109 = vector.load %arg20[%c0_72, %c0_73] : memref<6x1xf32, #tpu.memory_space<vmem>>, vector<6x1xf32>
      tpu.vector_store %arg20[%c0_72, %c0_73], %108 {strides = array<i32>} : memref<6x1xf32, #tpu.memory_space<vmem>>, vector<6x1xf32>,
      %cst_74 = arith.constant 0.000000e+00 : f32
      %110 = vector.broadcast %cst_74 : f32 to vector<6x1xf32>
      %c0_75 = arith.constant 0 : index
      %c0_76 = arith.constant 0 : index
      %111 = vector.load %arg21[%c0_75, %c0_76] : memref<6x1xf32, #tpu.memory_space<vmem>>, vector<6x1xf32>
      tpu.vector_store %arg21[%c0_75, %c0_76], %110 {strides = array<i32>} : memref<6x1xf32, #tpu.memory_space<vmem>>, vector<6x1xf32>,
      %cst_77 = arith.constant 0.000000e+00 : f32
      %112 = vector.broadcast %cst_77 : f32 to vector<6x32xf32>
      %c0_78 = arith.constant 0 : index
      %c0_79 = arith.constant 0 : index
      %113 = vector.load %arg22[%c0_78, %c0_79] : memref<6x32xf32, #tpu.memory_space<vmem>>, vector<6x32xf32>
      tpu.vector_store %arg22[%c0_78, %c0_79], %112 {strides = array<i32>} : memref<6x32xf32, #tpu.memory_space<vmem>>, vector<6x32xf32>,
      %c0_80 = arith.constant 0 : index
      %c0_81 = arith.constant 0 : index
      %114 = vector.load %arg14[%c0_80, %c0_81] : memref<32x64xbf16, #tpu.memory_space<vmem>>, vector<32x64xbf16>
      %cst_82 = arith.constant dense<0.000000e+00> : vector<6x64xf32>
      %115 = tpu.matmul %94, %114, %cst_82 {dimension_numbers = #tpu.dot_dimension_numbers<[1], [0], [0], [1], [0, 0, 1, 1], [], []>} : vector<6x32xbf16>, vector<32x64xbf16>, vector<6x64xf32> -> vector<6x64xf32>
      %116 = vector.extract_strided_slice %115 {offsets = [0, 0], sizes = [6, 16], strides = [1, 1]} : vector<6x64xf32> to vector<6x16xf32>
      %117 = vector.extract_strided_slice %115 {offsets = [0, 16], sizes = [6, 16], strides = [1, 1]} : vector<6x64xf32> to vector<6x16xf32>
      %118 = vector.extract_strided_slice %115 {offsets = [0, 32], sizes = [6, 32], strides = [1, 1]} : vector<6x64xf32> to vector<6x32xf32>
      %cst_83 = arith.constant dense<0.000000e+00> : vector<6x6xf32>
      %119 = tpu.matmul %116, %117, %cst_83 {dimension_numbers = #tpu.dot_dimension_numbers<[1], [1], [0], [0], [0, 0, 1, 0], [], []>} : vector<6x16xf32>, vector<6x16xf32>, vector<6x6xf32> -> vector<6x6xf32>
      %cst_84 = arith.constant 2.500000e-01 : f32
      %120 = vector.broadcast %cst_84 : f32 to vector<6x6xf32>
      %121 = arith.mulf %119, %120 : vector<6x6xf32>
      %c0_85 = arith.constant 0 : index
      %c0_86 = arith.constant 0 : index
      %122 = vector.load %arg15[%c0_85, %c0_86] : memref<6x6xf32, #tpu.memory_space<vmem>>, vector<6x6xf32>
      %123 = arith.addf %121, %122 : vector<6x6xf32>
      %cst_87 = arith.constant dense<0xFF800000> : vector<6xf32>
      %124 = vector.multi_reduction <maximumf>, %123, %cst_87 [1] : vector<6x6xf32> to vector<6xf32>
      %125 = vector.shape_cast %124 : vector<6xf32> to vector<6x1xf32>
      %126 = vector.broadcast %125 : vector<6x1xf32> to vector<6x6xf32>
      %127 = arith.subf %123, %126 : vector<6x6xf32>
      %128 = math.exp %127 : vector<6x6xf32>
      %cst_88 = arith.constant dense<0.000000e+00> : vector<6xf32>
      %129 = vector.multi_reduction <add>, %128, %cst_88 [1] : vector<6x6xf32> to vector<6xf32>
      %130 = vector.shape_cast %129 : vector<6xf32> to vector<6x1xf32>
      %131 = vector.broadcast %130 : vector<6x1xf32> to vector<6x6xf32>
      %132 = arith.divf %128, %131 : vector<6x6xf32>
      %cst_89 = arith.constant dense<0.000000e+00> : vector<6x32xf32>
      %133 = tpu.matmul %132, %118, %cst_89 {dimension_numbers = #tpu.dot_dimension_numbers<[1], [0], [0], [1], [0, 0, 1, 1], [], []>} : vector<6x6xf32>, vector<6x32xf32>, vector<6x32xf32> -> vector<6x32xf32>
      %c0_90 = arith.constant 0 : index
      %c0_91 = arith.constant 0 : index
      %134 = vector.load %arg23[%c0_90, %c0_91] : memref<6x32xf32, #tpu.memory_space<vmem>>, vector<6x32xf32>
      tpu.vector_store %arg23[%c0_90, %c0_91], %133 {strides = array<i32>} : memref<6x32xf32, #tpu.memory_space<vmem>>, vector<6x32xf32>,
    } else {
    }
    %c0_2 = arith.constant 0 : index
    %c0_3 = arith.constant 0 : index
    %4 = vector.load %arg5[%c0_2, %c0_3] : memref<128x32xbf16, #tpu.memory_space<vmem>>, vector<128x32xbf16>
    %cst = arith.constant 0.000000e+00 : bf16
    %5 = vector.broadcast %cst : bf16 to vector<128x32xbf16>
    %6 = arith.maximumf %4, %5 : vector<128x32xbf16>
    %c0_4 = arith.constant 0 : index
    %c0_5 = arith.constant 0 : index
    %7 = vector.load %arg8[%c0_4, %c0_5] : memref<32x64xbf16, #tpu.memory_space<vmem>>, vector<32x64xbf16>
    %cst_6 = arith.constant dense<0.000000e+00> : vector<128x64xf32>
    %8 = tpu.matmul %6, %7, %cst_6 {dimension_numbers = #tpu.dot_dimension_numbers<[1], [0], [0], [1], [0, 0, 1, 1], [], []>} : vector<128x32xbf16>, vector<32x64xbf16>, vector<128x64xf32> -> vector<128x64xf32>
    %c0_7 = arith.constant 0 : index
    %c0_8 = arith.constant 0 : index
    %9 = vector.load %arg9[%c0_7, %c0_8] : memref<1x64xf32, #tpu.memory_space<vmem>>, vector<1x64xf32>
    %10 = vector.broadcast %9 : vector<1x64xf32> to vector<128x64xf32>
    %11 = arith.addf %8, %10 : vector<128x64xf32>
    %12 = vector.extract_strided_slice %11 {offsets = [0, 0], sizes = [128, 32], strides = [1, 1]} : vector<128x64xf32> to vector<128x32xf32>
    %13 = vector.extract_strided_slice %11 {offsets = [0, 32], sizes = [128, 32], strides = [1, 1]} : vector<128x64xf32> to vector<128x32xf32>
    %c0_9 = arith.constant 0 : index
    %c0_10 = arith.constant 0 : index
    %c0_11 = arith.constant 0 : index
    %14 = vector.load %arg2[%c0_9, %c0_10, %c0_11] : memref<1x6x2xf32, #tpu.memory_space<vmem>>, vector<1x6x2xf32>
    %15 = vector.shape_cast %14 : vector<1x6x2xf32> to vector<6x2xf32>
    %c0_12 = arith.constant 0 : index
    %c0_13 = arith.constant 0 : index
    %c0_14 = arith.constant 0 : index
    %16 = vector.load %arg3[%c0_12, %c0_13, %c0_14] : memref<1x2x6xf32, #tpu.memory_space<vmem>>, vector<1x2x6xf32>
    %17 = vector.shape_cast %16 : vector<1x2x6xf32> to vector<2x6xf32>
    %c0_15 = arith.constant 0 : index
    %c0_16 = arith.constant 0 : index
    %18 = vector.load %arg4[%c0_15, %c0_16] : memref<128x2xf32, #tpu.memory_space<vmem>>, vector<128x2xf32>
    %cst_17 = arith.constant dense<0.000000e+00> : vector<6x128xf32>
    %19 = tpu.matmul %15, %18, %cst_17 {dimension_numbers = #tpu.dot_dimension_numbers<[1], [1], [0], [0], [0, 0, 1, 0], [], []>} : vector<6x2xf32>, vector<128x2xf32>, vector<6x128xf32> -> vector<6x128xf32>
    %cst_18 = arith.constant dense<0.000000e+00> : vector<128x6xf32>
    %20 = tpu.matmul %18, %17, %cst_18 {dimension_numbers = #tpu.dot_dimension_numbers<[1], [0], [0], [1], [0, 0, 1, 1], [], []>} : vector<128x2xf32>, vector<2x6xf32>, vector<128x6xf32> -> vector<128x6xf32>
    %c0_19 = arith.constant 0 : index
    %c0_20 = arith.constant 0 : index
    %21 = vector.load %arg18[%c0_19, %c0_20] : memref<6x32xf32, #tpu.memory_space<vmem>>, vector<6x32xf32>
    %cst_21 = arith.constant dense<0.000000e+00> : vector<6x128xf32>
    %22 = tpu.matmul %21, %12, %cst_21 {dimension_numbers = #tpu.dot_dimension_numbers<[1], [1], [0], [0], [0, 0, 1, 0], [], []>} : vector<6x32xf32>, vector<128x32xf32>, vector<6x128xf32> -> vector<6x128xf32>
    %cst_22 = arith.constant 0.176776692 : f32
    %23 = vector.broadcast %cst_22 : f32 to vector<6x128xf32>
    %24 = arith.mulf %22, %23 : vector<6x128xf32>
    %cst_23 = arith.constant 0.000000e+00 : f32
    %25 = vector.broadcast %cst_23 : f32 to vector<6x128xf32>
    %26 = arith.cmpf ogt, %19, %25 : vector<6x128xf32>
    %cst_24 = arith.constant -1.000000e+30 : f32
    %27 = vector.broadcast %cst_24 : f32 to vector<6x128xf32>
    %28 = arith.select %26, %24, %27 : vector<6x128xi1>, vector<6x128xf32>
    %c0_25 = arith.constant 0 : index
    %c0_26 = arith.constant 0 : index
    %29 = vector.load %arg20[%c0_25, %c0_26] : memref<6x1xf32, #tpu.memory_space<vmem>>, vector<6x1xf32>
    %cst_27 = arith.constant dense<0xFF800000> : vector<6xf32>
    %30 = vector.multi_reduction <maximumf>, %28, %cst_27 [1] : vector<6x128xf32> to vector<6xf32>
    %31 = vector.shape_cast %30 : vector<6xf32> to vector<6x1xf32>
    %32 = arith.maximumf %29, %31 : vector<6x1xf32>
    %c0_28 = arith.constant 0 : index
    %c0_29 = arith.constant 0 : index
    %33 = vector.load %arg20[%c0_28, %c0_29] : memref<6x1xf32, #tpu.memory_space<vmem>>, vector<6x1xf32>
    %34 = arith.subf %33, %32 : vector<6x1xf32>
    %35 = math.exp %34 : vector<6x1xf32>
    %36 = vector.broadcast %32 : vector<6x1xf32> to vector<6x128xf32>
    %37 = arith.subf %28, %36 : vector<6x128xf32>
    %38 = math.exp %37 : vector<6x128xf32>
    %39 = arith.extui %26 : vector<6x128xi1> to vector<6x128xi32>
    %40 = arith.sitofp %39 : vector<6x128xi32> to vector<6x128xf32>
    %41 = arith.mulf %38, %40 : vector<6x128xf32>
    %c0_30 = arith.constant 0 : index
    %c0_31 = arith.constant 0 : index
    %42 = vector.load %arg21[%c0_30, %c0_31] : memref<6x1xf32, #tpu.memory_space<vmem>>, vector<6x1xf32>
    %43 = arith.mulf %35, %42 : vector<6x1xf32>
    %cst_32 = arith.constant dense<0.000000e+00> : vector<6xf32>
    %44 = vector.multi_reduction <add>, %41, %cst_32 [1] : vector<6x128xf32> to vector<6xf32>
    %45 = vector.shape_cast %44 : vector<6xf32> to vector<6x1xf32>
    %46 = arith.addf %43, %45 : vector<6x1xf32>
    %c0_33 = arith.constant 0 : index
    %c0_34 = arith.constant 0 : index
    %47 = vector.load %arg21[%c0_33, %c0_34] : memref<6x1xf32, #tpu.memory_space<vmem>>, vector<6x1xf32>
    tpu.vector_store %arg21[%c0_33, %c0_34], %46 {strides = array<i32>} : memref<6x1xf32, #tpu.memory_space<vmem>>, vector<6x1xf32>,
    %c0_35 = arith.constant 0 : index
    %c0_36 = arith.constant 0 : index
    %48 = vector.load %arg22[%c0_35, %c0_36] : memref<6x32xf32, #tpu.memory_space<vmem>>, vector<6x32xf32>
    %49 = vector.broadcast %35 : vector<6x1xf32> to vector<6x32xf32>
    %50 = arith.mulf %49, %48 : vector<6x32xf32>
    %51 = arith.truncf %41 : vector<6x128xf32> to vector<6x128xbf16>
    %cst_37 = arith.constant dense<0.000000e+00> : vector<6x32xf32>
    %52 = tpu.matmul %51, %4, %cst_37 {dimension_numbers = #tpu.dot_dimension_numbers<[1], [0], [0], [1], [0, 0, 1, 1], [], []>} : vector<6x128xbf16>, vector<128x32xbf16>, vector<6x32xf32> -> vector<6x32xf32>
    %53 = arith.addf %50, %52 : vector<6x32xf32>
    %c0_38 = arith.constant 0 : index
    %c0_39 = arith.constant 0 : index
    %54 = vector.load %arg22[%c0_38, %c0_39] : memref<6x32xf32, #tpu.memory_space<vmem>>, vector<6x32xf32>
    tpu.vector_store %arg22[%c0_38, %c0_39], %53 {strides = array<i32>} : memref<6x32xf32, #tpu.memory_space<vmem>>, vector<6x32xf32>,
    %c0_40 = arith.constant 0 : index
    %c0_41 = arith.constant 0 : index
    %55 = vector.load %arg20[%c0_40, %c0_41] : memref<6x1xf32, #tpu.memory_space<vmem>>, vector<6x1xf32>
    tpu.vector_store %arg20[%c0_40, %c0_41], %32 {strides = array<i32>} : memref<6x1xf32, #tpu.memory_space<vmem>>, vector<6x1xf32>,
    %56 = arith.truncf %13 : vector<128x32xf32> to vector<128x32xbf16>
    %c0_42 = arith.constant 0 : index
    %c0_43 = arith.constant 0 : index
    %57 = vector.load %arg19[%c0_42, %c0_43] : memref<6x32xbf16, #tpu.memory_space<vmem>>, vector<6x32xbf16>
    %cst_44 = arith.constant dense<0.000000e+00> : vector<128x6xf32>
    %58 = tpu.matmul %56, %57, %cst_44 {dimension_numbers = #tpu.dot_dimension_numbers<[1], [1], [0], [0], [0, 0, 1, 0], [], []>} : vector<128x32xbf16>, vector<6x32xbf16>, vector<128x6xf32> -> vector<128x6xf32>
    %cst_45 = arith.constant 0.176776692 : f32
    %59 = vector.broadcast %cst_45 : f32 to vector<128x6xf32>
    %60 = arith.mulf %58, %59 : vector<128x6xf32>
    %cst_46 = arith.constant 0.000000e+00 : f32
    %61 = vector.broadcast %cst_46 : f32 to vector<128x6xf32>
    %62 = arith.cmpf ogt, %20, %61 : vector<128x6xf32>
    %cst_47 = arith.constant -1.000000e+30 : f32
    %63 = vector.broadcast %cst_47 : f32 to vector<128x6xf32>
    %64 = arith.select %62, %60, %63 : vector<128x6xi1>, vector<128x6xf32>
    %cst_48 = arith.constant dense<0xFF800000> : vector<128xf32>
    %65 = vector.multi_reduction <maximumf>, %64, %cst_48 [1] : vector<128x6xf32> to vector<128xf32>
    %66 = vector.shape_cast %65 : vector<128xf32> to vector<128x1xf32>
    %67 = vector.broadcast %66 : vector<128x1xf32> to vector<128x6xf32>
    %68 = arith.subf %64, %67 : vector<128x6xf32>
    %69 = math.exp %68 : vector<128x6xf32>
    %cst_49 = arith.constant dense<0.000000e+00> : vector<128xf32>
    %70 = vector.multi_reduction <add>, %69, %cst_49 [1] : vector<128x6xf32> to vector<128xf32>
    %71 = vector.shape_cast %70 : vector<128xf32> to vector<128x1xf32>
    %cst_50 = arith.constant 9.99999996E-13 : f32
    %72 = vector.broadcast %cst_50 : f32 to vector<128x1xf32>
    %73 = arith.addf %71, %72 : vector<128x1xf32>
    %74 = tpu.reciprocal %73 {approx = true} : vector<128x1xf32> -> vector<128x1xf32>
    %75 = vector.broadcast %74 : vector<128x1xf32> to vector<128x6xf32>
    %76 = arith.mulf %69, %75 : vector<128x6xf32>
    %77 = arith.truncf %76 : vector<128x6xf32> to vector<128x6xbf16>
    %78 = arith.truncf %0 : vector<6x32xf32> to vector<6x32xbf16>
    %cst_51 = arith.constant dense<0.000000e+00> : vector<128x32xf32>
    %79 = tpu.matmul %77, %78, %cst_51 {dimension_numbers = #tpu.dot_dimension_numbers<[1], [0], [0], [1], [0, 0, 1, 1], [], []>} : vector<128x6xbf16>, vector<6x32xbf16>, vector<128x32xf32> -> vector<128x32xf32>
    %cst_52 = arith.constant 0.000000e+00 : f32
    %80 = vector.broadcast %cst_52 : f32 to vector<128x32xf32>
    %81 = arith.maximumf %79, %80 : vector<128x32xf32>
    %82 = arith.truncf %81 : vector<128x32xf32> to vector<128x32xbf16>
    %c0_53 = arith.constant 0 : index
    %c0_54 = arith.constant 0 : index
    %83 = vector.load %arg12[%c0_53, %c0_54] : memref<32x32xbf16, #tpu.memory_space<vmem>>, vector<32x32xbf16>
    %cst_55 = arith.constant dense<0.000000e+00> : vector<128x32xf32>
    %84 = tpu.matmul %82, %83, %cst_55 {dimension_numbers = #tpu.dot_dimension_numbers<[1], [0], [0], [1], [0, 0, 1, 1], [], []>} : vector<128x32xbf16>, vector<32x32xbf16>, vector<128x32xf32> -> vector<128x32xf32>
    %c0_56 = arith.constant 0 : index
    %c0_57 = arith.constant 0 : index
    %85 = vector.load %arg13[%c0_56, %c0_57] : memref<1x32xf32, #tpu.memory_space<vmem>>, vector<1x32xf32>
    %86 = vector.broadcast %85 : vector<1x32xf32> to vector<128x32xf32>
    %87 = arith.addf %84, %86 : vector<128x32xf32>
    %88 = arith.extf %4 : vector<128x32xbf16> to vector<128x32xf32>
    %89 = arith.addf %88, %87 : vector<128x32xf32>
    %c0_58 = arith.constant 0 : index
    %c0_59 = arith.constant 0 : index
    %90 = vector.load %arg17[%c0_58, %c0_59] : memref<128x32xf32, #tpu.memory_space<vmem>>, vector<128x32xf32>
    tpu.vector_store %arg17[%c0_58, %c0_59], %89 {strides = array<i32>} : memref<128x32xf32, #tpu.memory_space<vmem>>, vector<128x32xf32>,
    %c1_i32 = arith.constant 1 : i32
    %91 = arith.cmpi eq, %arg0, %c1_i32 : i32
    %92 = arith.extui %91 : i1 to i32
    %c0_i32_60 = arith.constant 0 : i32
    %93 = arith.cmpi ne, %92, %c0_i32_60 : i32
    scf.if %93 {
      %c0_61 = arith.constant 0 : index
      %c0_62 = arith.constant 0 : index
      %94 = vector.load %arg22[%c0_61, %c0_62] : memref<6x32xf32, #tpu.memory_space<vmem>>, vector<6x32xf32>
      %c0_63 = arith.constant 0 : index
      %c0_64 = arith.constant 0 : index
      %95 = vector.load %arg21[%c0_63, %c0_64] : memref<6x1xf32, #tpu.memory_space<vmem>>, vector<6x1xf32>
      %cst_65 = arith.constant 9.99999996E-13 : f32
      %96 = vector.broadcast %cst_65 : f32 to vector<6x1xf32>
      %97 = arith.addf %95, %96 : vector<6x1xf32>
      %98 = tpu.reciprocal %97 {approx = true} : vector<6x1xf32> -> vector<6x1xf32>
      %99 = vector.broadcast %98 : vector<6x1xf32> to vector<6x32xf32>
      %100 = arith.mulf %94, %99 : vector<6x32xf32>
      %cst_66 = arith.constant 0.000000e+00 : f32
      %101 = vector.broadcast %cst_66 : f32 to vector<6x32xf32>
      %102 = arith.maximumf %100, %101 : vector<6x32xf32>
      %103 = arith.truncf %102 : vector<6x32xf32> to vector<6x32xbf16>
      %c0_67 = arith.constant 0 : index
      %c0_68 = arith.constant 0 : index
      %104 = vector.load %arg10[%c0_67, %c0_68] : memref<32x32xbf16, #tpu.memory_space<vmem>>, vector<32x32xbf16>
      %cst_69 = arith.constant dense<0.000000e+00> : vector<6x32xf32>
      %105 = tpu.matmul %103, %104, %cst_69 {dimension_numbers = #tpu.dot_dimension_numbers<[1], [0], [0], [1], [0, 0, 1, 1], [], []>} : vector<6x32xbf16>, vector<32x32xbf16>, vector<6x32xf32> -> vector<6x32xf32>
      %c0_70 = arith.constant 0 : index
      %c0_71 = arith.constant 0 : index
      %106 = vector.load %arg11[%c0_70, %c0_71] : memref<1x32xf32, #tpu.memory_space<vmem>>, vector<1x32xf32>
      %107 = vector.broadcast %106 : vector<1x32xf32> to vector<6x32xf32>
      %108 = arith.addf %105, %107 : vector<6x32xf32>
      %109 = arith.addf %0, %108 : vector<6x32xf32>
      %c0_72 = arith.constant 0 : index
      %c0_73 = arith.constant 0 : index
      %110 = vector.load %arg23[%c0_72, %c0_73] : memref<6x32xf32, #tpu.memory_space<vmem>>, vector<6x32xf32>
      %111 = arith.addf %109, %110 : vector<6x32xf32>
      %c0_74 = arith.constant 0 : index
      %c0_75 = arith.constant 0 : index
      %112 = vector.load %arg16[%c0_74, %c0_75] : memref<6x32xf32, #tpu.memory_space<vmem>>, vector<6x32xf32>
      tpu.vector_store %arg16[%c0_74, %c0_75], %111 {strides = array<i32>} : memref<6x32xf32, #tpu.memory_space<vmem>>, vector<6x32xf32>,
    } else {
    }
    return
  }
  func.func @transform_0(%arg0: i32) -> (i32, i32) {
    %c0_i32 = arith.constant 0 : i32
    %c0_i32_0 = arith.constant 0 : i32
    %c0_i32_1 = arith.constant 0 : i32
    return %c0_i32, %c0_i32_0 : i32, i32
  }
  func.func @transform_1(%arg0: i32) -> (i32, i32, i32) {
    %c0_i32 = arith.constant 0 : i32
    %c0_i32_0 = arith.constant 0 : i32
    %c0_i32_1 = arith.constant 0 : i32
    return %arg0, %c0_i32, %c0_i32_0 : i32, i32, i32
  }
  func.func @transform_2(%arg0: i32) -> (i32, i32, i32) {
    %c0_i32 = arith.constant 0 : i32
    %c0_i32_0 = arith.constant 0 : i32
    %c0_i32_1 = arith.constant 0 : i32
    return %arg0, %c0_i32, %c0_i32_0 : i32, i32, i32
  }
  func.func @transform_3(%arg0: i32) -> (i32, i32) {
    %c0_i32 = arith.constant 0 : i32
    %c0_i32_0 = arith.constant 0 : i32
    %c0_i32_1 = arith.constant 0 : i32
    return %c0_i32, %c0_i32_0 : i32, i32
  }
  func.func @transform_4(%arg0: i32) -> (i32, i32) {
    %c0_i32 = arith.constant 0 : i32
    %c0_i32_0 = arith.constant 0 : i32
    return %arg0, %c0_i32 : i32, i32
  }
  func.func @transform_5(%arg0: i32) -> (i32, i32) {
    %c0_i32 = arith.constant 0 : i32
    %c0_i32_0 = arith.constant 0 : i32
    %c0_i32_1 = arith.constant 0 : i32
    return %c0_i32, %c0_i32_0 : i32, i32
  }
  func.func @transform_6(%arg0: i32) -> (i32, i32) {
    %c0_i32 = arith.constant 0 : i32
    %c0_i32_0 = arith.constant 0 : i32
    %c0_i32_1 = arith.constant 0 : i32
    return %c0_i32, %c0_i32_0 : i32, i32
  }
  func.func @transform_7(%arg0: i32) -> (i32, i32) {
    %c0_i32 = arith.constant 0 : i32
    %c0_i32_0 = arith.constant 0 : i32
    %c0_i32_1 = arith.constant 0 : i32
    return %c0_i32, %c0_i32_0 : i32, i32
  }
  func.func @transform_8(%arg0: i32) -> (i32, i32) {
    %c0_i32 = arith.constant 0 : i32
    %c0_i32_0 = arith.constant 0 : i32
    %c0_i32_1 = arith.constant 0 : i32
    return %c0_i32, %c0_i32_0 : i32, i32
  }
  func.func @transform_9(%arg0: i32) -> (i32, i32) {
    %c0_i32 = arith.constant 0 : i32
    %c0_i32_0 = arith.constant 0 : i32
    %c0_i32_1 = arith.constant 0 : i32
    return %c0_i32, %c0_i32_0 : i32, i32
  }
  func.func @transform_10(%arg0: i32) -> (i32, i32) {
    %c0_i32 = arith.constant 0 : i32
    %c0_i32_0 = arith.constant 0 : i32
    %c0_i32_1 = arith.constant 0 : i32
    return %c0_i32, %c0_i32_0 : i32, i32
  }
  func.func @transform_11(%arg0: i32) -> (i32, i32) {
    %c0_i32 = arith.constant 0 : i32
    %c0_i32_0 = arith.constant 0 : i32
    %c0_i32_1 = arith.constant 0 : i32
    return %c0_i32, %c0_i32_0 : i32, i32
  }
  func.func @transform_12(%arg0: i32) -> (i32, i32) {
    %c0_i32 = arith.constant 0 : i32
    %c0_i32_0 = arith.constant 0 : i32
    %c0_i32_1 = arith.constant 0 : i32
    return %c0_i32, %c0_i32_0 : i32, i32
  }
  func.func @transform_13(%arg0: i32) -> (i32, i32) {
    %c0_i32 = arith.constant 0 : i32
    %c0_i32_0 = arith.constant 0 : i32
    %c0_i32_1 = arith.constant 0 : i32
    return %c0_i32, %c0_i32_0 : i32, i32
  }
  func.func @transform_14(%arg0: i32) -> (i32, i32) {
    %c0_i32 = arith.constant 0 : i32
    %c0_i32_0 = arith.constant 0 : i32
    %c0_i32_1 = arith.constant 0 : i32
    return %c0_i32, %c0_i32_0 : i32, i32
  }
  func.func @transform_15(%arg0: i32) -> (i32, i32) {
    %c0_i32 = arith.constant 0 : i32
    %c0_i32_0 = arith.constant 0 : i32
    %c0_i32_1 = arith.constant 0 : i32
    return %c0_i32, %c0_i32_0 : i32, i32
  }
  func.func @transform_16(%arg0: i32) -> (i32, i32) {
    %c0_i32 = arith.constant 0 : i32
    %c0_i32_0 = arith.constant 0 : i32
    return %arg0, %c0_i32 : i32, i32
  }
}

</mosaic_0001>

<llo_original>
// kernel: _lambda_.1
$region0: #{_lambda_.1}
  #allocation0 [shape = 'u32[]', space=smem, size = 0x4, offset = 0x4, fixed_abs, tag = 'smem constant byte address 0x4 - core index']
  #allocation1 [shape = 'u32[144,128]{1,0:T(1,128)}', space=vmem, size = 0x12000, scoped, tag = 'internal scratch']
  #allocation2 [shape = 'f32[6,32]{1,0:T(8,128)}', space=vmem, size = 0x1000, scoped, tag = 'scratch operand']
  #allocation3 [shape = 'bf16[6,32]{1,0:T(8,128)(2,1)}', space=vmem, size = 0x800, scoped, tag = 'scratch operand']
  #allocation4 [shape = 'f32[6,1]{1,0:T(8,128)}', space=vmem, size = 0x1000, scoped, tag = 'scratch operand']
  #allocation5 [shape = 'f32[6,1]{1,0:T(8,128)}', space=vmem, size = 0x1000, scoped, tag = 'scratch operand']
  #allocation6 [shape = 'f32[6,32]{1,0:T(8,128)}', space=vmem, size = 0x1000, scoped, tag = 'scratch operand']
  #allocation7 [shape = 'f32[6,32]{1,0:T(8,128)}', space=vmem, size = 0x1000, scoped, tag = 'scratch operand']
  %s0 = inlined_call_operand.vmem [shape: f32[6,32], index: 0, kind: input, shape index: {}]
  %s1 = inlined_call_operand.vmem [shape: f32[2,6,2], index: 1, kind: input, shape index: {}]
  %s2 = inlined_call_operand.vmem [shape: f32[2,2,6], index: 2, kind: input, shape index: {}]
  %s3 = inlined_call_operand.vmem [shape: f32[128,2], index: 3, kind: input, shape index: {}]
  %s4 = inlined_call_operand.vmem [shape: bf16[256,32], index: 4, kind: input, shape index: {}]
  %s5 = inlined_call_operand.vmem [shape: bf16[32,64], index: 5, kind: input, shape index: {}]
  %s6 = inlined_call_operand.vmem [shape: f32[1,64], index: 6, kind: input, shape index: {}]
  %s7 = inlined_call_operand.vmem [shape: bf16[32,64], index: 7, kind: input, shape index: {}]
  %s8 = inlined_call_operand.vmem [shape: f32[1,64], index: 8, kind: input, shape index: {}]
  %s9 = inlined_call_operand.vmem [shape: bf16[32,32], index: 9, kind: input, shape index: {}]
  %s10 = inlined_call_operand.vmem [shape: f32[1,32], index: 10, kind: input, shape index: {}]
  %s11 = inlined_call_operand.vmem [shape: bf16[32,32], index: 11, kind: input, shape index: {}]
  %s12 = inlined_call_operand.vmem [shape: f32[1,32], index: 12, kind: input, shape index: {}]
  %s13 = inlined_call_operand.vmem [shape: bf16[32,64], index: 13, kind: input, shape index: {}]
  %s14 = inlined_call_operand.vmem [shape: f32[6,6], index: 14, kind: input, shape index: {}]
  %s15 = inlined_call_operand.hbm [shape: f32[6,32], index: 15, kind: output, shape index: {0}]
  %s16 = inlined_call_operand.hbm [shape: f32[256,32], index: 16, kind: output, shape index: {1}]
  %17 = xla_tuple %s15, %s16
  %s18 = sld [smem:[#allocation0]]
  $region109: #{_lambda_.1} parent=0
    _
  %s20 = ssub.s32 1, %s18
  %s21 = scalar_select 0, %s20, %s18
  $region1: #{_lambda_.1} parent=0
    #allocation8 [shape = 'u8[4096]{0}', space=vmem, size = 0x1000, scoped, tag = 'output window, operand 0, single buffered']
    #allocation9 [shape = 's32[2]{0}', space=sflag, size = 0x8, scoped, tag = 'scoped memory for _lambda_.1']
    #allocation10 [shape = 'u8[131072]{0}', space=vmem, size = 0x20000, scoped, tag = 'output window, operand 1']
    #allocation11 [shape = 's32[2]{0}', space=sflag, size = 0x8, scoped, tag = 'scoped memory for _lambda_.1']
    %22 = vsyncpa [#allocation9], 0
    %23 = vsyncpa [#allocation11], 0
    %s24 = scalar_lea.sflag [#allocation11], 1
    %25 = vsyncpa %s24, 0
    loop: start=0, step=1, limit=4
    $region2: #{_lambda_.1} parent=1 // loop_pre_header
      _
    $region3: #{_lambda_.1} parent=1 // loop_header
      %s27 = sphi 0, %s31
      %p28 = scmp.ge.s32.totalorder %s27, 4
      %s35 = sphi 0, %s35
      %s37 = sphi 0, %s35
      %s38 = sphi 0, %s37
      %s52 = sphi 0, %s38
      %s58 = sphi 0, %s60
      %s61 = sphi 0, %s58
      %s62 = sphi 0, %s61
      %s78 = sphi 0, %s62
      %s84 = sphi 0, %s86
      %s87 = sphi 0, %s84
      %s88 = sphi 0, %s87
      %s104 = sphi 0, %s88
      %s108 = sphi 0, %s108
      %s110 = sphi 0, %s108
      %s111 = sphi 0, %s110
      %s125 = sphi 0, %s111
      %s131 = sphi 0, %s133
      %s134 = sphi 0, %s131
      %s135 = sphi 0, %s134
      %s151 = sphi 0, %s135
      %s155 = sphi 0, %s155
      %s157 = sphi 0, %s155
      %s158 = sphi 0, %s157
      %s172 = sphi 0, %s158
      %s176 = sphi 0, %s176
      %s178 = sphi 0, %s176
      %s179 = sphi 0, %s178
      %s193 = sphi 0, %s179
      %s197 = sphi 0, %s197
      %s199 = sphi 0, %s197
      %s200 = sphi 0, %s199
      %s214 = sphi 0, %s200
      %s218 = sphi 0, %s218
      %s220 = sphi 0, %s218
      %s221 = sphi 0, %s220
      %s235 = sphi 0, %s221
      %s239 = sphi 0, %s239
      %s241 = sphi 0, %s239
      %s242 = sphi 0, %s241
      %s256 = sphi 0, %s242
      %s260 = sphi 0, %s260
      %s262 = sphi 0, %s260
      %s263 = sphi 0, %s262
      %s277 = sphi 0, %s263
      %s281 = sphi 0, %s281
      %s283 = sphi 0, %s281
      %s284 = sphi 0, %s283
      %s298 = sphi 0, %s284
      %s302 = sphi 0, %s302
      %s304 = sphi 0, %s302
      %s305 = sphi 0, %s304
      %s319 = sphi 0, %s305
      %s323 = sphi 0, %s323
      %s325 = sphi 0, %s323
      %s326 = sphi 0, %s325
      %s340 = sphi 0, %s326
      %s344 = sphi 0, %s344
      %s346 = sphi 0, %s344
      %s347 = sphi 0, %s346
      %s361 = sphi 0, %s347
      %s365 = sphi 0, %s365
      %s367 = sphi 0, %s365
      %s368 = sphi 0, %s367
      %s382 = sphi 0, %s368
      %s388 = sphi 0, %s390
      %s391 = sphi 0, %s388
      %s392 = sphi 0, %s391
      %s408 = sphi 0, %s392
    $region4: #{_lambda_.1} parent=1 // loop_header_branch
      %30 = sbr.rel (%p28) target = $region8
    $region5: #{_lambda_.1} parent=1 // loop_body
      %s32 = ssub.s32 %s27, 1
      %s33 = ssub.s32 %s27, 2
      %s34 = sadd.s32 %s27, 1
      %s36 = sadd.s32 %s35, 1
      %p39 = scmp.eq.s32.totalorder %s27, 1
      %p40 = scmp.ne.s32.totalorder %s35, %s37
      %p41 = scmp.eq.s32.totalorder %s27, 0
      %p42 = por %p40, %p41
      %p43 = scmp.ne.s32.totalorder %s35, %s37
      %p44 = scmp.eq.s32.totalorder %s32, 1
      %p45 = por %p43, %p44
      %p46 = scmp.ne.s32.totalorder %s37, %s38
      %p47 = scmp.eq.s32.totalorder %s32, 0
      %p48 = por %p46, %p47
      %p49 = scmp.ne.s32.totalorder %s37, %s38
      %p50 = scmp.eq.s32.totalorder %s33, 1
      %p51 = por %p49, %p50
      %p53 = scmp.ne.s32.totalorder %s38, %s52
      %p54 = scmp.eq.s32.totalorder %s33, 0
      %p55 = por %p53, %p54
      %s56 = ssub.s32 %s27, %s34
      %p57 = scmp.eq.s32.totalorder %s56, 0
      %s59 = sadd.s32 %s58, 1
      %s60 = scalar_select %p57, %s58, %s59
      %p63 = pneg %p57
      %p64 = scmp.eq.s32.totalorder %s27, 1
      %p65 = por %p63, %p64
      %p66 = scmp.ne.s32.totalorder %s58, %s61
      %p67 = scmp.eq.s32.totalorder %s27, 0
      %p68 = por %p66, %p67
      %p69 = scmp.ne.s32.totalorder %s58, %s61
      %p70 = scmp.eq.s32.totalorder %s32, 1
      %p71 = por %p69, %p70
      %p72 = scmp.ne.s32.totalorder %s61, %s62
      %p73 = scmp.eq.s32.totalorder %s32, 0
      %p74 = por %p72, %p73
      %p75 = scmp.ne.s32.totalorder %s61, %s62
      %p76 = scmp.eq.s32.totalorder %s33, 1
      %p77 = por %p75, %p76
      %p79 = scmp.ne.s32.totalorder %s62, %s78
      %p80 = scmp.eq.s32.totalorder %s33, 0
      %p81 = por %p79, %p80
      %s82 = ssub.s32 %s27, %s34
      %p83 = scmp.eq.s32.totalorder %s82, 0
      %s85 = sadd.s32 %s84, 1
      %s86 = scalar_select %p83, %s84, %s85
      %p89 = pneg %p83
      %p90 = scmp.eq.s32.totalorder %s27, 1
      %p91 = por %p89, %p90
      %p92 = scmp.ne.s32.totalorder %s84, %s87
      %p93 = scmp.eq.s32.totalorder %s27, 0
      %p94 = por %p92, %p93
      %p95 = scmp.ne.s32.totalorder %s84, %s87
      %p96 = scmp.eq.s32.totalorder %s32, 1
      %p97 = por %p95, %p96
      %p98 = scmp.ne.s32.totalorder %s87, %s88
      %p99 = scmp.eq.s32.totalorder %s32, 0
      %p100 = por %p98, %p99
      %p101 = scmp.ne.s32.totalorder %s87, %s88
      %p102 = scmp.eq.s32.totalorder %s33, 1
      %p103 = por %p101, %p102
      %p105 = scmp.ne.s32.totalorder %s88, %s104
      %p106 = scmp.eq.s32.totalorder %s33, 0
      %p107 = por %p105, %p106
      %s109 = sadd.s32 %s108, 1
      %p112 = scmp.eq.s32.totalorder %s27, 1
      %p113 = scmp.ne.s32.totalorder %s108, %s110
      %p114 = scmp.eq.s32.totalorder %s27, 0
      %p115 = por %p113, %p114
      %p116 = scmp.ne.s32.totalorder %s108, %s110
      %p117 = scmp.eq.s32.totalorder %s32, 1
      %p118 = por %p116, %p117
      %p119 = scmp.ne.s32.totalorder %s110, %s111
      %p120 = scmp.eq.s32.totalorder %s32, 0
      %p121 = por %p119, %p120
      %p122 = scmp.ne.s32.totalorder %s110, %s111
      %p123 = scmp.eq.s32.totalorder %s33, 1
      %p124 = por %p122, %p123
      %p126 = scmp.ne.s32.totalorder %s111, %s125
      %p127 = scmp.eq.s32.totalorder %s33, 0
      %p128 = por %p126, %p127
      %s129 = ssub.s32 %s27, %s34
      %p130 = scmp.eq.s32.totalorder %s129, 0
      %s132 = sadd.s32 %s131, 1
      %s133 = scalar_select %p130, %s131, %s132
      %p136 = pneg %p130
      %p137 = scmp.eq.s32.totalorder %s27, 1
      %p138 = por %p136, %p137
      %p139 = scmp.ne.s32.totalorder %s131, %s134
      %p140 = scmp.eq.s32.totalorder %s27, 0
      %p141 = por %p139, %p140
      %p142 = scmp.ne.s32.totalorder %s131, %s134
      %p143 = scmp.eq.s32.totalorder %s32, 1
      %p144 = por %p142, %p143
      %p145 = scmp.ne.s32.totalorder %s134, %s135
      %p146 = scmp.eq.s32.totalorder %s32, 0
      %p147 = por %p145, %p146
      %p148 = scmp.ne.s32.totalorder %s134, %s135
      %p149 = scmp.eq.s32.totalorder %s33, 1
      %p150 = por %p148, %p149
      %p152 = scmp.ne.s32.totalorder %s135, %s151
      %p153 = scmp.eq.s32.totalorder %s33, 0
      %p154 = por %p152, %p153
      %s156 = sadd.s32 %s155, 1
      %p159 = scmp.eq.s32.totalorder %s27, 1
      %p160 = scmp.ne.s32.totalorder %s155, %s157
      %p161 = scmp.eq.s32.totalorder %s27, 0
      %p162 = por %p160, %p161
      %p163 = scmp.ne.s32.totalorder %s155, %s157
      %p164 = scmp.eq.s32.totalorder %s32, 1
      %p165 = por %p163, %p164
      %p166 = scmp.ne.s32.totalorder %s157, %s158
      %p167 = scmp.eq.s32.totalorder %s32, 0
      %p168 = por %p166, %p167
      %p169 = scmp.ne.s32.totalorder %s157, %s158
      %p170 = scmp.eq.s32.totalorder %s33, 1
      %p171 = por %p169, %p170
      %p173 = scmp.ne.s32.totalorder %s158, %s172
      %p174 = scmp.eq.s32.totalorder %s33, 0
      %p175 = por %p173, %p174
      %s177 = sadd.s32 %s176, 1
      %p180 = scmp.eq.s32.totalorder %s27, 1
      %p181 = scmp.ne.s32.totalorder %s176, %s178
      %p182 = scmp.eq.s32.totalorder %s27, 0
      %p183 = por %p181, %p182
      %p184 = scmp.ne.s32.totalorder %s176, %s178
      %p185 = scmp.eq.s32.totalorder %s32, 1
      %p186 = por %p184, %p185
      %p187 = scmp.ne.s32.totalorder %s178, %s179
      %p188 = scmp.eq.s32.totalorder %s32, 0
      %p189 = por %p187, %p188
      %p190 = scmp.ne.s32.totalorder %s178, %s179
      %p191 = scmp.eq.s32.totalorder %s33, 1
      %p192 = por %p190, %p191
      %p194 = scmp.ne.s32.totalorder %s179, %s193
      %p195 = scmp.eq.s32.totalorder %s33, 0
      %p196 = por %p194, %p195
      %s198 = sadd.s32 %s197, 1
      %p201 = scmp.eq.s32.totalorder %s27, 1
      %p202 = scmp.ne.s32.totalorder %s197, %s199
      %p203 = scmp.eq.s32.totalorder %s27, 0
      %p204 = por %p202, %p203
      %p205 = scmp.ne.s32.totalorder %s197, %s199
      %p206 = scmp.eq.s32.totalorder %s32, 1
      %p207 = por %p205, %p206
      %p208 = scmp.ne.s32.totalorder %s199, %s200
      %p209 = scmp.eq.s32.totalorder %s32, 0
      %p210 = por %p208, %p209
      %p211 = scmp.ne.s32.totalorder %s199, %s200
      %p212 = scmp.eq.s32.totalorder %s33, 1
      %p213 = por %p211, %p212
      %p215 = scmp.ne.s32.totalorder %s200, %s214
      %p216 = scmp.eq.s32.totalorder %s33, 0
      %p217 = por %p215, %p216
      %s219 = sadd.s32 %s218, 1
      %p222 = scmp.eq.s32.totalorder %s27, 1
      %p223 = scmp.ne.s32.totalorder %s218, %s220
      %p224 = scmp.eq.s32.totalorder %s27, 0
      %p225 = por %p223, %p224
      %p226 = scmp.ne.s32.totalorder %s218, %s220
      %p227 = scmp.eq.s32.totalorder %s32, 1
      %p228 = por %p226, %p227
      %p229 = scmp.ne.s32.totalorder %s220, %s221
      %p230 = scmp.eq.s32.totalorder %s32, 0
      %p231 = por %p229, %p230
      %p232 = scmp.ne.s32.totalorder %s220, %s221
      %p233 = scmp.eq.s32.totalorder %s33, 1
      %p234 = por %p232, %p233
      %p236 = scmp.ne.s32.totalorder %s221, %s235
      %p237 = scmp.eq.s32.totalorder %s33, 0
      %p238 = por %p236, %p237
      %s240 = sadd.s32 %s239, 1
      %p243 = scmp.eq.s32.totalorder %s27, 1
      %p244 = scmp.ne.s32.totalorder %s239, %s241
      %p245 = scmp.eq.s32.totalorder %s27, 0
      %p246 = por %p244, %p245
      %p247 = scmp.ne.s32.totalorder %s239, %s241
      %p248 = scmp.eq.s32.totalorder %s32, 1
      %p249 = por %p247, %p248
      %p250 = scmp.ne.s32.totalorder %s241, %s242
      %p251 = scmp.eq.s32.totalorder %s32, 0
      %p252 = por %p250, %p251
      %p253 = scmp.ne.s32.totalorder %s241, %s242
      %p254 = scmp.eq.s32.totalorder %s33, 1
      %p255 = por %p253, %p254
      %p257 = scmp.ne.s32.totalorder %s242, %s256
      %p258 = scmp.eq.s32.totalorder %s33, 0
      %p259 = por %p257, %p258
      %s261 = sadd.s32 %s260, 1
      %p264 = scmp.eq.s32.totalorder %s27, 1
      %p265 = scmp.ne.s32.totalorder %s260, %s262
      %p266 = scmp.eq.s32.totalorder %s27, 0
      %p267 = por %p265, %p266
      %p268 = scmp.ne.s32.totalorder %s260, %s262
      %p269 = scmp.eq.s32.totalorder %s32, 1
      %p270 = por %p268, %p269
      %p271 = scmp.ne.s32.totalorder %s262, %s263
      %p272 = scmp.eq.s32.totalorder %s32, 0
      %p273 = por %p271, %p272
      %p274 = scmp.ne.s32.totalorder %s262, %s263
      %p275 = scmp.eq.s32.totalorder %s33, 1
      %p276 = por %p274, %p275
      %p278 = scmp.ne.s32.totalorder %s263, %s277
      %p279 = scmp.eq.s32.totalorder %s33, 0
      %p280 = por %p278, %p279
      %s282 = sadd.s32 %s281, 1
      %p285 = scmp.eq.s32.totalorder %s27, 1
      %p286 = scmp.ne.s32.totalorder %s281, %s283
      %p287 = scmp.eq.s32.totalorder %s27, 0
      %p288 = por %p286, %p287
      %p289 = scmp.ne.s32.totalorder %s281, %s283
      %p290 = scmp.eq.s32.totalorder %s32, 1
      %p291 = por %p289, %p290
      %p292 = scmp.ne.s32.totalorder %s283, %s284
      %p293 = scmp.eq.s32.totalorder %s32, 0
      %p294 = por %p292, %p293
      %p295 = scmp.ne.s32.totalorder %s283, %s284
      %p296 = scmp.eq.s32.totalorder %s33, 1
      %p297 = por %p295, %p296
      %p299 = scmp.ne.s32.totalorder %s284, %s298
      %p300 = scmp.eq.s32.totalorder %s33, 0
      %p301 = por %p299, %p300
      %s303 = sadd.s32 %s302, 1
      %p306 = scmp.eq.s32.totalorder %s27, 1
      %p307 = scmp.ne.s32.totalorder %s302, %s304
      %p308 = scmp.eq.s32.totalorder %s27, 0
      %p309 = por %p307, %p308
      %p310 = scmp.ne.s32.totalorder %s302, %s304
      %p311 = scmp.eq.s32.totalorder %s32, 1
      %p312 = por %p310, %p311
      %p313 = scmp.ne.s32.totalorder %s304, %s305
      %p314 = scmp.eq.s32.totalorder %s32, 0
      %p315 = por %p313, %p314
      %p316 = scmp.ne.s32.totalorder %s304, %s305
      %p317 = scmp.eq.s32.totalorder %s33, 1
      %p318 = por %p316, %p317
      %p320 = scmp.ne.s32.totalorder %s305, %s319
      %p321 = scmp.eq.s32.totalorder %s33, 0
      %p322 = por %p320, %p321
      %s324 = sadd.s32 %s323, 1
      %p327 = scmp.eq.s32.totalorder %s27, 1
      %p328 = scmp.ne.s32.totalorder %s323, %s325
      %p329 = scmp.eq.s32.totalorder %s27, 0
      %p330 = por %p328, %p329
      %p331 = scmp.ne.s32.totalorder %s323, %s325
      %p332 = scmp.eq.s32.totalorder %s32, 1
      %p333 = por %p331, %p332
      %p334 = scmp.ne.s32.totalorder %s325, %s326
      %p335 = scmp.eq.s32.totalorder %s32, 0
      %p336 = por %p334, %p335
      %p337 = scmp.ne.s32.totalorder %s325, %s326
      %p338 = scmp.eq.s32.totalorder %s33, 1
      %p339 = por %p337, %p338
      %p341 = scmp.ne.s32.totalorder %s326, %s340
      %p342 = scmp.eq.s32.totalorder %s33, 0
      %p343 = por %p341, %p342
      %s345 = sadd.s32 %s344, 1
      %p348 = scmp.eq.s32.totalorder %s27, 1
      %p349 = scmp.ne.s32.totalorder %s344, %s346
      %p350 = scmp.eq.s32.totalorder %s27, 0
      %p351 = por %p349, %p350
      %p352 = scmp.ne.s32.totalorder %s344, %s346
      %p353 = scmp.eq.s32.totalorder %s32, 1
      %p354 = por %p352, %p353
      %p355 = scmp.ne.s32.totalorder %s346, %s347
      %p356 = scmp.eq.s32.totalorder %s32, 0
      %p357 = por %p355, %p356
      %p358 = scmp.ne.s32.totalorder %s346, %s347
      %p359 = scmp.eq.s32.totalorder %s33, 1
      %p360 = por %p358, %p359
      %p362 = scmp.ne.s32.totalorder %s347, %s361
      %p363 = scmp.eq.s32.totalorder %s33, 0
      %p364 = por %p362, %p363
      %s366 = sadd.s32 %s365, 1
      %p369 = scmp.eq.s32.totalorder %s27, 1
      %p370 = scmp.ne.s32.totalorder %s365, %s367
      %p371 = scmp.eq.s32.totalorder %s27, 0
      %p372 = por %p370, %p371
      %p373 = scmp.ne.s32.totalorder %s365, %s367
      %p374 = scmp.eq.s32.totalorder %s32, 1
      %p375 = por %p373, %p374
      %p376 = scmp.ne.s32.totalorder %s367, %s368
      %p377 = scmp.eq.s32.totalorder %s32, 0
      %p378 = por %p376, %p377
      %p379 = scmp.ne.s32.totalorder %s367, %s368
      %p380 = scmp.eq.s32.totalorder %s33, 1
      %p381 = por %p379, %p380
      %p383 = scmp.ne.s32.totalorder %s368, %s382
      %p384 = scmp.eq.s32.totalorder %s33, 0
      %p385 = por %p383, %p384
      %s386 = ssub.s32 %s27, %s34
      %p387 = scmp.eq.s32.totalorder %s386, 0
      %s389 = sadd.s32 %s388, 1
      %s390 = scalar_select %p387, %s388, %s389
      %p393 = pneg %p387
      %p394 = scmp.eq.s32.totalorder %s27, 1
      %p395 = por %p393, %p394
      %p396 = scmp.ne.s32.totalorder %s388, %s391
      %p397 = scmp.eq.s32.totalorder %s27, 0
      %p398 = por %p396, %p397
      %p399 = scmp.ne.s32.totalorder %s388, %s391
      %p400 = scmp.eq.s32.totalorder %s32, 1
      %p401 = por %p399, %p400
      %p402 = scmp.ne.s32.totalorder %s391, %s392
      %p403 = scmp.eq.s32.totalorder %s32, 0
      %p404 = por %p402, %p403
      %p405 = scmp.ne.s32.totalorder %s391, %s392
      %p406 = scmp.eq.s32.totalorder %s33, 1
      %p407 = por %p405, %p406
      %p409 = scmp.ne.s32.totalorder %s392, %s408
      %p410 = scmp.eq.s32.totalorder %s33, 0
      %p411 = por %p409, %p410
      %p412 = scmp.le.s32.totalorder 1, %s27
      %p413 = scmp.lt.s32.totalorder %s27, 3
      %p414 = pnand %p412, %p413
      %p415 = pneg %p414
      // Predicated region
      $region9: #{_lambda_.1} parent=5 // pred_check
        _
      $region10: #{_lambda_.1} parent=5 // pred_check_branch
        %417 = sbr.rel (%p414) target = $region12
      $region11: #{_lambda_.1} parent=5 // pred_region
        %s418 = ssub.s32 %s27, 1
        // Predicated region
        $region13: #{_lambda_.1} parent=11 // pred_check
          %p419 = pneg %p48
        $region14: #{_lambda_.1} parent=11 // pred_check_branch
          %421 = sbr.rel (%p419) target = $region16
        $region15: #{_lambda_.1} parent=11 // pred_region
          _
        $region16: #{_lambda_.1} parent=11 // pred_fallthru
          _
        // Predicated region
        $region17: #{_lambda_.1} parent=11 // pred_check
          %p422 = pneg %p121
        $region18: #{_lambda_.1} parent=11 // pred_check_branch
          %424 = sbr.rel (%p422) target = $region20
        $region19: #{_lambda_.1} parent=11 // pred_region
          _
        $region20: #{_lambda_.1} parent=11 // pred_fallthru
          _
        // Predicated region
        $region21: #{_lambda_.1} parent=11 // pred_check
          %p425 = pneg %p168
        $region22: #{_lambda_.1} parent=11 // pred_check_branch
          %427 = sbr.rel (%p425) target = $region24
        $region23: #{_lambda_.1} parent=11 // pred_region
          _
        $region24: #{_lambda_.1} parent=11 // pred_fallthru
          _
        // Predicated region
        $region25: #{_lambda_.1} parent=11 // pred_check
          %p428 = pneg %p189
        $region26: #{_lambda_.1} parent=11 // pred_check_branch
          %430 = sbr.rel (%p428) target = $region28
        $region27: #{_lambda_.1} parent=11 // pred_region
          _
        $region28: #{_lambda_.1} parent=11 // pred_fallthru
          _
        // Predicated region
        $region29: #{_lambda_.1} parent=11 // pred_check
          %p431 = pneg %p210
        $region30: #{_lambda_.1} parent=11 // pred_check_branch
          %433 = sbr.rel (%p431) target = $region32
        $region31: #{_lambda_.1} parent=11 // pred_region
          _
        $region32: #{_lambda_.1} parent=11 // pred_fallthru
          _
        // Predicated region
        $region33: #{_lambda_.1} parent=11 // pred_check
          %p434 = pneg %p231
        $region34: #{_lambda_.1} parent=11 // pred_check_branch
          %436 = sbr.rel (%p434) target = $region36
        $region35: #{_lambda_.1} parent=11 // pred_region
          _
        $region36: #{_lambda_.1} parent=11 // pred_fallthru
          _
        // Predicated region
        $region37: #{_lambda_.1} parent=11 // pred_check
          %p437 = pneg %p252
        $region38: #{_lambda_.1} parent=11 // pred_check_branch
          %439 = sbr.rel (%p437) target = $region40
        $region39: #{_lambda_.1} parent=11 // pred_region
          _
        $region40: #{_lambda_.1} parent=11 // pred_fallthru
          _
        // Predicated region
        $region41: #{_lambda_.1} parent=11 // pred_check
          %p440 = pneg %p273
        $region42: #{_lambda_.1} parent=11 // pred_check_branch
          %442 = sbr.rel (%p440) target = $region44
        $region43: #{_lambda_.1} parent=11 // pred_region
          _
        $region44: #{_lambda_.1} parent=11 // pred_fallthru
          _
        // Predicated region
        $region45: #{_lambda_.1} parent=11 // pred_check
          %p443 = pneg %p294
        $region46: #{_lambda_.1} parent=11 // pred_check_branch
          %445 = sbr.rel (%p443) target = $region48
        $region47: #{_lambda_.1} parent=11 // pred_region
          _
        $region48: #{_lambda_.1} parent=11 // pred_fallthru
          _
        // Predicated region
        $region49: #{_lambda_.1} parent=11 // pred_check
          %p446 = pneg %p315
        $region50: #{_lambda_.1} parent=11 // pred_check_branch
          %448 = sbr.rel (%p446) target = $region52
        $region51: #{_lambda_.1} parent=11 // pred_region
          _
        $region52: #{_lambda_.1} parent=11 // pred_fallthru
          _
        // Predicated region
        $region53: #{_lambda_.1} parent=11 // pred_check
          %p449 = pneg %p336
        $region54: #{_lambda_.1} parent=11 // pred_check_branch
          %451 = sbr.rel (%p449) target = $region56
        $region55: #{_lambda_.1} parent=11 // pred_region
          _
        $region56: #{_lambda_.1} parent=11 // pred_fallthru
          _
        // Predicated region
        $region57: #{_lambda_.1} parent=11 // pred_check
          %p452 = pneg %p357
        $region58: #{_lambda_.1} parent=11 // pred_check_branch
          %454 = sbr.rel (%p452) target = $region60
        $region59: #{_lambda_.1} parent=11 // pred_region
          _
        $region60: #{_lambda_.1} parent=11 // pred_fallthru
          _
      $region12: #{_lambda_.1} parent=5 // pred_fallthru
        _
      %p455 = scmp.lt.s32.totalorder %s27, 2
      // Predicated region
      $region61: #{_lambda_.1} parent=5 // pred_check
        %p456 = pneg %p455
      $region62: #{_lambda_.1} parent=5 // pred_check_branch
        %458 = sbr.rel (%p456) target = $region64
      $region63: #{_lambda_.1} parent=5 // pred_region
        // Predicated region
        $region65: #{_lambda_.1} parent=63 // pred_check
          %p459 = pneg %p68
        $region66: #{_lambda_.1} parent=63 // pred_check_branch
          %461 = sbr.rel (%p459) target = $region68
        $region67: #{_lambda_.1} parent=63 // pred_region
          %p462 = scmp.lt.s32.totalorder %s27, 1
          %s463 = scalar_select %p462, %s27, 1
          %s464 = smul.addr %s463, 8
          %s465 = scalar_lea.vmem %s1, %s464
        $region68: #{_lambda_.1} parent=63 // pred_fallthru
          _
        // Predicated region
        $region69: #{_lambda_.1} parent=63 // pred_check
          %p466 = pneg %p94
        $region70: #{_lambda_.1} parent=63 // pred_check_branch
          %468 = sbr.rel (%p466) target = $region72
        $region71: #{_lambda_.1} parent=63 // pred_region
          %p469 = scmp.lt.s32.totalorder %s27, 1
          %s470 = scalar_select %p469, %s27, 1
          %s471 = smul.addr %s470, 2
          %s472 = scalar_lea.vmem %s2, %s471
        $region72: #{_lambda_.1} parent=63 // pred_fallthru
          _
        // Predicated region
        $region73: #{_lambda_.1} parent=63 // pred_check
          %p473 = pneg %p141
        $region74: #{_lambda_.1} parent=63 // pred_check_branch
          %475 = sbr.rel (%p473) target = $region76
        $region75: #{_lambda_.1} parent=63 // pred_region
          %s476 = smul.u32 16, %s27
          %p477 = scmp.lt.s32.totalorder %s476, 31
          %s478 = scalar_select %p477, %s476, 31
          %s479 = smul.addr %s478, 4
          %s480 = scalar_lea.vmem %s4, %s479
          %s481 = smul.u32 16, %s27
        $region76: #{_lambda_.1} parent=63 // pred_fallthru
          _
      $region64: #{_lambda_.1} parent=5 // pred_fallthru
        _
      %p482 = scmp.le.s32.totalorder 1, %s27
      %p483 = scmp.lt.s32.totalorder %s27, 3
      %p484 = pnand %p482, %p483
      %p485 = pneg %p484
      // Predicated region
      $region77: #{_lambda_.1} parent=5 // pred_check
        _
      $region78: #{_lambda_.1} parent=5 // pred_check_branch
        %487 = sbr.rel (%p484) target = $region80
      $region79: #{_lambda_.1} parent=5 // pred_region
        %s488 = ssub.s32 %s27, 1
        %p489 = pneg %p48
        %p490 = pneg %p45
        %p491 = scmp.lt.s32.totalorder %s32, 1
        %s492 = scalar_select %p491, %s32, 1
        %s493 = smul.addr %s492, 8
        %s494 = scalar_lea.vmem %s1, %s493
        %p495 = pneg %p74
        %p496 = pneg %p71
        %p497 = scmp.lt.s32.totalorder %s32, 1
        %s498 = scalar_select %p497, %s32, 1
        %s499 = smul.addr %s498, 2
        %s500 = scalar_lea.vmem %s2, %s499
        %p501 = pneg %p100
        %p502 = pneg %p97
        %p503 = pneg %p121
        %p504 = pneg %p118
        %s505 = smul.u32 16, %s32
        %p506 = scmp.lt.s32.totalorder %s505, 31
        %s507 = scalar_select %p506, %s505, 31
        %s508 = smul.addr %s507, 4
        %s509 = scalar_lea.vmem %s4, %s508
        %p510 = pneg %p147
        %p511 = pneg %p144
        %p512 = pneg %p168
        %p513 = pneg %p165
        %p514 = pneg %p189
        %p515 = pneg %p186
        %p516 = pneg %p210
        %p517 = pneg %p207
        %p518 = pneg %p231
        %p519 = pneg %p228
        %p520 = pneg %p252
        %p521 = pneg %p249
        %p522 = pneg %p273
        %p523 = pneg %p270
        %p524 = pneg %p294
        %p525 = pneg %p291
        %p526 = pneg %p315
        %p527 = pneg %p312
        %p528 = pneg %p336
        %p529 = pneg %p333
        %p530 = pneg %p357
        %p531 = pneg %p354
        %p532 = pneg %p378
        %p533 = pneg %p375
        %p534 = pneg %p404
        %p535 = pneg %p401
        %s536 = sand.u32 %s391, 1
        %s537 = scalar_lea.sflag [#allocation11], %s536
        %s538 = sand.u32 %s391, 1
        %s539 = smul.addr %s538, 128
        %s540 = scalar_lea.vmem [#allocation10], %s539
        %p541 = scmp.lt.s32.totalorder %s32, 1
        %s542 = scalar_select %p541, %s32, 1
        %s543 = smul.addr %s542, 8
        %s544 = scalar_lea.vmem %s1, %s543
        %p545 = scmp.lt.s32.totalorder %s32, 1
        %s546 = scalar_select %p545, %s32, 1
        %s547 = smul.addr %s546, 2
        %s548 = scalar_lea.vmem %s2, %s547
        %s549 = smul.u32 16, %s32
        %p550 = scmp.lt.s32.totalorder %s549, 31
        %s551 = scalar_select %p550, %s549, 31
        %s552 = smul.addr %s551, 4
        %s553 = scalar_lea.vmem %s4, %s552
        %s554 = smul.u32 16, %s32
        %s555 = smul.u32 16, %s32
        %v557 = vld [vmem:[%s0] sm:$0x3f]
        %p558 = scmp.eq.s32.totalorder %s32, 0
        // Predicated region
        $region81: #{_lambda_.1} parent=79 // pred_check
          %p559 = pneg %p558
        $region82: #{_lambda_.1} parent=79 // pred_check_branch
          %561 = sbr.rel (%p559) target = $region84
        $region83: #{_lambda_.1} parent=79 // pred_region
          %v562 = vpack.c.bf16 %v557, %v557
          %v563 = vmax.f32 %v557, 0.0
          %v564 = vpack.c.bf16 %v563, %v563
          %v565 = vld [vmem:[%s5] sm:$0xf]
          %v566 = vld [vmem:[%s5 + $0x4] sm:$0xf]
          %v567 = vld [vmem:[%s5 + $0x8] sm:$0xf]
          %v568 = vld [vmem:[%s5 + $0xc] sm:$0xf]
          %v569 = vld [vmem:[%s6] sm:$0x1]
          %v571 = vlaneseq
          %v572 = vshrl.u32 %v571, 7
          %v573 = vsub.s32 0, %v572
          %v574 = vrot.slane %v569, %v573
          %v580 = vunpack.c.l.b16 %v565
          %v581 = vunpack.c.l.b16 %v566
          %v582 = vunpack.c.l.b16 %v567
          %v583 = vunpack.c.l.b16 %v568
          %v584 = vpack.c.b16 %v581, %v580
          %v585 = vpack.c.b16 %v583, %v582
          %vm588 = vcmask 261120
          %v590 = vsel %vm588, %v564, 0
          %592 = vmatprep.subr.bf16.mxu0 0
          %593 = vmatpush1.bf16.msra.mxu0 %v584
          %594 = vmatprep.subr.bf16.mxu0 0
          %595 = vmatpush1.bf16.msra.mxu0 %v585
          %596 = vmatprep.subr.bf16.mxu0 0
          %597 = vmatpush1.bf16.msra.mxu0 0
          %598 = vmatprep.subr.bf16.mxu0 0
          %599 = vmatpush1.bf16.msra.mxu0 0
          %600 = vmatprep.subr.bf16.mxu0 0
          %601 = vmatpush1.bf16.msra.mxu0 0
          %602 = vmatprep.subr.bf16.mxu0 0
          %603 = vmatpush1.bf16.msra.mxu0 0
          %604 = vmatprep.subr.bf16.mxu0 0
          %605 = vmatpush1.bf16.msra.mxu0 0
          %606 = vmatprep.subr.bf16.mxu0 0
          %607 = vmatpush1.bf16.msra.mxu0 0
          %608 = vmatprep.subr.bf16.mxu0 0
          %609 = vmatpush1.bf16.msra.mxu0 0
          %610 = vmatprep.subr.bf16.mxu0 0
          %611 = vmatpush1.bf16.msra.mxu0 0
          %612 = vmatprep.subr.bf16.mxu0 0
          %613 = vmatpush1.bf16.msra.mxu0 0
          %614 = vmatprep.subr.bf16.mxu0 0
          %615 = vmatpush1.bf16.msra.mxu0 0
          %616 = vmatprep.subr.bf16.mxu0 0
          %617 = vmatpush1.bf16.msra.mxu0 0
          %618 = vmatprep.subr.bf16.mxu0 0
          %619 = vmatpush1.bf16.msra.mxu0 0
          %620 = vmatprep.subr.bf16.mxu0 0
          %621 = vmatpush1.bf16.msra.mxu0 0
          %622 = vmatprep.subr.bf16.mxu0 0
          %623 = vmatpush1.bf16.msra.mxu0 0
          %624 = vmatprep.mubr.bf16.mxu0 0
          %625 = vmatmul.mubr.bf16.gmra.mrb[0].mxu0 %v590
          %v626 = vpop.f32.mrb[0].mxu0
          %v627 = vadd.f32 %v574, %v626
          %v628 = vpop.f32.mrb[0].mxu0
          %v629 = vpop.f32.mrb[0].mxu0
          %v630 = vpop.f32.mrb[0].mxu0
          %631 = vdwg.mxu0
          %vm632 = vcmask 259072
          %633 = vst.msk [vmem:[#allocation2] sm:$0x3f] %vm632, %v627
          %v634 = vpack.c.bf16 %v627, %v627
          %v636 = vunpack.c.l.b16 %v634
          %v637 = vpack.c.b16 %v636, %v636
          %638 = vrot.lane.b32.xlu0 %v637, 96
          %v639 = vpop.permute.xlu0 %638
          %vm641 = vcmask 256000
          %642 = vst.msk [vmem:[#allocation3] sm:$0x7] %vm641, %v639
          %vm643 = vcmask 5120
          %644 = vst.msk [vmem:[#allocation4] sm:$0x3f] %vm643, -1e+30
          %645 = vst.msk [vmem:[#allocation5] sm:$0x3f] %vm643, 0.0
          %646 = vst.msk [vmem:[#allocation6] sm:$0x3f] %vm632, 0.0
          %v647 = vld [vmem:[%s13] sm:$0xf]
          %v648 = vld [vmem:[%s13 + $0x4] sm:$0xf]
          %v649 = vld [vmem:[%s13 + $0x8] sm:$0xf]
          %v650 = vld [vmem:[%s13 + $0xc] sm:$0xf]
          %v655 = vunpack.c.l.b16 %v647
          %v656 = vunpack.c.l.b16 %v648
          %v657 = vunpack.c.l.b16 %v649
          %v658 = vunpack.c.l.b16 %v650
          %v659 = vpack.c.b16 %v656, %v655
          %v660 = vpack.c.b16 %v658, %v657
          %v664 = vsel %vm588, %v562, 0
          %666 = vmatprep.subr.bf16.mxu0 0
          %667 = vmatpush1.bf16.msra.mxu0 %v659
          %668 = vmatprep.subr.bf16.mxu0 0
          %669 = vmatpush1.bf16.msra.mxu0 %v660
          %670 = vmatprep.subr.bf16.mxu0 0
          %671 = vmatpush1.bf16.msra.mxu0 0
          %672 = vmatprep.subr.bf16.mxu0 0
          %673 = vmatpush1.bf16.msra.mxu0 0
          %674 = vmatprep.subr.bf16.mxu0 0
          %675 = vmatpush1.bf16.msra.mxu0 0
          %676 = vmatprep.subr.bf16.mxu0 0
          %677 = vmatpush1.bf16.msra.mxu0 0
          %678 = vmatprep.subr.bf16.mxu0 0
          %679 = vmatpush1.bf16.msra.mxu0 0
          %680 = vmatprep.subr.bf16.mxu0 0
          %681 = vmatpush1.bf16.msra.mxu0 0
          %682 = vmatprep.subr.bf16.mxu0 0
          %683 = vmatpush1.bf16.msra.mxu0 0
          %684 = vmatprep.subr.bf16.mxu0 0
          %685 = vmatpush1.bf16.msra.mxu0 0
          %686 = vmatprep.subr.bf16.mxu0 0
          %687 = vmatpush1.bf16.msra.mxu0 0
          %688 = vmatprep.subr.bf16.mxu0 0
          %689 = vmatpush1.bf16.msra.mxu0 0
          %690 = vmatprep.subr.bf16.mxu0 0
          %691 = vmatpush1.bf16.msra.mxu0 0
          %692 = vmatprep.subr.bf16.mxu0 0
          %693 = vmatpush1.bf16.msra.mxu0 0
          %694 = vmatprep.subr.bf16.mxu0 0
          %695 = vmatpush1.bf16.msra.mxu0 0
          %696 = vmatprep.subr.bf16.mxu0 0
          %697 = vmatpush1.bf16.msra.mxu0 0
          %698 = vmatprep.mubr.bf16.mxu0 0
          %699 = vmatmul.mubr.bf16.gmra.mrb[0].mxu0 %v664
          %v700 = vpop.f32.mrb[0].mxu0
          %v701 = vadd.f32 0.0, %v700
          %v702 = vpop.f32.mrb[0].mxu0
          %v703 = vpop.f32.mrb[0].mxu0
          %v704 = vpop.f32.mrb[0].mxu0
          %705 = vdwg.mxu0
          %707 = vrot.lane.b32.xlu0 %v701, 112
          %v708 = vpop.permute.xlu0 %707
          %vm709 = vcmask 130048
          %v710 = vsel %vm709, %v701, 0
          %v712 = vsel %vm709, %v708, 0
          %714 = vmatprep.subr.mxu0 0.0
          %715 = vmatpush1.xpose.msra.mxu0 %v712
          %716 = vmatprep.subr.mxu0 0.0
          %717 = vmatpush1.xpose.msra.mxu0 0.0
          %718 = vmatprep.subr.mxu0 0.0
          %719 = vmatpush1.xpose.msra.mxu0 0.0
          %720 = vmatprep.subr.mxu0 0.0
          %721 = vmatpush1.xpose.msra.mxu0 0.0
          %722 = vmatprep.subr.mxu0 0.0
          %723 = vmatpush1.xpose.msra.mxu0 0.0
          %724 = vmatprep.subr.mxu0 0.0
          %725 = vmatpush1.xpose.msra.mxu0 0.0
          %726 = vmatprep.subr.mxu0 0.0
          %727 = vmatpush1.xpose.msra.mxu0 0.0
          %728 = vmatprep.subr.mxu0 0.0
          %729 = vmatpush1.xpose.msra.mxu0 0.0
          %730 = vmatprep.subr.mxu0 0.0
          %731 = vmatpush1.xpose.msra.mxu0 0.0
          %732 = vmatprep.subr.mxu0 0.0
          %733 = vmatpush1.xpose.msra.mxu0 0.0
          %734 = vmatprep.subr.mxu0 0.0
          %735 = vmatpush1.xpose.msra.mxu0 0.0
          %736 = vmatprep.subr.mxu0 0.0
          %737 = vmatpush1.xpose.msra.mxu0 0.0
          %738 = vmatprep.subr.mxu0 0.0
          %739 = vmatpush1.xpose.msra.mxu0 0.0
          %740 = vmatprep.subr.mxu0 0.0
          %741 = vmatpush1.xpose.msra.mxu0 0.0
          %742 = vmatprep.subr.mxu0 0.0
          %743 = vmatpush1.xpose.msra.mxu0 0.0
          %744 = vmatprep.subr.mxu0 0.0
          %745 = vmatpush1.xpose.msra.mxu0 0.0
          %746 = vmatprep.subr.mxu0 0.0
          %747 = vmatpush1.xpose.msra.mxu0 0.0
          %748 = vmatprep.subr.mxu0 0.0
          %749 = vmatpush1.xpose.msra.mxu0 0.0
          %750 = vmatprep.subr.mxu0 0.0
          %751 = vmatpush1.xpose.msra.mxu0 0.0
          %752 = vmatprep.subr.mxu0 0.0
          %753 = vmatpush1.xpose.msra.mxu0 0.0
          %754 = vmatprep.subr.mxu0 0.0
          %755 = vmatpush1.xpose.msra.mxu0 0.0
          %756 = vmatprep.subr.mxu0 0.0
          %757 = vmatpush1.xpose.msra.mxu0 0.0
          %758 = vmatprep.subr.mxu0 0.0
          %759 = vmatpush1.xpose.msra.mxu0 0.0
          %760 = vmatprep.subr.mxu0 0.0
          %761 = vmatpush1.xpose.msra.mxu0 0.0
          %762 = vmatprep.subr.mxu0 0.0
          %763 = vmatpush1.xpose.msra.mxu0 0.0
          %764 = vmatprep.subr.mxu0 0.0
          %765 = vmatpush1.xpose.msra.mxu0 0.0
          %766 = vmatprep.subr.mxu0 0.0
          %767 = vmatpush1.xpose.msra.mxu0 0.0
          %768 = vmatprep.subr.mxu0 0.0
          %769 = vmatpush1.xpose.msra.mxu0 0.0
          %770 = vmatprep.subr.mxu0 0.0
          %771 = vmatpush1.xpose.msra.mxu0 0.0
          %772 = vmatprep.subr.mxu0 0.0
          %773 = vmatpush1.xpose.msra.mxu0 0.0
          %774 = vmatprep.subr.mxu0 0.0
          %775 = vmatpush1.xpose.msra.mxu0 0.0
          %776 = vmatprep.subr.mxu0 0.0
          %777 = vmatpush1.xpose.msra.mxu0 0.0
          %778 = vmatprep.mubr.f32.mxu0 0.0
          %779 = vmatmul.mubr.f32.gmra.mrb[0].mxu0 %v710
          %v780 = vpop.f32.mrb[0].mxu0
          %v781 = vadd.f32 0.0, %v780
          %v782 = vpop.f32.mrb[0].mxu0
          %783 = vdwg.mxu0
          %v784 = vmul.f32 %v781, 0.25
          %v785 = vld [vmem:[%s14] sm:$0x3f]
          %v786 = vadd.f32 %v784, %v785
          %vm787 = vcmask 46080
          %v788 = vsel %vm787, %v786, -inf
          %789 = vmax.xlane.f32.xlu0 %v788
          %v790 = vpop.xlane.xlu0 %789
          %v791 = vsub.f32 %v786, %v790
          %v792 = vmul.f32 %v791, 1.442695
          %v793 = vpow.pop %v792
          %v794 = vsel %vm787, %v793, 0.0
          %795 = vadd.xlane.f32.xlu0 %v794
          %v796 = vpop.xlane.xlu0 %795
          %v797 = vrcp.pop %v796
          %v798 = vmul.f32 %v793, %v797
          %799 = vrot.lane.b32.xlu0 %v701, 96
          %v800 = vpop.permute.xlu0 %799
          %vm801 = vcmask 48128
          %v803 = vsel %vm801, %v798, 0
          %vm805 = vcmask 1045504
          %v806 = vsel %vm805, %v800, 0
          %808 = vmatprep.subr.mxu0 0.0
          %809 = vmatpush1.msra.mxu0 %v806
          %810 = vmatprep.subr.mxu0 0.0
          %811 = vmatpush1.msra.mxu0 0.0
          %812 = vmatprep.subr.mxu0 0.0
          %813 = vmatpush1.msra.mxu0 0.0
          %814 = vmatprep.subr.mxu0 0.0
          %815 = vmatpush1.msra.mxu0 0.0
          %816 = vmatprep.subr.mxu0 0.0
          %817 = vmatpush1.msra.mxu0 0.0
          %818 = vmatprep.subr.mxu0 0.0
          %819 = vmatpush1.msra.mxu0 0.0
          %820 = vmatprep.subr.mxu0 0.0
          %821 = vmatpush1.msra.mxu0 0.0
          %822 = vmatprep.subr.mxu0 0.0
          %823 = vmatpush1.msra.mxu0 0.0
          %824 = vmatprep.subr.mxu0 0.0
          %825 = vmatpush1.msra.mxu0 0.0
          %826 = vmatprep.subr.mxu0 0.0
          %827 = vmatpush1.msra.mxu0 0.0
          %828 = vmatprep.subr.mxu0 0.0
          %829 = vmatpush1.msra.mxu0 0.0
          %830 = vmatprep.subr.mxu0 0.0
          %831 = vmatpush1.msra.mxu0 0.0
          %832 = vmatprep.subr.mxu0 0.0
          %833 = vmatpush1.msra.mxu0 0.0
          %834 = vmatprep.subr.mxu0 0.0
          %835 = vmatpush1.msra.mxu0 0.0
          %836 = vmatprep.subr.mxu0 0.0
          %837 = vmatpush1.msra.mxu0 0.0
          %838 = vmatprep.subr.mxu0 0.0
          %839 = vmatpush1.msra.mxu0 0.0
          %840 = vmatprep.subr.mxu0 0.0
          %841 = vmatpush1.msra.mxu0 0.0
          %842 = vmatprep.subr.mxu0 0.0
          %843 = vmatpush1.msra.mxu0 0.0
          %844 = vmatprep.subr.mxu0 0.0
          %845 = vmatpush1.msra.mxu0 0.0
          %846 = vmatprep.subr.mxu0 0.0
          %847 = vmatpush1.msra.mxu0 0.0
          %848 = vmatprep.subr.mxu0 0.0
          %849 = vmatpush1.msra.mxu0 0.0
          %850 = vmatprep.subr.mxu0 0.0
          %851 = vmatpush1.msra.mxu0 0.0
          %852 = vmatprep.subr.mxu0 0.0
          %853 = vmatpush1.msra.mxu0 0.0
          %854 = vmatprep.subr.mxu0 0.0
          %855 = vmatpush1.msra.mxu0 0.0
          %856 = vmatprep.subr.mxu0 0.0
          %857 = vmatpush1.msra.mxu0 0.0
          %858 = vmatprep.subr.mxu0 0.0
          %859 = vmatpush1.msra.mxu0 0.0
          %860 = vmatprep.subr.mxu0 0.0
          %861 = vmatpush1.msra.mxu0 0.0
          %862 = vmatprep.subr.mxu0 0.0
          %863 = vmatpush1.msra.mxu0 0.0
          %864 = vmatprep.subr.mxu0 0.0
          %865 = vmatpush1.msra.mxu0 0.0
          %866 = vmatprep.subr.mxu0 0.0
          %867 = vmatpush1.msra.mxu0 0.0
          %868 = vmatprep.subr.mxu0 0.0
          %869 = vmatpush1.msra.mxu0 0.0
          %870 = vmatprep.subr.mxu0 0.0
          %871 = vmatpush1.msra.mxu0 0.0
          %872 = vmatprep.mubr.f32.mxu0 0.0
          %873 = vmatmul.mubr.f32.gmra.mrb[0].mxu0 %v803
          %v874 = vpop.f32.mrb[0].mxu0
          %v875 = vadd.f32 0.0, %v874
          %v876 = vpop.f32.mrb[0].mxu0
          %877 = vdwg.mxu0
          %878 = vst.msk [vmem:[#allocation7] sm:$0x3f] %vm632, %v875
        $region84: #{_lambda_.1} parent=79 // pred_fallthru
          _
        %v879 = vld [vmem:[%s553] sm:$0xf]
        %v880 = vld [vmem:[%s553 + $0x4] sm:$0xf]
        %v881 = vld [vmem:[%s553 + $0x8] sm:$0xf]
        %v882 = vld [vmem:[%s553 + $0xc] sm:$0xf]
        %v883 = vld [vmem:[%s553 + $0x10] sm:$0xf]
        %v884 = vld [vmem:[%s553 + $0x14] sm:$0xf]
        %v885 = vld [vmem:[%s553 + $0x18] sm:$0xf]
        %v886 = vld [vmem:[%s553 + $0x1c] sm:$0xf]
        %v887 = vld [vmem:[%s553 + $0x20] sm:$0xf]
        %v888 = vld [vmem:[%s553 + $0x24] sm:$0xf]
        %v889 = vld [vmem:[%s553 + $0x28] sm:$0xf]
        %v890 = vld [vmem:[%s553 + $0x2c] sm:$0xf]
        %v891 = vld [vmem:[%s553 + $0x30] sm:$0xf]
        %v892 = vld [vmem:[%s553 + $0x34] sm:$0xf]
        %v893 = vld [vmem:[%s553 + $0x38] sm:$0xf]
        %v894 = vld [vmem:[%s553 + $0x3c] sm:$0xf]
        %v895 = vmax.bf16 %v879, 0
        %v896 = vmax.bf16 %v880, 0
        %v897 = vmax.bf16 %v881, 0
        %v898 = vmax.bf16 %v882, 0
        %v899 = vmax.bf16 %v883, 0
        %v900 = vmax.bf16 %v884, 0
        %v901 = vmax.bf16 %v885, 0
        %v902 = vmax.bf16 %v886, 0
        %v903 = vmax.bf16 %v887, 0
        %v904 = vmax.bf16 %v888, 0
        %v905 = vmax.bf16 %v889, 0
        %v906 = vmax.bf16 %v890, 0
        %v907 = vmax.bf16 %v891, 0
        %v908 = vmax.bf16 %v892, 0
        %v909 = vmax.bf16 %v893, 0
        %v910 = vmax.bf16 %v894, 0
        %v911 = vld [vmem:[%s7] sm:$0xf]
        %v912 = vld [vmem:[%s7 + $0x4] sm:$0xf]
        %v913 = vld [vmem:[%s7 + $0x8] sm:$0xf]
        %v914 = vld [vmem:[%s7 + $0xc] sm:$0xf]
        %v915 = vld [vmem:[%s8] sm:$0x1]
        %v917 = vlaneseq
        %v918 = vshrl.u32 %v917, 7
        %v919 = vsub.s32 0, %v918
        %v920 = vrot.slane %v915, %v919
        %v938 = vunpack.c.l.b16 %v895
        %v939 = vunpack.c.l.b16 %v896
        %v940 = vunpack.c.l.b16 %v897
        %v941 = vunpack.c.l.b16 %v898
        %v942 = vunpack.c.l.b16 %v899
        %v943 = vunpack.c.l.b16 %v900
        %v944 = vunpack.c.l.b16 %v901
        %v945 = vunpack.c.l.b16 %v902
        %v946 = vunpack.c.l.b16 %v903
        %v947 = vunpack.c.l.b16 %v904
        %v948 = vunpack.c.l.b16 %v905
        %v949 = vunpack.c.l.b16 %v906
        %v950 = vunpack.c.l.b16 %v907
        %v951 = vunpack.c.l.b16 %v908
        %v952 = vunpack.c.l.b16 %v909
        %v953 = vunpack.c.l.b16 %v910
        %v954 = vpack.c.b16 %v939, %v938
        %v955 = vpack.c.b16 %v941, %v940
        %v956 = vpack.c.b16 %v943, %v942
        %v957 = vpack.c.b16 %v945, %v944
        %v958 = vpack.c.b16 %v947, %v946
        %v959 = vpack.c.b16 %v949, %v948
        %v960 = vpack.c.b16 %v951, %v950
        %v961 = vpack.c.b16 %v953, %v952
        %v966 = vunpack.c.l.b16 %v911
        %v967 = vunpack.c.l.b16 %v912
        %v968 = vunpack.c.l.b16 %v913
        %v969 = vunpack.c.l.b16 %v914
        %v970 = vpack.c.b16 %v967, %v966
        %v971 = vpack.c.b16 %v969, %v968
        %vm974 = vcmask 261120
        %v976 = vsel %vm974, %v954, 0
        %v979 = vsel %vm974, %v955, 0
        %v982 = vsel %vm974, %v956, 0
        %v985 = vsel %vm974, %v957, 0
        %v988 = vsel %vm974, %v958, 0
        %v991 = vsel %vm974, %v959, 0
        %v994 = vsel %vm974, %v960, 0
        %v997 = vsel %vm974, %v961, 0
        %999 = vmatprep.subr.bf16.mxu0 0
        %1000 = vmatpush1.bf16.msra.mxu0 %v970
        %1001 = vmatprep.subr.bf16.mxu0 0
        %1002 = vmatpush1.bf16.msra.mxu0 %v971
        %1003 = vmatprep.subr.bf16.mxu0 0
        %1004 = vmatpush1.bf16.msra.mxu0 0
        %1005 = vmatprep.subr.bf16.mxu0 0
        %1006 = vmatpush1.bf16.msra.mxu0 0
        %1007 = vmatprep.subr.bf16.mxu0 0
        %1008 = vmatpush1.bf16.msra.mxu0 0
        %1009 = vmatprep.subr.bf16.mxu0 0
        %1010 = vmatpush1.bf16.msra.mxu0 0
        %1011 = vmatprep.subr.bf16.mxu0 0
        %1012 = vmatpush1.bf16.msra.mxu0 0
        %1013 = vmatprep.subr.bf16.mxu0 0
        %1014 = vmatpush1.bf16.msra.mxu0 0
        %1015 = vmatprep.subr.bf16.mxu0 0
        %1016 = vmatpush1.bf16.msra.mxu0 0
        %1017 = vmatprep.subr.bf16.mxu0 0
        %1018 = vmatpush1.bf16.msra.mxu0 0
        %1019 = vmatprep.subr.bf16.mxu0 0
        %1020 = vmatpush1.bf16.msra.mxu0 0
        %1021 = vmatprep.subr.bf16.mxu0 0
        %1022 = vmatpush1.bf16.msra.mxu0 0
        %1023 = vmatprep.subr.bf16.mxu0 0
        %1024 = vmatpush1.bf16.msra.mxu0 0
        %1025 = vmatprep.subr.bf16.mxu0 0
        %1026 = vmatpush1.bf16.msra.mxu0 0
        %1027 = vmatprep.subr.bf16.mxu0 0
        %1028 = vmatpush1.bf16.msra.mxu0 0
        %1029 = vmatprep.subr.bf16.mxu0 0
        %1030 = vmatpush1.bf16.msra.mxu0 0
        %1031 = vmatprep.mubr.bf16.mxu0 0
        %1032 = vmatmul.mubr.bf16.gmra.mrb[0].mxu0 %v976
        %v1033 = vpop.f32.mrb[0].mxu0
        %v1034 = vadd.f32 %v920, %v1033
        %v1035 = vpop.f32.mrb[0].mxu0
        %v1036 = vpop.f32.mrb[0].mxu0
        %v1037 = vadd.f32 %v920, %v1036
        %v1038 = vpop.f32.mrb[0].mxu0
        %1039 = vmatprep.mubr.bf16.mxu0 0
        %1040 = vmatmul.mubr.bf16.gmra.mrb[0].mxu0 %v979
        %v1041 = vpop.f32.mrb[0].mxu0
        %v1042 = vadd.f32 %v920, %v1041
        %v1043 = vpop.f32.mrb[0].mxu0
        %v1044 = vpop.f32.mrb[0].mxu0
        %v1045 = vadd.f32 %v920, %v1044
        %v1046 = vpop.f32.mrb[0].mxu0
        %1047 = vmatprep.mubr.bf16.mxu0 0
        %1048 = vmatmul.mubr.bf16.gmra.mrb[0].mxu0 %v982
        %v1049 = vpop.f32.mrb[0].mxu0
        %v1050 = vadd.f32 %v920, %v1049
        %v1051 = vpop.f32.mrb[0].mxu0
        %v1052 = vpop.f32.mrb[0].mxu0
        %v1053 = vadd.f32 %v920, %v1052
        %v1054 = vpop.f32.mrb[0].mxu0
        %1055 = vmatprep.mubr.bf16.mxu0 0
        %1056 = vmatmul.mubr.bf16.gmra.mrb[0].mxu0 %v985
        %v1057 = vpop.f32.mrb[0].mxu0
        %v1058 = vadd.f32 %v920, %v1057
        %v1059 = vpop.f32.mrb[0].mxu0
        %v1060 = vpop.f32.mrb[0].mxu0
        %v1061 = vadd.f32 %v920, %v1060
        %v1062 = vpop.f32.mrb[0].mxu0
        %1063 = vmatprep.mubr.bf16.mxu0 0
        %1064 = vmatmul.mubr.bf16.gmra.mrb[0].mxu0 %v988
        %v1065 = vpop.f32.mrb[0].mxu0
        %v1066 = vadd.f32 %v920, %v1065
        %v1067 = vpop.f32.mrb[0].mxu0
        %v1068 = vpop.f32.mrb[0].mxu0
        %v1069 = vadd.f32 %v920, %v1068
        %v1070 = vpop.f32.mrb[0].mxu0
        %1071 = vmatprep.mubr.bf16.mxu0 0
        %1072 = vmatmul.mubr.bf16.gmra.mrb[0].mxu0 %v991
        %v1073 = vpop.f32.mrb[0].mxu0
        %v1074 = vadd.f32 %v920, %v1073
        %v1075 = vpop.f32.mrb[0].mxu0
        %v1076 = vpop.f32.mrb[0].mxu0
        %v1077 = vadd.f32 %v920, %v1076
        %v1078 = vpop.f32.mrb[0].mxu0
        %1079 = vmatprep.mubr.bf16.mxu0 0
        %1080 = vmatmul.mubr.bf16.gmra.mrb[0].mxu0 %v994
        %v1081 = vpop.f32.mrb[0].mxu0
        %v1082 = vadd.f32 %v920, %v1081
        %v1083 = vpop.f32.mrb[0].mxu0
        %v1084 = vpop.f32.mrb[0].mxu0
        %v1085 = vadd.f32 %v920, %v1084
        %v1086 = vpop.f32.mrb[0].mxu0
        %1087 = vmatprep.mubr.bf16.mxu0 0
        %1088 = vmatmul.mubr.bf16.gmra.mrb[0].mxu0 %v997
        %v1089 = vpop.f32.mrb[0].mxu0
        %v1090 = vadd.f32 %v920, %v1089
        %v1091 = vpop.f32.mrb[0].mxu0
        %v1092 = vpop.f32.mrb[0].mxu0
        %v1093 = vadd.f32 %v920, %v1092
        %v1094 = vpop.f32.mrb[0].mxu0
        %1095 = vdwg.mxu0
        %v1096 = vld [vmem:[%s544] sm:$0x3f]
        %v1097 = vld [vmem:[%s548] sm:$0x3]
        %v1098 = vld [vmem:[%s3] sm:$0xff]
        %v1099 = vld [vmem:[%s3 + $0x8] sm:$0xff]
        %v1100 = vld [vmem:[%s3 + $0x10] sm:$0xff]
        %v1101 = vld [vmem:[%s3 + $0x18] sm:$0xff]
        %v1102 = vld [vmem:[%s3 + $0x20] sm:$0xff]
        %v1103 = vld [vmem:[%s3 + $0x28] sm:$0xff]
        %v1104 = vld [vmem:[%s3 + $0x30] sm:$0xff]
        %v1105 = vld [vmem:[%s3 + $0x38] sm:$0xff]
        %v1106 = vld [vmem:[%s3 + $0x40] sm:$0xff]
        %v1107 = vld [vmem:[%s3 + $0x48] sm:$0xff]
        %v1108 = vld [vmem:[%s3 + $0x50] sm:$0xff]
        %v1109 = vld [vmem:[%s3 + $0x58] sm:$0xff]
        %v1110 = vld [vmem:[%s3 + $0x60] sm:$0xff]
        %v1111 = vld [vmem:[%s3 + $0x68] sm:$0xff]
        %v1112 = vld [vmem:[%s3 + $0x70] sm:$0xff]
        %v1113 = vld [vmem:[%s3 + $0x78] sm:$0xff]
        %vm1114 = vcmask 15360
        %v1116 = vsel %vm1114, %v1096, 0
        %v1119 = vsel %vm1114, %v1098, 0
        %v1122 = vsel %vm1114, %v1099, 0
        %v1125 = vsel %vm1114, %v1100, 0
        %v1128 = vsel %vm1114, %v1101, 0
        %v1131 = vsel %vm1114, %v1102, 0
        %v1134 = vsel %vm1114, %v1103, 0
        %v1137 = vsel %vm1114, %v1104, 0
        %v1140 = vsel %vm1114, %v1105, 0
        %v1143 = vsel %vm1114, %v1106, 0
        %v1146 = vsel %vm1114, %v1107, 0
        %v1149 = vsel %vm1114, %v1108, 0
        %v1152 = vsel %vm1114, %v1109, 0
        %v1155 = vsel %vm1114, %v1110, 0
        %v1158 = vsel %vm1114, %v1111, 0
        %v1161 = vsel %vm1114, %v1112, 0
        %v1164 = vsel %vm1114, %v1113, 0
        %1166 = vmatprep.subr.mxu0 0.0
        %1167 = vmatpush1.xpose.msra.mxu0 %v1119
        %1168 = vmatprep.subr.mxu0 0.0
        %1169 = vmatpush1.xpose.msra.mxu0 %v1122
        %1170 = vmatprep.subr.mxu0 0.0
        %1171 = vmatpush1.xpose.msra.mxu0 %v1125
        %1172 = vmatprep.subr.mxu0 0.0
        %1173 = vmatpush1.xpose.msra.mxu0 %v1128
        %1174 = vmatprep.subr.mxu0 0.0
        %1175 = vmatpush1.xpose.msra.mxu0 %v1131
        %1176 = vmatprep.subr.mxu0 0.0
        %1177 = vmatpush1.xpose.msra.mxu0 %v1134
        %1178 = vmatprep.subr.mxu0 0.0
        %1179 = vmatpush1.xpose.msra.mxu0 %v1137
        %1180 = vmatprep.subr.mxu0 0.0
        %1181 = vmatpush1.xpose.msra.mxu0 %v1140
        %1182 = vmatprep.subr.mxu0 0.0
        %1183 = vmatpush1.xpose.msra.mxu0 %v1143
        %1184 = vmatprep.subr.mxu0 0.0
        %1185 = vmatpush1.xpose.msra.mxu0 %v1146
        %1186 = vmatprep.subr.mxu0 0.0
        %1187 = vmatpush1.xpose.msra.mxu0 %v1149
        %1188 = vmatprep.subr.mxu0 0.0
        %1189 = vmatpush1.xpose.msra.mxu0 %v1152
        %1190 = vmatprep.subr.mxu0 0.0
        %1191 = vmatpush1.xpose.msra.mxu0 %v1155
        %1192 = vmatprep.subr.mxu0 0.0
        %1193 = vmatpush1.xpose.msra.mxu0 %v1158
        %1194 = vmatprep.subr.mxu0 0.0
        %1195 = vmatpush1.xpose.msra.mxu0 %v1161
        %1196 = vmatprep.subr.mxu0 0.0
        %1197 = vmatpush1.xpose.msra.mxu0 %v1164
        %1198 = vmatprep.subr.mxu0 0.0
        %1199 = vmatpush1.xpose.msra.mxu0 0.0
        %1200 = vmatprep.subr.mxu0 0.0
        %1201 = vmatpush1.xpose.msra.mxu0 0.0
        %1202 = vmatprep.subr.mxu0 0.0
        %1203 = vmatpush1.xpose.msra.mxu0 0.0
        %1204 = vmatprep.subr.mxu0 0.0
        %1205 = vmatpush1.xpose.msra.mxu0 0.0
        %1206 = vmatprep.subr.mxu0 0.0
        %1207 = vmatpush1.xpose.msra.mxu0 0.0
        %1208 = vmatprep.subr.mxu0 0.0
        %1209 = vmatpush1.xpose.msra.mxu0 0.0
        %1210 = vmatprep.subr.mxu0 0.0
        %1211 = vmatpush1.xpose.msra.mxu0 0.0
        %1212 = vmatprep.subr.mxu0 0.0
        %1213 = vmatpush1.xpose.msra.mxu0 0.0
        %1214 = vmatprep.subr.mxu0 0.0
        %1215 = vmatpush1.xpose.msra.mxu0 0.0
        %1216 = vmatprep.subr.mxu0 0.0
        %1217 = vmatpush1.xpose.msra.mxu0 0.0
        %1218 = vmatprep.subr.mxu0 0.0
        %1219 = vmatpush1.xpose.msra.mxu0 0.0
        %1220 = vmatprep.subr.mxu0 0.0
        %1221 = vmatpush1.xpose.msra.mxu0 0.0
        %1222 = vmatprep.subr.mxu0 0.0
        %1223 = vmatpush1.xpose.msra.mxu0 0.0
        %1224 = vmatprep.subr.mxu0 0.0
        %1225 = vmatpush1.xpose.msra.mxu0 0.0
        %1226 = vmatprep.subr.mxu0 0.0
        %1227 = vmatpush1.xpose.msra.mxu0 0.0
        %1228 = vmatprep.subr.mxu0 0.0
        %1229 = vmatpush1.xpose.msra.mxu0 0.0
        %1230 = vmatprep.mubr.f32.mxu0 0.0
        %1231 = vmatmul.mubr.f32.gmra.mrb[0].mxu0 %v1116
        %v1232 = vpop.f32.mrb[0].mxu0
        %v1233 = vadd.f32 0.0, %v1232
        %v1234 = vpop.f32.mrb[0].mxu0
        %1235 = vdwg.mxu0
        %vm1236 = vcmask 1041408
        %v1238 = vsel %vm1236, %v1097, 0
        %1240 = vmatprep.subr.mxu0 0.0
        %1241 = vmatpush1.msra.mxu0 %v1238
        %1242 = vmatprep.subr.mxu0 0.0
        %1243 = vmatpush1.msra.mxu0 0.0
        %1244 = vmatprep.subr.mxu0 0.0
        %1245 = vmatpush1.msra.mxu0 0.0
        %1246 = vmatprep.subr.mxu0 0.0
        %1247 = vmatpush1.msra.mxu0 0.0
        %1248 = vmatprep.subr.mxu0 0.0
        %1249 = vmatpush1.msra.mxu0 0.0
        %1250 = vmatprep.subr.mxu0 0.0
        %1251 = vmatpush1.msra.mxu0 0.0
        %1252 = vmatprep.subr.mxu0 0.0
        %1253 = vmatpush1.msra.mxu0 0.0
        %1254 = vmatprep.subr.mxu0 0.0
        %1255 = vmatpush1.msra.mxu0 0.0
        %1256 = vmatprep.subr.mxu0 0.0
        %1257 = vmatpush1.msra.mxu0 0.0
        %1258 = vmatprep.subr.mxu0 0.0
        %1259 = vmatpush1.msra.mxu0 0.0
        %1260 = vmatprep.subr.mxu0 0.0
        %1261 = vmatpush1.msra.mxu0 0.0
        %1262 = vmatprep.subr.mxu0 0.0
        %1263 = vmatpush1.msra.mxu0 0.0
        %1264 = vmatprep.subr.mxu0 0.0
        %1265 = vmatpush1.msra.mxu0 0.0
        %1266 = vmatprep.subr.mxu0 0.0
        %1267 = vmatpush1.msra.mxu0 0.0
        %1268 = vmatprep.subr.mxu0 0.0
        %1269 = vmatpush1.msra.mxu0 0.0
        %1270 = vmatprep.subr.mxu0 0.0
        %1271 = vmatpush1.msra.mxu0 0.0
        %1272 = vmatprep.subr.mxu0 0.0
        %1273 = vmatpush1.msra.mxu0 0.0
        %1274 = vmatprep.subr.mxu0 0.0
        %1275 = vmatpush1.msra.mxu0 0.0
        %1276 = vmatprep.subr.mxu0 0.0
        %1277 = vmatpush1.msra.mxu0 0.0
        %1278 = vmatprep.subr.mxu0 0.0
        %1279 = vmatpush1.msra.mxu0 0.0
        %1280 = vmatprep.subr.mxu0 0.0
        %1281 = vmatpush1.msra.mxu0 0.0
        %1282 = vmatprep.subr.mxu0 0.0
        %1283 = vmatpush1.msra.mxu0 0.0
        %1284 = vmatprep.subr.mxu0 0.0
        %1285 = vmatpush1.msra.mxu0 0.0
        %1286 = vmatprep.subr.mxu0 0.0
        %1287 = vmatpush1.msra.mxu0 0.0
        %1288 = vmatprep.subr.mxu0 0.0
        %1289 = vmatpush1.msra.mxu0 0.0
        %1290 = vmatprep.subr.mxu0 0.0
        %1291 = vmatpush1.msra.mxu0 0.0
        %1292 = vmatprep.subr.mxu0 0.0
        %1293 = vmatpush1.msra.mxu0 0.0
        %1294 = vmatprep.subr.mxu0 0.0
        %1295 = vmatpush1.msra.mxu0 0.0
        %1296 = vmatprep.subr.mxu0 0.0
        %1297 = vmatpush1.msra.mxu0 0.0
        %1298 = vmatprep.subr.mxu0 0.0
        %1299 = vmatpush1.msra.mxu0 0.0
        %1300 = vmatprep.subr.mxu0 0.0
        %1301 = vmatpush1.msra.mxu0 0.0
        %1302 = vmatprep.subr.mxu0 0.0
        %1303 = vmatpush1.msra.mxu0 0.0
        %1304 = vmatprep.mubr.f32.mxu0 0.0
        %1305 = vmatmul.mubr.f32.gmra.mrb[0].mxu0 %v1119
        %v1306 = vpop.f32.mrb[0].mxu0
        %v1307 = vadd.f32 0.0, %v1306
        %v1308 = vpop.f32.mrb[0].mxu0
        %1309 = vmatprep.mubr.f32.mxu0 0.0
        %1310 = vmatmul.mubr.f32.gmra.mrb[0].mxu0 %v1122
        %v1311 = vpop.f32.mrb[0].mxu0
        %v1312 = vadd.f32 0.0, %v1311
        %v1313 = vpop.f32.mrb[0].mxu0
        %1314 = vmatprep.mubr.f32.mxu0 0.0
        %1315 = vmatmul.mubr.f32.gmra.mrb[0].mxu0 %v1125
        %v1316 = vpop.f32.mrb[0].mxu0
        %v1317 = vadd.f32 0.0, %v1316
        %v1318 = vpop.f32.mrb[0].mxu0
        %1319 = vmatprep.mubr.f32.mxu0 0.0
        %1320 = vmatmul.mubr.f32.gmra.mrb[0].mxu0 %v1128
        %v1321 = vpop.f32.mrb[0].mxu0
        %v1322 = vadd.f32 0.0, %v1321
        %v1323 = vpop.f32.mrb[0].mxu0
        %1324 = vmatprep.mubr.f32.mxu0 0.0
        %1325 = vmatmul.mubr.f32.gmra.mrb[0].mxu0 %v1131
        %v1326 = vpop.f32.mrb[0].mxu0
        %v1327 = vadd.f32 0.0, %v1326
        %v1328 = vpop.f32.mrb[0].mxu0
        %1329 = vmatprep.mubr.f32.mxu0 0.0
        %1330 = vmatmul.mubr.f32.gmra.mrb[0].mxu0 %v1134
        %v1331 = vpop.f32.mrb[0].mxu0
        %v1332 = vadd.f32 0.0, %v1331
        %v1333 = vpop.f32.mrb[0].mxu0
        %1334 = vmatprep.mubr.f32.mxu0 0.0
        %1335 = vmatmul.mubr.f32.gmra.mrb[0].mxu0 %v1137
        %v1336 = vpop.f32.mrb[0].mxu0
        %v1337 = vadd.f32 0.0, %v1336
        %v1338 = vpop.f32.mrb[0].mxu0
        %1339 = vmatprep.mubr.f32.mxu0 0.0
        %1340 = vmatmul.mubr.f32.gmra.mrb[0].mxu0 %v1140
        %v1341 = vpop.f32.mrb[0].mxu0
        %v1342 = vadd.f32 0.0, %v1341
        %v1343 = vpop.f32.mrb[0].mxu0
        %1344 = vmatprep.mubr.f32.mxu0 0.0
        %1345 = vmatmul.mubr.f32.gmra.mrb[0].mxu0 %v1143
        %v1346 = vpop.f32.mrb[0].mxu0
        %v1347 = vadd.f32 0.0, %v1346
        %v1348 = vpop.f32.mrb[0].mxu0
        %1349 = vmatprep.mubr.f32.mxu0 0.0
        %1350 = vmatmul.mubr.f32.gmra.mrb[0].mxu0 %v1146
        %v1351 = vpop.f32.mrb[0].mxu0
        %v1352 = vadd.f32 0.0, %v1351
        %v1353 = vpop.f32.mrb[0].mxu0
        %1354 = vmatprep.mubr.f32.mxu0 0.0
        %1355 = vmatmul.mubr.f32.gmra.mrb[0].mxu0 %v1149
        %v1356 = vpop.f32.mrb[0].mxu0
        %v1357 = vadd.f32 0.0, %v1356
        %v1358 = vpop.f32.mrb[0].mxu0
        %1359 = vmatprep.mubr.f32.mxu0 0.0
        %1360 = vmatmul.mubr.f32.gmra.mrb[0].mxu0 %v1152
        %v1361 = vpop.f32.mrb[0].mxu0
        %v1362 = vadd.f32 0.0, %v1361
        %v1363 = vpop.f32.mrb[0].mxu0
        %1364 = vmatprep.mubr.f32.mxu0 0.0
        %1365 = vmatmul.mubr.f32.gmra.mrb[0].mxu0 %v1155
        %v1366 = vpop.f32.mrb[0].mxu0
        %v1367 = vadd.f32 0.0, %v1366
        %v1368 = vpop.f32.mrb[0].mxu0
        %1369 = vmatprep.mubr.f32.mxu0 0.0
        %1370 = vmatmul.mubr.f32.gmra.mrb[0].mxu0 %v1158
        %v1371 = vpop.f32.mrb[0].mxu0
        %v1372 = vadd.f32 0.0, %v1371
        %v1373 = vpop.f32.mrb[0].mxu0
        %1374 = vmatprep.mubr.f32.mxu0 0.0
        %1375 = vmatmul.mubr.f32.gmra.mrb[0].mxu0 %v1161
        %v1376 = vpop.f32.mrb[0].mxu0
        %v1377 = vadd.f32 0.0, %v1376
        %v1378 = vpop.f32.mrb[0].mxu0
        %1379 = vmatprep.mubr.f32.mxu0 0.0
        %1380 = vmatmul.mubr.f32.gmra.mrb[0].mxu0 %v1164
        %v1381 = vpop.f32.mrb[0].mxu0
        %v1382 = vadd.f32 0.0, %v1381
        %v1383 = vpop.f32.mrb[0].mxu0
        %1384 = vdwg.mxu0
        %v1385 = vld [vmem:[#allocation2] sm:$0x3f]
        %v1387 = vsel %vm974, %v1385, 0
        %v1390 = vsel %vm974, %v1034, 0
        %v1393 = vsel %vm974, %v1037, 0
        %v1396 = vsel %vm974, %v1042, 0
        %v1399 = vsel %vm974, %v1045, 0
        %v1402 = vsel %vm974, %v1050, 0
        %v1405 = vsel %vm974, %v1053, 0
        %v1408 = vsel %vm974, %v1058, 0
        %v1411 = vsel %vm974, %v1061, 0
        %v1414 = vsel %vm974, %v1066, 0
        %v1417 = vsel %vm974, %v1069, 0
        %v1420 = vsel %vm974, %v1074, 0
        %v1423 = vsel %vm974, %v1077, 0
        %v1426 = vsel %vm974, %v1082, 0
        %v1429 = vsel %vm974, %v1085, 0
        %v1432 = vsel %vm974, %v1090, 0
        %v1435 = vsel %vm974, %v1093, 0
        %1437 = vmatprep.subr.mxu0 0.0
        %1438 = vmatpush1.xpose.msra.mxu0 %v1390
        %1439 = vmatprep.subr.mxu0 0.0
        %1440 = vmatpush1.xpose.msra.mxu0 %v1393
        %1441 = vmatprep.subr.mxu0 0.0
        %1442 = vmatpush1.xpose.msra.mxu0 %v1396
        %1443 = vmatprep.subr.mxu0 0.0
        %1444 = vmatpush1.xpose.msra.mxu0 %v1399
        %1445 = vmatprep.subr.mxu0 0.0
        %1446 = vmatpush1.xpose.msra.mxu0 %v1402
        %1447 = vmatprep.subr.mxu0 0.0
        %1448 = vmatpush1.xpose.msra.mxu0 %v1405
        %1449 = vmatprep.subr.mxu0 0.0
        %1450 = vmatpush1.xpose.msra.mxu0 %v1408
        %1451 = vmatprep.subr.mxu0 0.0
        %1452 = vmatpush1.xpose.msra.mxu0 %v1411
        %1453 = vmatprep.subr.mxu0 0.0
        %1454 = vmatpush1.xpose.msra.mxu0 %v1414
        %1455 = vmatprep.subr.mxu0 0.0
        %1456 = vmatpush1.xpose.msra.mxu0 %v1417
        %1457 = vmatprep.subr.mxu0 0.0
        %1458 = vmatpush1.xpose.msra.mxu0 %v1420
        %1459 = vmatprep.subr.mxu0 0.0
        %1460 = vmatpush1.xpose.msra.mxu0 %v1423
        %1461 = vmatprep.subr.mxu0 0.0
        %1462 = vmatpush1.xpose.msra.mxu0 %v1426
        %1463 = vmatprep.subr.mxu0 0.0
        %1464 = vmatpush1.xpose.msra.mxu0 %v1429
        %1465 = vmatprep.subr.mxu0 0.0
        %1466 = vmatpush1.xpose.msra.mxu0 %v1432
        %1467 = vmatprep.subr.mxu0 0.0
        %1468 = vmatpush1.xpose.msra.mxu0 %v1435
        %1469 = vmatprep.subr.mxu0 0.0
        %1470 = vmatpush1.xpose.msra.mxu0 0.0
        %1471 = vmatprep.subr.mxu0 0.0
        %1472 = vmatpush1.xpose.msra.mxu0 0.0
        %1473 = vmatprep.subr.mxu0 0.0
        %1474 = vmatpush1.xpose.msra.mxu0 0.0
        %1475 = vmatprep.subr.mxu0 0.0
        %1476 = vmatpush1.xpose.msra.mxu0 0.0
        %1477 = vmatprep.subr.mxu0 0.0
        %1478 = vmatpush1.xpose.msra.mxu0 0.0
        %1479 = vmatprep.subr.mxu0 0.0
        %1480 = vmatpush1.xpose.msra.mxu0 0.0
        %1481 = vmatprep.subr.mxu0 0.0
        %1482 = vmatpush1.xpose.msra.mxu0 0.0
        %1483 = vmatprep.subr.mxu0 0.0
        %1484 = vmatpush1.xpose.msra.mxu0 0.0
        %1485 = vmatprep.subr.mxu0 0.0
        %1486 = vmatpush1.xpose.msra.mxu0 0.0
        %1487 = vmatprep.subr.mxu0 0.0
        %1488 = vmatpush1.xpose.msra.mxu0 0.0
        %1489 = vmatprep.subr.mxu0 0.0
        %1490 = vmatpush1.xpose.msra.mxu0 0.0
        %1491 = vmatprep.subr.mxu0 0.0
        %1492 = vmatpush1.xpose.msra.mxu0 0.0
        %1493 = vmatprep.subr.mxu0 0.0
        %1494 = vmatpush1.xpose.msra.mxu0 0.0
        %1495 = vmatprep.subr.mxu0 0.0
        %1496 = vmatpush1.xpose.msra.mxu0 0.0
        %1497 = vmatprep.subr.mxu0 0.0
        %1498 = vmatpush1.xpose.msra.mxu0 0.0
        %1499 = vmatprep.subr.mxu0 0.0
        %1500 = vmatpush1.xpose.msra.mxu0 0.0
        %1501 = vmatprep.mubr.f32.mxu0 0.0
        %1502 = vmatmul.mubr.f32.gmra.mrb[0].mxu0 %v1387
        %v1503 = vpop.f32.mrb[0].mxu0
        %v1504 = vadd.f32 0.0, %v1503
        %v1505 = vpop.f32.mrb[0].mxu0
        %1506 = vdwg.mxu0
        %v1507 = vmul.f32 %v1504, 0.17677669
        %vm1508 = vcmp.gt.f32.partialorder %v1233, 0.0
        %v1509 = vsel %vm1508, %v1507, -1e+30
        %v1510 = vld [vmem:[#allocation4] sm:$0x3f]
        %vm1511 = vcmask 1045504
        %v1512 = vsel %vm1511, %v1509, -inf
        %1513 = vmax.xlane.f32.xlu0 %v1512
        %v1514 = vpop.xlane.xlu0 %1513
        %v1515 = vmax.f32 %v1510, %v1514
        %v1516 = vsub.f32 %v1510, %v1515
        %v1517 = vmul.f32 %v1516, 1.442695
        %v1518 = vpow.pop %v1517
        %1520 = vset.pattern.permute.xlu0 0
        %1521 = vperm.xlu0 %1520, %v1515
        %v1522 = vpop.permute.xlu0 %1521
        %v1524 = vsub.f32 %v1509, %v1522
        %v1525 = vmul.f32 %v1524, 1.442695
        %v1526 = vpow.pop %v1525
        %v1527 = vsel %vm1508, 1, 0
        %v1528 = vcvt.s32.f32 %v1527
        %v1529 = vmul.f32 %v1526, %v1528
        %v1530 = vld [vmem:[#allocation5] sm:$0x3f]
        %v1531 = vmul.f32 %v1518, %v1530
        %v1532 = vsel %vm1511, %v1529, 0.0
        %1533 = vadd.xlane.f32.xlu0 %v1532
        %v1534 = vpop.xlane.xlu0 %1533
        %v1535 = vadd.f32 %v1531, %v1534
        %vm1536 = vcmask 5120
        %1537 = vst.msk [vmem:[#allocation5] sm:$0x3f] %vm1536, %v1535
        %v1538 = vld [vmem:[#allocation6] sm:$0x3f]
        %1540 = vset.pattern.permute.xlu0 0
        %1541 = vperm.xlu0 %1540, %v1518
        %v1542 = vpop.permute.xlu0 %1541
        %v1544 = vmul.f32 %v1542, %v1538
        %v1545 = vpack.c.bf16 %v1529, %v1529
        %v1562 = vunpack.c.l.b16 %v879
        %v1563 = vunpack.c.l.b16 %v880
        %v1564 = vunpack.c.l.b16 %v881
        %v1565 = vunpack.c.l.b16 %v882
        %v1566 = vunpack.c.l.b16 %v883
        %v1567 = vunpack.c.l.b16 %v884
        %v1568 = vunpack.c.l.b16 %v885
        %v1569 = vunpack.c.l.b16 %v886
        %v1570 = vunpack.c.l.b16 %v887
        %v1571 = vunpack.c.l.b16 %v888
        %v1572 = vunpack.c.l.b16 %v889
        %v1573 = vunpack.c.l.b16 %v890
        %v1574 = vunpack.c.l.b16 %v891
        %v1575 = vunpack.c.l.b16 %v892
        %v1576 = vunpack.c.l.b16 %v893
        %v1577 = vunpack.c.l.b16 %v894
        %v1578 = vpack.c.b16 %v1563, %v1562
        %v1579 = vpack.c.b16 %v1565, %v1564
        %v1580 = vpack.c.b16 %v1567, %v1566
        %v1581 = vpack.c.b16 %v1569, %v1568
        %v1582 = vpack.c.b16 %v1571, %v1570
        %v1583 = vpack.c.b16 %v1573, %v1572
        %v1584 = vpack.c.b16 %v1575, %v1574
        %v1585 = vpack.c.b16 %v1577, %v1576
        %1594 = vmatprep.subr.bf16.mxu0 0
        %1595 = vmatpush1.bf16.msra.mxu0 %v1578
        %1596 = vmatprep.subr.bf16.mxu0 0
        %1597 = vmatpush1.bf16.msra.mxu0 %v1579
        %1598 = vmatprep.subr.bf16.mxu0 0
        %1599 = vmatpush1.bf16.msra.mxu0 %v1580
        %1600 = vmatprep.subr.bf16.mxu0 0
        %1601 = vmatpush1.bf16.msra.mxu0 %v1581
        %1602 = vmatprep.subr.bf16.mxu0 0
        %1603 = vmatpush1.bf16.msra.mxu0 %v1582
        %1604 = vmatprep.subr.bf16.mxu0 0
        %1605 = vmatpush1.bf16.msra.mxu0 %v1583
        %1606 = vmatprep.subr.bf16.mxu0 0
        %1607 = vmatpush1.bf16.msra.mxu0 %v1584
        %1608 = vmatprep.subr.bf16.mxu0 0
        %1609 = vmatpush1.bf16.msra.mxu0 %v1585
        %1610 = vmatprep.subr.bf16.mxu0 0
        %1611 = vmatpush1.bf16.msra.mxu0 0
        %1612 = vmatprep.subr.bf16.mxu0 0
        %1613 = vmatpush1.bf16.msra.mxu0 0
        %1614 = vmatprep.subr.bf16.mxu0 0
        %1615 = vmatpush1.bf16.msra.mxu0 0
        %1616 = vmatprep.subr.bf16.mxu0 0
        %1617 = vmatpush1.bf16.msra.mxu0 0
        %1618 = vmatprep.subr.bf16.mxu0 0
        %1619 = vmatpush1.bf16.msra.mxu0 0
        %1620 = vmatprep.subr.bf16.mxu0 0
        %1621 = vmatpush1.bf16.msra.mxu0 0
        %1622 = vmatprep.subr.bf16.mxu0 0
        %1623 = vmatpush1.bf16.msra.mxu0 0
        %1624 = vmatprep.subr.bf16.mxu0 0
        %1625 = vmatpush1.bf16.msra.mxu0 0
        %1626 = vmatprep.mubr.bf16.mxu0 0
        %1627 = vmatmul.mubr.bf16.gmra.mrb[0].mxu0 %v1545
        %v1628 = vpop.f32.mrb[0].mxu0
        %v1629 = vadd.f32 0.0, %v1628
        %v1630 = vpop.f32.mrb[0].mxu0
        %v1631 = vpop.f32.mrb[0].mxu0
        %v1632 = vpop.f32.mrb[0].mxu0
        %1633 = vdwg.mxu0
        %v1634 = vadd.f32 %v1544, %v1629
        %vm1635 = vcmask 259072
        %1636 = vst.msk [vmem:[#allocation6] sm:$0x3f] %vm1635, %v1634
        %1637 = vst.msk [vmem:[#allocation4] sm:$0x3f] %vm1536, %v1515
        %v1638 = vpack.c.bf16 %v1037, %v1034
        %v1639 = vpack.c.bf16 %v1045, %v1042
        %v1640 = vpack.c.bf16 %v1053, %v1050
        %v1641 = vpack.c.bf16 %v1061, %v1058
        %v1642 = vpack.c.bf16 %v1069, %v1066
        %v1643 = vpack.c.bf16 %v1077, %v1074
        %v1644 = vpack.c.bf16 %v1085, %v1082
        %v1645 = vpack.c.bf16 %v1093, %v1090
        %v1646 = vld [vmem:[#allocation3] sm:$0x7]
        %1655 = vrot.lane.b32.xlu0 %v1638, 96
        %v1656 = vpop.permute.xlu0 %1655
        %1657 = vrot.lane.b32.xlu0 %v1639, 96
        %v1658 = vpop.permute.xlu0 %1657
        %1659 = vrot.lane.b32.xlu0 %v1640, 96
        %v1660 = vpop.permute.xlu0 %1659
        %1661 = vrot.lane.b32.xlu0 %v1641, 96
        %v1662 = vpop.permute.xlu0 %1661
        %1663 = vrot.lane.b32.xlu0 %v1642, 96
        %v1664 = vpop.permute.xlu0 %1663
        %1665 = vrot.lane.b32.xlu0 %v1643, 96
        %v1666 = vpop.permute.xlu0 %1665
        %1667 = vrot.lane.b32.xlu0 %v1644, 96
        %v1668 = vpop.permute.xlu0 %1667
        %1669 = vrot.lane.b32.xlu0 %v1645, 96
        %v1670 = vpop.permute.xlu0 %1669
        %v1672 = vsel %vm974, %v1656, 0
        %v1675 = vsel %vm974, %v1658, 0
        %v1678 = vsel %vm974, %v1660, 0
        %v1681 = vsel %vm974, %v1662, 0
        %v1684 = vsel %vm974, %v1664, 0
        %v1687 = vsel %vm974, %v1666, 0
        %v1690 = vsel %vm974, %v1668, 0
        %v1693 = vsel %vm974, %v1670, 0
        %v1696 = vsel %vm974, %v1646, 0
        %1698 = vmatprep.subr.bf16.mxu0 0
        %1699 = vmatpush1.bf16.xpose.msra.mxu0 %v1696
        %1700 = vmatprep.subr.bf16.mxu0 0
        %1701 = vmatpush1.bf16.xpose.msra.mxu0 0
        %1702 = vmatprep.subr.bf16.mxu0 0
        %1703 = vmatpush1.bf16.xpose.msra.mxu0 0
        %1704 = vmatprep.subr.bf16.mxu0 0
        %1705 = vmatpush1.bf16.xpose.msra.mxu0 0
        %1706 = vmatprep.subr.bf16.mxu0 0
        %1707 = vmatpush1.bf16.xpose.msra.mxu0 0
        %1708 = vmatprep.subr.bf16.mxu0 0
        %1709 = vmatpush1.bf16.xpose.msra.mxu0 0
        %1710 = vmatprep.subr.bf16.mxu0 0
        %1711 = vmatpush1.bf16.xpose.msra.mxu0 0
        %1712 = vmatprep.subr.bf16.mxu0 0
        %1713 = vmatpush1.bf16.xpose.msra.mxu0 0
        %1714 = vmatprep.subr.bf16.mxu0 0
        %1715 = vmatpush1.bf16.xpose.msra.mxu0 0
        %1716 = vmatprep.subr.bf16.mxu0 0
        %1717 = vmatpush1.bf16.xpose.msra.mxu0 0
        %1718 = vmatprep.subr.bf16.mxu0 0
        %1719 = vmatpush1.bf16.xpose.msra.mxu0 0
        %1720 = vmatprep.subr.bf16.mxu0 0
        %1721 = vmatpush1.bf16.xpose.msra.mxu0 0
        %1722 = vmatprep.subr.bf16.mxu0 0
        %1723 = vmatpush1.bf16.xpose.msra.mxu0 0
        %1724 = vmatprep.subr.bf16.mxu0 0
        %1725 = vmatpush1.bf16.xpose.msra.mxu0 0
        %1726 = vmatprep.subr.bf16.mxu0 0
        %1727 = vmatpush1.bf16.xpose.msra.mxu0 0
        %1728 = vmatprep.subr.bf16.mxu0 0
        %1729 = vmatpush1.bf16.xpose.msra.mxu0 0
        %1730 = vmatprep.mubr.bf16.mxu0 0
        %1731 = vmatmul.mubr.bf16.gmra.mrb[0].mxu0 %v1672
        %v1732 = vpop.f32.mrb[0].mxu0
        %v1733 = vadd.f32 0.0, %v1732
        %v1734 = vpop.f32.mrb[0].mxu0
        %v1735 = vpop.f32.mrb[0].mxu0
        %v1736 = vadd.f32 0.0, %v1735
        %v1737 = vpop.f32.mrb[0].mxu0
        %1738 = vmatprep.mubr.bf16.mxu0 0
        %1739 = vmatmul.mubr.bf16.gmra.mrb[0].mxu0 %v1675
        %v1740 = vpop.f32.mrb[0].mxu0
        %v1741 = vadd.f32 0.0, %v1740
        %v1742 = vpop.f32.mrb[0].mxu0
        %v1743 = vpop.f32.mrb[0].mxu0
        %v1744 = vadd.f32 0.0, %v1743
        %v1745 = vpop.f32.mrb[0].mxu0
        %1746 = vmatprep.mubr.bf16.mxu0 0
        %1747 = vmatmul.mubr.bf16.gmra.mrb[0].mxu0 %v1678
        %v1748 = vpop.f32.mrb[0].mxu0
        %v1749 = vadd.f32 0.0, %v1748
        %v1750 = vpop.f32.mrb[0].mxu0
        %v1751 = vpop.f32.mrb[0].mxu0
        %v1752 = vadd.f32 0.0, %v1751
        %v1753 = vpop.f32.mrb[0].mxu0
        %1754 = vmatprep.mubr.bf16.mxu0 0
        %1755 = vmatmul.mubr.bf16.gmra.mrb[0].mxu0 %v1681
        %v1756 = vpop.f32.mrb[0].mxu0
        %v1757 = vadd.f32 0.0, %v1756
        %v1758 = vpop.f32.mrb[0].mxu0
        %v1759 = vpop.f32.mrb[0].mxu0
        %v1760 = vadd.f32 0.0, %v1759
        %v1761 = vpop.f32.mrb[0].mxu0
        %1762 = vmatprep.mubr.bf16.mxu0 0
        %1763 = vmatmul.mubr.bf16.gmra.mrb[0].mxu0 %v1684
        %v1764 = vpop.f32.mrb[0].mxu0
        %v1765 = vadd.f32 0.0, %v1764
        %v1766 = vpop.f32.mrb[0].mxu0
        %v1767 = vpop.f32.mrb[0].mxu0
        %v1768 = vadd.f32 0.0, %v1767
        %v1769 = vpop.f32.mrb[0].mxu0
        %1770 = vmatprep.mubr.bf16.mxu0 0
        %1771 = vmatmul.mubr.bf16.gmra.mrb[0].mxu0 %v1687
        %v1772 = vpop.f32.mrb[0].mxu0
        %v1773 = vadd.f32 0.0, %v1772
        %v1774 = vpop.f32.mrb[0].mxu0
        %v1775 = vpop.f32.mrb[0].mxu0
        %v1776 = vadd.f32 0.0, %v1775
        %v1777 = vpop.f32.mrb[0].mxu0
        %1778 = vmatprep.mubr.bf16.mxu0 0
        %1779 = vmatmul.mubr.bf16.gmra.mrb[0].mxu0 %v1690
        %v1780 = vpop.f32.mrb[0].mxu0
        %v1781 = vadd.f32 0.0, %v1780
        %v1782 = vpop.f32.mrb[0].mxu0
        %v1783 = vpop.f32.mrb[0].mxu0
        %v1784 = vadd.f32 0.0, %v1783
        %v1785 = vpop.f32.mrb[0].mxu0
        %1786 = vmatprep.mubr.bf16.mxu0 0
        %1787 = vmatmul.mubr.bf16.gmra.mrb[0].mxu0 %v1693
        %v1788 = vpop.f32.mrb[0].mxu0
        %v1789 = vadd.f32 0.0, %v1788
        %v1790 = vpop.f32.mrb[0].mxu0
        %v1791 = vpop.f32.mrb[0].mxu0
        %v1792 = vadd.f32 0.0, %v1791
        %v1793 = vpop.f32.mrb[0].mxu0
        %1794 = vdwg.mxu0
        %v1795 = vmul.f32 %v1733, 0.17677669
        %v1796 = vmul.f32 %v1736, 0.17677669
        %v1797 = vmul.f32 %v1741, 0.17677669
        %v1798 = vmul.f32 %v1744, 0.17677669
        %v1799 = vmul.f32 %v1749, 0.17677669
        %v1800 = vmul.f32 %v1752, 0.17677669
        %v1801 = vmul.f32 %v1757, 0.17677669
        %v1802 = vmul.f32 %v1760, 0.17677669
        %v1803 = vmul.f32 %v1765, 0.17677669
        %v1804 = vmul.f32 %v1768, 0.17677669
        %v1805 = vmul.f32 %v1773, 0.17677669
        %v1806 = vmul.f32 %v1776, 0.17677669
        %v1807 = vmul.f32 %v1781, 0.17677669
        %v1808 = vmul.f32 %v1784, 0.17677669
        %v1809 = vmul.f32 %v1789, 0.17677669
        %v1810 = vmul.f32 %v1792, 0.17677669
        %vm1811 = vcmp.gt.f32.partialorder %v1307, 0.0
        %vm1812 = vcmp.gt.f32.partialorder %v1312, 0.0
        %vm1813 = vcmp.gt.f32.partialorder %v1317, 0.0
        %vm1814 = vcmp.gt.f32.partialorder %v1322, 0.0
        %vm1815 = vcmp.gt.f32.partialorder %v1327, 0.0
        %vm1816 = vcmp.gt.f32.partialorder %v1332, 0.0
        %vm1817 = vcmp.gt.f32.partialorder %v1337, 0.0
        %vm1818 = vcmp.gt.f32.partialorder %v1342, 0.0
        %vm1819 = vcmp.gt.f32.partialorder %v1347, 0.0
        %vm1820 = vcmp.gt.f32.partialorder %v1352, 0.0
        %vm1821 = vcmp.gt.f32.partialorder %v1357, 0.0
        %vm1822 = vcmp.gt.f32.partialorder %v1362, 0.0
        %vm1823 = vcmp.gt.f32.partialorder %v1367, 0.0
        %vm1824 = vcmp.gt.f32.partialorder %v1372, 0.0
        %vm1825 = vcmp.gt.f32.partialorder %v1377, 0.0
        %vm1826 = vcmp.gt.f32.partialorder %v1382, 0.0
        %v1827 = vsel %vm1811, %v1795, -1e+30
        %v1828 = vsel %vm1812, %v1796, -1e+30
        %v1829 = vsel %vm1813, %v1797, -1e+30
        %v1830 = vsel %vm1814, %v1798, -1e+30
        %v1831 = vsel %vm1815, %v1799, -1e+30
        %v1832 = vsel %vm1816, %v1800, -1e+30
        %v1833 = vsel %vm1817, %v1801, -1e+30
        %v1834 = vsel %vm1818, %v1802, -1e+30
        %v1835 = vsel %vm1819, %v1803, -1e+30
        %v1836 = vsel %vm1820, %v1804, -1e+30
        %v1837 = vsel %vm1821, %v1805, -1e+30
        %v1838 = vsel %vm1822, %v1806, -1e+30
        %v1839 = vsel %vm1823, %v1807, -1e+30
        %v1840 = vsel %vm1824, %v1808, -1e+30
        %v1841 = vsel %vm1825, %v1809, -1e+30
        %v1842 = vsel %vm1826, %v1810, -1e+30
        %vm1843 = vcmask 48128
        %v1844 = vsel %vm1843, %v1827, -inf
        %1845 = vmax.xlane.f32.xlu0 %v1844
        %v1846 = vpop.xlane.xlu0 %1845
        %v1847 = vsel %vm1843, %v1828, -inf
        %1848 = vmax.xlane.f32.xlu0 %v1847
        %v1849 = vpop.xlane.xlu0 %1848
        %v1850 = vsel %vm1843, %v1829, -inf
        %1851 = vmax.xlane.f32.xlu0 %v1850
        %v1852 = vpop.xlane.xlu0 %1851
        %v1853 = vsel %vm1843, %v1830, -inf
        %1854 = vmax.xlane.f32.xlu0 %v1853
        %v1855 = vpop.xlane.xlu0 %1854
        %v1856 = vsel %vm1843, %v1831, -inf
        %1857 = vmax.xlane.f32.xlu0 %v1856
        %v1858 = vpop.xlane.xlu0 %1857
        %v1859 = vsel %vm1843, %v1832, -inf
        %1860 = vmax.xlane.f32.xlu0 %v1859
        %v1861 = vpop.xlane.xlu0 %1860
        %v1862 = vsel %vm1843, %v1833, -inf
        %1863 = vmax.xlane.f32.xlu0 %v1862
        %v1864 = vpop.xlane.xlu0 %1863
        %v1865 = vsel %vm1843, %v1834, -inf
        %1866 = vmax.xlane.f32.xlu0 %v1865
        %v1867 = vpop.xlane.xlu0 %1866
        %v1868 = vsel %vm1843, %v1835, -inf
        %1869 = vmax.xlane.f32.xlu0 %v1868
        %v1870 = vpop.xlane.xlu0 %1869
        %v1871 = vsel %vm1843, %v1836, -inf
        %1872 = vmax.xlane.f32.xlu0 %v1871
        %v1873 = vpop.xlane.xlu0 %1872
        %v1874 = vsel %vm1843, %v1837, -inf
        %1875 = vmax.xlane.f32.xlu0 %v1874
        %v1876 = vpop.xlane.xlu0 %1875
        %v1877 = vsel %vm1843, %v1838, -inf
        %1878 = vmax.xlane.f32.xlu0 %v1877
        %v1879 = vpop.xlane.xlu0 %1878
        %v1880 = vsel %vm1843, %v1839, -inf
        %1881 = vmax.xlane.f32.xlu0 %v1880
        %v1882 = vpop.xlane.xlu0 %1881
        %v1883 = vsel %vm1843, %v1840, -inf
        %1884 = vmax.xlane.f32.xlu0 %v1883
        %v1885 = vpop.xlane.xlu0 %1884
        %v1886 = vsel %vm1843, %v1841, -inf
        %1887 = vmax.xlane.f32.xlu0 %v1886
        %v1888 = vpop.xlane.xlu0 %1887
        %v1889 = vsel %vm1843, %v1842, -inf
        %1890 = vmax.xlane.f32.xlu0 %v1889
        %v1891 = vpop.xlane.xlu0 %1890
        %v1892 = vsub.f32 %v1827, %v1846
        %v1893 = vsub.f32 %v1828, %v1849
        %v1894 = vsub.f32 %v1829, %v1852
        %v1895 = vsub.f32 %v1830, %v1855
        %v1896 = vsub.f32 %v1831, %v1858
        %v1897 = vsub.f32 %v1832, %v1861
        %v1898 = vsub.f32 %v1833, %v1864
        %v1899 = vsub.f32 %v1834, %v1867
        %v1900 = vsub.f32 %v1835, %v1870
        %v1901 = vsub.f32 %v1836, %v1873
        %v1902 = vsub.f32 %v1837, %v1876
        %v1903 = vsub.f32 %v1838, %v1879
        %v1904 = vsub.f32 %v1839, %v1882
        %v1905 = vsub.f32 %v1840, %v1885
        %v1906 = vsub.f32 %v1841, %v1888
        %v1907 = vsub.f32 %v1842, %v1891
        %v1908 = vmul.f32 %v1892, 1.442695
        %v1909 = vpow.pop %v1908
        %v1910 = vmul.f32 %v1893, 1.442695
        %v1911 = vpow.pop %v1910
        %v1912 = vmul.f32 %v1894, 1.442695
        %v1913 = vpow.pop %v1912
        %v1914 = vmul.f32 %v1895, 1.442695
        %v1915 = vpow.pop %v1914
        %v1916 = vmul.f32 %v1896, 1.442695
        %v1917 = vpow.pop %v1916
        %v1918 = vmul.f32 %v1897, 1.442695
        %v1919 = vpow.pop %v1918
        %v1920 = vmul.f32 %v1898, 1.442695
        %v1921 = vpow.pop %v1920
        %v1922 = vmul.f32 %v1899, 1.442695
        %v1923 = vpow.pop %v1922
        %v1924 = vmul.f32 %v1900, 1.442695
        %v1925 = vpow.pop %v1924
        %v1926 = vmul.f32 %v1901, 1.442695
        %v1927 = vpow.pop %v1926
        %v1928 = vmul.f32 %v1902, 1.442695
        %v1929 = vpow.pop %v1928
        %v1930 = vmul.f32 %v1903, 1.442695
        %v1931 = vpow.pop %v1930
        %v1932 = vmul.f32 %v1904, 1.442695
        %v1933 = vpow.pop %v1932
        %v1934 = vmul.f32 %v1905, 1.442695
        %v1935 = vpow.pop %v1934
        %v1936 = vmul.f32 %v1906, 1.442695
        %v1937 = vpow.pop %v1936
        %v1938 = vmul.f32 %v1907, 1.442695
        %v1939 = vpow.pop %v1938
        %v1940 = vsel %vm1843, %v1909, 0.0
        %1941 = vadd.xlane.f32.xlu0 %v1940
        %v1942 = vpop.xlane.xlu0 %1941
        %v1943 = vsel %vm1843, %v1911, 0.0
        %1944 = vadd.xlane.f32.xlu0 %v1943
        %v1945 = vpop.xlane.xlu0 %1944
        %v1946 = vsel %vm1843, %v1913, 0.0
        %1947 = vadd.xlane.f32.xlu0 %v1946
        %v1948 = vpop.xlane.xlu0 %1947
        %v1949 = vsel %vm1843, %v1915, 0.0
        %1950 = vadd.xlane.f32.xlu0 %v1949
        %v1951 = vpop.xlane.xlu0 %1950
        %v1952 = vsel %vm1843, %v1917, 0.0
        %1953 = vadd.xlane.f32.xlu0 %v1952
        %v1954 = vpop.xlane.xlu0 %1953
        %v1955 = vsel %vm1843, %v1919, 0.0
        %1956 = vadd.xlane.f32.xlu0 %v1955
        %v1957 = vpop.xlane.xlu0 %1956
        %v1958 = vsel %vm1843, %v1921, 0.0
        %1959 = vadd.xlane.f32.xlu0 %v1958
        %v1960 = vpop.xlane.xlu0 %1959
        %v1961 = vsel %vm1843, %v1923, 0.0
        %1962 = vadd.xlane.f32.xlu0 %v1961
        %v1963 = vpop.xlane.xlu0 %1962
        %v1964 = vsel %vm1843, %v1925, 0.0
        %1965 = vadd.xlane.f32.xlu0 %v1964
        %v1966 = vpop.xlane.xlu0 %1965
        %v1967 = vsel %vm1843, %v1927, 0.0
        %1968 = vadd.xlane.f32.xlu0 %v1967
        %v1969 = vpop.xlane.xlu0 %1968
        %v1970 = vsel %vm1843, %v1929, 0.0
        %1971 = vadd.xlane.f32.xlu0 %v1970
        %v1972 = vpop.xlane.xlu0 %1971
        %v1973 = vsel %vm1843, %v1931, 0.0
        %1974 = vadd.xlane.f32.xlu0 %v1973
        %v1975 = vpop.xlane.xlu0 %1974
        %v1976 = vsel %vm1843, %v1933, 0.0
        %1977 = vadd.xlane.f32.xlu0 %v1976
        %v1978 = vpop.xlane.xlu0 %1977
        %v1979 = vsel %vm1843, %v1935, 0.0
        %1980 = vadd.xlane.f32.xlu0 %v1979
        %v1981 = vpop.xlane.xlu0 %1980
        %v1982 = vsel %vm1843, %v1937, 0.0
        %1983 = vadd.xlane.f32.xlu0 %v1982
        %v1984 = vpop.xlane.xlu0 %1983
        %v1985 = vsel %vm1843, %v1939, 0.0
        %1986 = vadd.xlane.f32.xlu0 %v1985
        %v1987 = vpop.xlane.xlu0 %1986
        %v1988 = vadd.f32 %v1942, 1e-12
        %v1989 = vadd.f32 %v1945, 1e-12
        %v1990 = vadd.f32 %v1948, 1e-12
        %v1991 = vadd.f32 %v1951, 1e-12
        %v1992 = vadd.f32 %v1954, 1e-12
        %v1993 = vadd.f32 %v1957, 1e-12
        %v1994 = vadd.f32 %v1960, 1e-12
        %v1995 = vadd.f32 %v1963, 1e-12
        %v1996 = vadd.f32 %v1966, 1e-12
        %v1997 = vadd.f32 %v1969, 1e-12
        %v1998 = vadd.f32 %v1972, 1e-12
        %v1999 = vadd.f32 %v1975, 1e-12
        %v2000 = vadd.f32 %v1978, 1e-12
        %v2001 = vadd.f32 %v1981, 1e-12
        %v2002 = vadd.f32 %v1984, 1e-12
        %v2003 = vadd.f32 %v1987, 1e-12
        %v2004 = vrcp.pop %v1988
        %v2005 = vrcp.pop %v1989
        %v2006 = vrcp.pop %v1990
        %v2007 = vrcp.pop %v1991
        %v2008 = vrcp.pop %v1992
        %v2009 = vrcp.pop %v1993
        %v2010 = vrcp.pop %v1994
        %v2011 = vrcp.pop %v1995
        %v2012 = vrcp.pop %v1996
        %v2013 = vrcp.pop %v1997
        %v2014 = vrcp.pop %v1998
        %v2015 = vrcp.pop %v1999
        %v2016 = vrcp.pop %v2000
        %v2017 = vrcp.pop %v2001
        %v2018 = vrcp.pop %v2002
        %v2019 = vrcp.pop %v2003
        %v2020 = vmul.f32 %v1909, %v2004
        %v2021 = vmul.f32 %v1911, %v2005
        %v2022 = vmul.f32 %v1913, %v2006
        %v2023 = vmul.f32 %v1915, %v2007
        %v2024 = vmul.f32 %v1917, %v2008
        %v2025 = vmul.f32 %v1919, %v2009
        %v2026 = vmul.f32 %v1921, %v2010
        %v2027 = vmul.f32 %v1923, %v2011
        %v2028 = vmul.f32 %v1925, %v2012
        %v2029 = vmul.f32 %v1927, %v2013
        %v2030 = vmul.f32 %v1929, %v2014
        %v2031 = vmul.f32 %v1931, %v2015
        %v2032 = vmul.f32 %v1933, %v2016
        %v2033 = vmul.f32 %v1935, %v2017
        %v2034 = vmul.f32 %v1937, %v2018
        %v2035 = vmul.f32 %v1939, %v2019
        %v2036 = vpack.c.bf16 %v2021, %v2020
        %v2037 = vpack.c.bf16 %v2023, %v2022
        %v2038 = vpack.c.bf16 %v2025, %v2024
        %v2039 = vpack.c.bf16 %v2027, %v2026
        %v2040 = vpack.c.bf16 %v2029, %v2028
        %v2041 = vpack.c.bf16 %v2031, %v2030
        %v2042 = vpack.c.bf16 %v2033, %v2032
        %v2043 = vpack.c.bf16 %v2035, %v2034
        %v2044 = vpack.c.bf16 %v557, %v557
        %v2046 = vsel %vm1843, %v2036, 0
        %v2049 = vsel %vm1843, %v2037, 0
        %v2052 = vsel %vm1843, %v2038, 0
        %v2055 = vsel %vm1843, %v2039, 0
        %v2058 = vsel %vm1843, %v2040, 0
        %v2061 = vsel %vm1843, %v2041, 0
        %v2064 = vsel %vm1843, %v2042, 0
        %v2067 = vsel %vm1843, %v2043, 0
        %vm2069 = vcmask 1042432
        %v2071 = vsel %vm2069, %v2044, 0
        %2073 = vmatprep.subr.bf16.mxu0 0
        %2074 = vmatpush1.bf16.msra.mxu0 %v2071
        %2075 = vmatprep.subr.bf16.mxu0 0
        %2076 = vmatpush1.bf16.msra.mxu0 0
        %2077 = vmatprep.subr.bf16.mxu0 0
        %2078 = vmatpush1.bf16.msra.mxu0 0
        %2079 = vmatprep.subr.bf16.mxu0 0
        %2080 = vmatpush1.bf16.msra.mxu0 0
        %2081 = vmatprep.subr.bf16.mxu0 0
        %2082 = vmatpush1.bf16.msra.mxu0 0
        %2083 = vmatprep.subr.bf16.mxu0 0
        %2084 = vmatpush1.bf16.msra.mxu0 0
        %2085 = vmatprep.subr.bf16.mxu0 0
        %2086 = vmatpush1.bf16.msra.mxu0 0
        %2087 = vmatprep.subr.bf16.mxu0 0
        %2088 = vmatpush1.bf16.msra.mxu0 0
        %2089 = vmatprep.subr.bf16.mxu0 0
        %2090 = vmatpush1.bf16.msra.mxu0 0
        %2091 = vmatprep.subr.bf16.mxu0 0
        %2092 = vmatpush1.bf16.msra.mxu0 0
        %2093 = vmatprep.subr.bf16.mxu0 0
        %2094 = vmatpush1.bf16.msra.mxu0 0
        %2095 = vmatprep.subr.bf16.mxu0 0
        %2096 = vmatpush1.bf16.msra.mxu0 0
        %2097 = vmatprep.subr.bf16.mxu0 0
        %2098 = vmatpush1.bf16.msra.mxu0 0
        %2099 = vmatprep.subr.bf16.mxu0 0
        %2100 = vmatpush1.bf16.msra.mxu0 0
        %2101 = vmatprep.subr.bf16.mxu0 0
        %2102 = vmatpush1.bf16.msra.mxu0 0
        %2103 = vmatprep.subr.bf16.mxu0 0
        %2104 = vmatpush1.bf16.msra.mxu0 0
        %2105 = vmatprep.mubr.bf16.mxu0 0
        %2106 = vmatmul.mubr.bf16.gmra.mrb[0].mxu0 %v2046
        %v2107 = vpop.f32.mrb[0].mxu0
        %v2108 = vadd.f32 0.0, %v2107
        %v2109 = vpop.f32.mrb[0].mxu0
        %v2110 = vpop.f32.mrb[0].mxu0
        %v2111 = vadd.f32 0.0, %v2110
        %v2112 = vpop.f32.mrb[0].mxu0
        %2113 = vmatprep.mubr.bf16.mxu0 0
        %2114 = vmatmul.mubr.bf16.gmra.mrb[0].mxu0 %v2049
        %v2115 = vpop.f32.mrb[0].mxu0
        %v2116 = vadd.f32 0.0, %v2115
        %v2117 = vpop.f32.mrb[0].mxu0
        %v2118 = vpop.f32.mrb[0].mxu0
        %v2119 = vadd.f32 0.0, %v2118
        %v2120 = vpop.f32.mrb[0].mxu0
        %2121 = vmatprep.mubr.bf16.mxu0 0
        %2122 = vmatmul.mubr.bf16.gmra.mrb[0].mxu0 %v2052
        %v2123 = vpop.f32.mrb[0].mxu0
        %v2124 = vadd.f32 0.0, %v2123
        %v2125 = vpop.f32.mrb[0].mxu0
        %v2126 = vpop.f32.mrb[0].mxu0
        %v2127 = vadd.f32 0.0, %v2126
        %v2128 = vpop.f32.mrb[0].mxu0
        %2129 = vmatprep.mubr.bf16.mxu0 0
        %2130 = vmatmul.mubr.bf16.gmra.mrb[0].mxu0 %v2055
        %v2131 = vpop.f32.mrb[0].mxu0
        %v2132 = vadd.f32 0.0, %v2131
        %v2133 = vpop.f32.mrb[0].mxu0
        %v2134 = vpop.f32.mrb[0].mxu0
        %v2135 = vadd.f32 0.0, %v2134
        %v2136 = vpop.f32.mrb[0].mxu0
        %2137 = vmatprep.mubr.bf16.mxu0 0
        %2138 = vmatmul.mubr.bf16.gmra.mrb[0].mxu0 %v2058
        %v2139 = vpop.f32.mrb[0].mxu0
        %v2140 = vadd.f32 0.0, %v2139
        %v2141 = vpop.f32.mrb[0].mxu0
        %v2142 = vpop.f32.mrb[0].mxu0
        %v2143 = vadd.f32 0.0, %v2142
        %v2144 = vpop.f32.mrb[0].mxu0
        %2145 = vmatprep.mubr.bf16.mxu0 0
        %2146 = vmatmul.mubr.bf16.gmra.mrb[0].mxu0 %v2061
        %v2147 = vpop.f32.mrb[0].mxu0
        %v2148 = vadd.f32 0.0, %v2147
        %v2149 = vpop.f32.mrb[0].mxu0
        %v2150 = vpop.f32.mrb[0].mxu0
        %v2151 = vadd.f32 0.0, %v2150
        %v2152 = vpop.f32.mrb[0].mxu0
        %2153 = vmatprep.mubr.bf16.mxu0 0
        %2154 = vmatmul.mubr.bf16.gmra.mrb[0].mxu0 %v2064
        %v2155 = vpop.f32.mrb[0].mxu0
        %v2156 = vadd.f32 0.0, %v2155
        %v2157 = vpop.f32.mrb[0].mxu0
        %v2158 = vpop.f32.mrb[0].mxu0
        %v2159 = vadd.f32 0.0, %v2158
        %v2160 = vpop.f32.mrb[0].mxu0
        %2161 = vmatprep.mubr.bf16.mxu0 0
        %2162 = vmatmul.mubr.bf16.gmra.mrb[0].mxu0 %v2067
        %v2163 = vpop.f32.mrb[0].mxu0
        %v2164 = vadd.f32 0.0, %v2163
        %v2165 = vpop.f32.mrb[0].mxu0
        %v2166 = vpop.f32.mrb[0].mxu0
        %v2167 = vadd.f32 0.0, %v2166
        %v2168 = vpop.f32.mrb[0].mxu0
        %2169 = vdwg.mxu0
        %v2170 = vmax.f32 %v2108, 0.0
        %v2171 = vmax.f32 %v2111, 0.0
        %v2172 = vmax.f32 %v2116, 0.0
        %v2173 = vmax.f32 %v2119, 0.0
        %v2174 = vmax.f32 %v2124, 0.0
        %v2175 = vmax.f32 %v2127, 0.0
        %v2176 = vmax.f32 %v2132, 0.0
        %v2177 = vmax.f32 %v2135, 0.0
        %v2178 = vmax.f32 %v2140, 0.0
        %v2179 = vmax.f32 %v2143, 0.0
        %v2180 = vmax.f32 %v2148, 0.0
        %v2181 = vmax.f32 %v2151, 0.0
        %v2182 = vmax.f32 %v2156, 0.0
        %v2183 = vmax.f32 %v2159, 0.0
        %v2184 = vmax.f32 %v2164, 0.0
        %v2185 = vmax.f32 %v2167, 0.0
        %v2186 = vpack.c.bf16 %v2171, %v2170
        %v2187 = vpack.c.bf16 %v2173, %v2172
        %v2188 = vpack.c.bf16 %v2175, %v2174
        %v2189 = vpack.c.bf16 %v2177, %v2176
        %v2190 = vpack.c.bf16 %v2179, %v2178
        %v2191 = vpack.c.bf16 %v2181, %v2180
        %v2192 = vpack.c.bf16 %v2183, %v2182
        %v2193 = vpack.c.bf16 %v2185, %v2184
        %v2194 = vld [vmem:[%s11] sm:$0xf]
        %v2195 = vld [vmem:[%s11 + $0x4] sm:$0xf]
        %v2196 = vld [vmem:[%s11 + $0x8] sm:$0xf]
        %v2197 = vld [vmem:[%s11 + $0xc] sm:$0xf]
        %v2198 = vld [vmem:[%s12] sm:$0x1]
        %v2200 = vlaneseq
        %v2201 = vshrl.u32 %v2200, 7
        %v2202 = vsub.s32 0, %v2201
        %v2203 = vrot.slane %v2198, %v2202
        %v2209 = vunpack.c.l.b16 %v2194
        %v2210 = vunpack.c.l.b16 %v2195
        %v2211 = vunpack.c.l.b16 %v2196
        %v2212 = vunpack.c.l.b16 %v2197
        %v2213 = vpack.c.b16 %v2210, %v2209
        %v2214 = vpack.c.b16 %v2212, %v2211
        %v2218 = vsel %vm974, %v2186, 0
        %v2221 = vsel %vm974, %v2187, 0
        %v2224 = vsel %vm974, %v2188, 0
        %v2227 = vsel %vm974, %v2189, 0
        %v2230 = vsel %vm974, %v2190, 0
        %v2233 = vsel %vm974, %v2191, 0
        %v2236 = vsel %vm974, %v2192, 0
        %v2239 = vsel %vm974, %v2193, 0
        %2241 = vmatprep.subr.bf16.mxu0 0
        %2242 = vmatpush1.bf16.msra.mxu0 %v2213
        %2243 = vmatprep.subr.bf16.mxu0 0
        %2244 = vmatpush1.bf16.msra.mxu0 %v2214
        %2245 = vmatprep.subr.bf16.mxu0 0
        %2246 = vmatpush1.bf16.msra.mxu0 0
        %2247 = vmatprep.subr.bf16.mxu0 0
        %2248 = vmatpush1.bf16.msra.mxu0 0
        %2249 = vmatprep.subr.bf16.mxu0 0
        %2250 = vmatpush1.bf16.msra.mxu0 0
        %2251 = vmatprep.subr.bf16.mxu0 0
        %2252 = vmatpush1.bf16.msra.mxu0 0
        %2253 = vmatprep.subr.bf16.mxu0 0
        %2254 = vmatpush1.bf16.msra.mxu0 0
        %2255 = vmatprep.subr.bf16.mxu0 0
        %2256 = vmatpush1.bf16.msra.mxu0 0
        %2257 = vmatprep.subr.bf16.mxu0 0
        %2258 = vmatpush1.bf16.msra.mxu0 0
        %2259 = vmatprep.subr.bf16.mxu0 0
        %2260 = vmatpush1.bf16.msra.mxu0 0
        %2261 = vmatprep.subr.bf16.mxu0 0
        %2262 = vmatpush1.bf16.msra.mxu0 0
        %2263 = vmatprep.subr.bf16.mxu0 0
        %2264 = vmatpush1.bf16.msra.mxu0 0
        %2265 = vmatprep.subr.bf16.mxu0 0
        %2266 = vmatpush1.bf16.msra.mxu0 0
        %2267 = vmatprep.subr.bf16.mxu0 0
        %2268 = vmatpush1.bf16.msra.mxu0 0
        %2269 = vmatprep.subr.bf16.mxu0 0
        %2270 = vmatpush1.bf16.msra.mxu0 0
        %2271 = vmatprep.subr.bf16.mxu0 0
        %2272 = vmatpush1.bf16.msra.mxu0 0
        %2273 = vmatprep.mubr.bf16.mxu0 0
        %2274 = vmatmul.mubr.bf16.gmra.mrb[0].mxu0 %v2218
        %v2275 = vpop.f32.mrb[0].mxu0
        %v2276 = vadd.f32 %v2203, %v2275
        %v2277 = vpop.f32.mrb[0].mxu0
        %v2278 = vpop.f32.mrb[0].mxu0
        %v2279 = vadd.f32 %v2203, %v2278
        %v2280 = vpop.f32.mrb[0].mxu0
        %2281 = vmatprep.mubr.bf16.mxu0 0
        %2282 = vmatmul.mubr.bf16.gmra.mrb[0].mxu0 %v2221
        %v2283 = vpop.f32.mrb[0].mxu0
        %v2284 = vadd.f32 %v2203, %v2283
        %v2285 = vpop.f32.mrb[0].mxu0
        %v2286 = vpop.f32.mrb[0].mxu0
        %v2287 = vadd.f32 %v2203, %v2286
        %v2288 = vpop.f32.mrb[0].mxu0
        %2289 = vmatprep.mubr.bf16.mxu0 0
        %2290 = vmatmul.mubr.bf16.gmra.mrb[0].mxu0 %v2224
        %v2291 = vpop.f32.mrb[0].mxu0
        %v2292 = vadd.f32 %v2203, %v2291
        %v2293 = vpop.f32.mrb[0].mxu0
        %v2294 = vpop.f32.mrb[0].mxu0
        %v2295 = vadd.f32 %v2203, %v2294
        %v2296 = vpop.f32.mrb[0].mxu0
        %2297 = vmatprep.mubr.bf16.mxu0 0
        %2298 = vmatmul.mubr.bf16.gmra.mrb[0].mxu0 %v2227
        %v2299 = vpop.f32.mrb[0].mxu0
        %v2300 = vadd.f32 %v2203, %v2299
        %v2301 = vpop.f32.mrb[0].mxu0
        %v2302 = vpop.f32.mrb[0].mxu0
        %v2303 = vadd.f32 %v2203, %v2302
        %v2304 = vpop.f32.mrb[0].mxu0
        %2305 = vmatprep.mubr.bf16.mxu0 0
        %2306 = vmatmul.mubr.bf16.gmra.mrb[0].mxu0 %v2230
        %v2307 = vpop.f32.mrb[0].mxu0
        %v2308 = vadd.f32 %v2203, %v2307
        %v2309 = vpop.f32.mrb[0].mxu0
        %v2310 = vpop.f32.mrb[0].mxu0
        %v2311 = vadd.f32 %v2203, %v2310
        %v2312 = vpop.f32.mrb[0].mxu0
        %2313 = vmatprep.mubr.bf16.mxu0 0
        %2314 = vmatmul.mubr.bf16.gmra.mrb[0].mxu0 %v2233
        %v2315 = vpop.f32.mrb[0].mxu0
        %v2316 = vadd.f32 %v2203, %v2315
        %v2317 = vpop.f32.mrb[0].mxu0
        %v2318 = vpop.f32.mrb[0].mxu0
        %v2319 = vadd.f32 %v2203, %v2318
        %v2320 = vpop.f32.mrb[0].mxu0
        %2321 = vmatprep.mubr.bf16.mxu0 0
        %2322 = vmatmul.mubr.bf16.gmra.mrb[0].mxu0 %v2236
        %v2323 = vpop.f32.mrb[0].mxu0
        %v2324 = vadd.f32 %v2203, %v2323
        %v2325 = vpop.f32.mrb[0].mxu0
        %v2326 = vpop.f32.mrb[0].mxu0
        %v2327 = vadd.f32 %v2203, %v2326
        %v2328 = vpop.f32.mrb[0].mxu0
        %2329 = vmatprep.mubr.bf16.mxu0 0
        %2330 = vmatmul.mubr.bf16.gmra.mrb[0].mxu0 %v2239
        %v2331 = vpop.f32.mrb[0].mxu0
        %v2332 = vadd.f32 %v2203, %v2331
        %v2333 = vpop.f32.mrb[0].mxu0
        %v2334 = vpop.f32.mrb[0].mxu0
        %v2335 = vadd.f32 %v2203, %v2334
        %v2336 = vpop.f32.mrb[0].mxu0
        %2337 = vdwg.mxu0
        %v2338 = vunpack.c.l.bf16 %v879
        %v2339 = vunpack.c.l.bf16 %v880
        %v2340 = vunpack.c.l.bf16 %v881
        %v2341 = vunpack.c.l.bf16 %v882
        %v2342 = vunpack.c.l.bf16 %v883
        %v2343 = vunpack.c.l.bf16 %v884
        %v2344 = vunpack.c.l.bf16 %v885
        %v2345 = vunpack.c.l.bf16 %v886
        %v2346 = vunpack.c.l.bf16 %v887
        %v2347 = vunpack.c.l.bf16 %v888
        %v2348 = vunpack.c.l.bf16 %v889
        %v2349 = vunpack.c.l.bf16 %v890
        %v2350 = vunpack.c.l.bf16 %v891
        %v2351 = vunpack.c.l.bf16 %v892
        %v2352 = vunpack.c.l.bf16 %v893
        %v2353 = vunpack.c.l.bf16 %v894
        %v2354 = vadd.f32 %v2338, %v2276
        %v2355 = vadd.f32 %v2339, %v2279
        %v2356 = vadd.f32 %v2340, %v2284
        %v2357 = vadd.f32 %v2341, %v2287
        %v2358 = vadd.f32 %v2342, %v2292
        %v2359 = vadd.f32 %v2343, %v2295
        %v2360 = vadd.f32 %v2344, %v2300
        %v2361 = vadd.f32 %v2345, %v2303
        %v2362 = vadd.f32 %v2346, %v2308
        %v2363 = vadd.f32 %v2347, %v2311
        %v2364 = vadd.f32 %v2348, %v2316
        %v2365 = vadd.f32 %v2349, %v2319
        %v2366 = vadd.f32 %v2350, %v2324
        %v2367 = vadd.f32 %v2351, %v2327
        %v2368 = vadd.f32 %v2352, %v2332
        %v2369 = vadd.f32 %v2353, %v2335
        %2370 = vst.msk [vmem:[%s540] sm:$0xff] %vm974, %v2354
        %2371 = vst.msk [vmem:[%s540 + $0x8] sm:$0xff] %vm974, %v2355
        %2372 = vst.msk [vmem:[%s540 + $0x10] sm:$0xff] %vm974, %v2356
        %2373 = vst.msk [vmem:[%s540 + $0x18] sm:$0xff] %vm974, %v2357
        %2374 = vst.msk [vmem:[%s540 + $0x20] sm:$0xff] %vm974, %v2358
        %2375 = vst.msk [vmem:[%s540 + $0x28] sm:$0xff] %vm974, %v2359
        %2376 = vst.msk [vmem:[%s540 + $0x30] sm:$0xff] %vm974, %v2360
        %2377 = vst.msk [vmem:[%s540 + $0x38] sm:$0xff] %vm974, %v2361
        %2378 = vst.msk [vmem:[%s540 + $0x40] sm:$0xff] %vm974, %v2362
        %2379 = vst.msk [vmem:[%s540 + $0x48] sm:$0xff] %vm974, %v2363
        %2380 = vst.msk [vmem:[%s540 + $0x50] sm:$0xff] %vm974, %v2364
        %2381 = vst.msk [vmem:[%s540 + $0x58] sm:$0xff] %vm974, %v2365
        %2382 = vst.msk [vmem:[%s540 + $0x60] sm:$0xff] %vm974, %v2366
        %2383 = vst.msk [vmem:[%s540 + $0x68] sm:$0xff] %vm974, %v2367
        %2384 = vst.msk [vmem:[%s540 + $0x70] sm:$0xff] %vm974, %v2368
        %2385 = vst.msk [vmem:[%s540 + $0x78] sm:$0xff] %vm974, %v2369
        %p2386 = scmp.eq.s32.totalorder %s32, 1
        // Predicated region
        $region85: #{_lambda_.1} parent=79 // pred_check
          %p2387 = pneg %p2386
        $region86: #{_lambda_.1} parent=79 // pred_check_branch
          %2389 = sbr.rel (%p2387) target = $region88
        $region87: #{_lambda_.1} parent=79 // pred_region
          %v2390 = vld [vmem:[#allocation6] sm:$0x3f]
          %v2391 = vld [vmem:[#allocation5] sm:$0x3f]
          %v2392 = vadd.f32 %v2391, 1e-12
          %v2393 = vrcp.pop %v2392
          %2395 = vset.pattern.permute.xlu0 0
          %2396 = vperm.xlu0 %2395, %v2393
          %v2397 = vpop.permute.xlu0 %2396
          %v2399 = vmul.f32 %v2390, %v2397
          %v2400 = vmax.f32 %v2399, 0.0
          %v2401 = vpack.c.bf16 %v2400, %v2400
          %v2402 = vld [vmem:[%s9] sm:$0xf]
          %v2403 = vld [vmem:[%s9 + $0x4] sm:$0xf]
          %v2404 = vld [vmem:[%s9 + $0x8] sm:$0xf]
          %v2405 = vld [vmem:[%s9 + $0xc] sm:$0xf]
          %v2406 = vld [vmem:[%s10] sm:$0x1]
          %v2408 = vlaneseq
          %v2409 = vshrl.u32 %v2408, 7
          %v2410 = vsub.s32 0, %v2409
          %v2411 = vrot.slane %v2406, %v2410
          %v2417 = vunpack.c.l.b16 %v2402
          %v2418 = vunpack.c.l.b16 %v2403
          %v2419 = vunpack.c.l.b16 %v2404
          %v2420 = vunpack.c.l.b16 %v2405
          %v2421 = vpack.c.b16 %v2418, %v2417
          %v2422 = vpack.c.b16 %v2420, %v2419
          %v2426 = vsel %vm974, %v2401, 0
          %2428 = vmatprep.subr.bf16.mxu0 0
          %2429 = vmatpush1.bf16.msra.mxu0 %v2421
          %2430 = vmatprep.subr.bf16.mxu0 0
          %2431 = vmatpush1.bf16.msra.mxu0 %v2422
          %2432 = vmatprep.subr.bf16.mxu0 0
          %2433 = vmatpush1.bf16.msra.mxu0 0
          %2434 = vmatprep.subr.bf16.mxu0 0
          %2435 = vmatpush1.bf16.msra.mxu0 0
          %2436 = vmatprep.subr.bf16.mxu0 0
          %2437 = vmatpush1.bf16.msra.mxu0 0
          %2438 = vmatprep.subr.bf16.mxu0 0
          %2439 = vmatpush1.bf16.msra.mxu0 0
          %2440 = vmatprep.subr.bf16.mxu0 0
          %2441 = vmatpush1.bf16.msra.mxu0 0
          %2442 = vmatprep.subr.bf16.mxu0 0
          %2443 = vmatpush1.bf16.msra.mxu0 0
          %2444 = vmatprep.subr.bf16.mxu0 0
          %2445 = vmatpush1.bf16.msra.mxu0 0
          %2446 = vmatprep.subr.bf16.mxu0 0
          %2447 = vmatpush1.bf16.msra.mxu0 0
          %2448 = vmatprep.subr.bf16.mxu0 0
          %2449 = vmatpush1.bf16.msra.mxu0 0
          %2450 = vmatprep.subr.bf16.mxu0 0
          %2451 = vmatpush1.bf16.msra.mxu0 0
          %2452 = vmatprep.subr.bf16.mxu0 0
          %2453 = vmatpush1.bf16.msra.mxu0 0
          %2454 = vmatprep.subr.bf16.mxu0 0
          %2455 = vmatpush1.bf16.msra.mxu0 0
          %2456 = vmatprep.subr.bf16.mxu0 0
          %2457 = vmatpush1.bf16.msra.mxu0 0
          %2458 = vmatprep.subr.bf16.mxu0 0
          %2459 = vmatpush1.bf16.msra.mxu0 0
          %2460 = vmatprep.mubr.bf16.mxu0 0
          %2461 = vmatmul.mubr.bf16.gmra.mrb[0].mxu0 %v2426
          %v2462 = vpop.f32.mrb[0].mxu0
          %v2463 = vadd.f32 %v2411, %v2462
          %v2464 = vpop.f32.mrb[0].mxu0
          %v2465 = vpop.f32.mrb[0].mxu0
          %v2466 = vpop.f32.mrb[0].mxu0
          %2467 = vdwg.mxu0
          %v2468 = vadd.f32 %v557, %v2463
          %v2469 = vld [vmem:[#allocation7] sm:$0x3f]
          %v2470 = vadd.f32 %v2468, %v2469
          %2471 = vst.msk [vmem:[#allocation8] sm:$0x3f] %vm1635, %v2470
        $region88: #{_lambda_.1} parent=79 // pred_fallthru
          _
        %s2472 = sand.u32 %s391, 1
        %s2473 = scalar_lea.sflag [#allocation11], %s2472
        %s2474 = sand.u32 %s391, 1
        %s2475 = smul.addr %s2474, 128
        %s2476 = scalar_lea.vmem [#allocation10], %s2475
        // Predicated region
        $region89: #{_lambda_.1} parent=79 // pred_check
          %p2477 = pneg %p375
        $region90: #{_lambda_.1} parent=79 // pred_check_branch
          %2479 = sbr.rel (%p2477) target = $region92
        $region91: #{_lambda_.1} parent=79 // pred_region
          %s2481 = ssub.s32 128, 128
          %2482 = vsyncadd [#allocation9], %s2481
          %s2484 = sshll.u32 [#allocation8], 4
          %s2485 = int_to_ptr.vmem [resolvable:$true] %s2484
          %2487 = dma.vmem_to_hbm [thread:$0]  %s2485, 128, %s15, [#allocation9]
        $region92: #{_lambda_.1} parent=79 // pred_fallthru
          _
        // Predicated region
        $region93: #{_lambda_.1} parent=79 // pred_check
          %p2488 = pneg %p401
        $region94: #{_lambda_.1} parent=79 // pred_check_branch
          %2490 = sbr.rel (%p2488) target = $region96
        $region95: #{_lambda_.1} parent=79 // pred_region
          %s2491 = smul.u32 16, %s32
          %s2493 = ssub.s32 2048, 2048
          %2494 = vsyncadd %s2473, %s2493
          %s2495 = smul.addr %s2491, 128
          %s2496 = scalar_lea.hbm %s16, %s2495
          %s2497 = sshll.u32 %s2476, 4
          %s2498 = int_to_ptr.vmem [resolvable:$true] %s2497
          %2503 = dma.vmem_to_hbm [thread:$0]  %s2498, 2048, %s2496, %s2473, 128, 128, 8
        $region96: #{_lambda_.1} parent=79 // pred_fallthru
          _
        // Predicated region
        $region97: #{_lambda_.1} parent=79 // pred_check
          %p2504 = pneg %p375
        $region98: #{_lambda_.1} parent=79 // pred_check_branch
          %2506 = sbr.rel (%p2504) target = $region100
        $region99: #{_lambda_.1} parent=79 // pred_region
          %2507 = dma.done [#allocation9], 128
        $region100: #{_lambda_.1} parent=79 // pred_fallthru
          _
      $region80: #{_lambda_.1} parent=5 // pred_fallthru
        _
      %p2508 = scmp.le.s32.totalorder 2, %s27
      // Predicated region
      $region101: #{_lambda_.1} parent=5 // pred_check
        %p2509 = pneg %p2508
      $region102: #{_lambda_.1} parent=5 // pred_check_branch
        %2511 = sbr.rel (%p2509) target = $region104
      $region103: #{_lambda_.1} parent=5 // pred_region
        %s2512 = ssub.s32 %s27, 2
        // Predicated region
        $region105: #{_lambda_.1} parent=103 // pred_check
          %p2513 = pneg %p407
        $region106: #{_lambda_.1} parent=103 // pred_check_branch
          %2515 = sbr.rel (%p2513) target = $region108
        $region107: #{_lambda_.1} parent=103 // pred_region
          %s2516 = sand.u32 %s392, 1
          %s2517 = scalar_lea.sflag [#allocation11], %s2516
          %s2518 = sand.u32 %s392, 1
          %s2519 = smul.addr %s2518, 128
          %s2520 = scalar_lea.vmem [#allocation10], %s2519
          %2521 = dma.done %s2517, 2048
        $region108: #{_lambda_.1} parent=103 // pred_fallthru
          _
      $region104: #{_lambda_.1} parent=5 // pred_fallthru
        _
    $region6: #{_lambda_.1} parent=1 // loop_footer
      %s31 = sadd.s32 1, %s27
    $region7: #{_lambda_.1} parent=1 // loop_footer_branch
      %26 = sbr.rel target = $region3
    $region8: #{_lambda_.1} parent=1 // loop_exit
      _
    %2522 = vsyncpa [#allocation9], 1
    %s2523 = scalar_lea.sflag [#allocation9], 1
    %2524 = vsyncpa %s2523, 1
    %2525 = vsyncpa [#allocation11], 1
    %s2526 = scalar_lea.sflag [#allocation11], 1
    %2527 = vsyncpa %s2526, 1

</llo_original>
